<compile_context>
chip_gen: v5e
topology: v5e:2x2
jax: 0.10.0
libtpu: 0.0.40
codegen_flags: <defaults>
</compile_context>

<pallas_src>
import functools

import jax
import jax.numpy as jnp
from jax.experimental import pallas as pl
from jax.experimental.pallas import tpu as pltpu

ACT_NONE, ACT_RELU, ACT_LRELU = 0, 1, 2
RES_NONE, RES_FIRST, RES_MID = 0, 1, 2
LRELU_SLOPE = 0.1
_VMEM_LIMIT = 48 * 1024 * 1024  # safe on v5e/v6e (128 MiB) and v7x (64 MiB)


# ----------------------------------------------------------------------------
# small helpers usable both inside and outside kernels
# ----------------------------------------------------------------------------
def _act(v, a):
    if a == ACT_RELU:
        return jnp.maximum(v, 0.0)
    if a == ACT_LRELU:
        return jnp.where(v >= 0.0, v, LRELU_SLOPE * v)
    return v


def _im2col(x, oh, ow, k):
    """x: (oh+k-1, ow+k-1, C)  ->  (oh*ow, k*k*C) patch matrix."""
    c = x.shape[-1]
    if k == 1:
        return x.reshape(oh * ow, c)
    cols = []
    for dy in range(k):
        for dx in range(k):
            cols.append(x[dy:dy + oh, dx:dx + ow, :].reshape(oh * ow, c))
    return jnp.concatenate(cols, axis=-1)


# ----------------------------------------------------------------------------
# capability probe: unaligned minor-dim concat (im2col fold) inside a kernel
# ----------------------------------------------------------------------------
_FOLD_SUPPORTED = None


def _im2col_fold_supported():
    global _FOLD_SUPPORTED
    if _FOLD_SUPPORTED is not None:
        return _FOLD_SUPPORTED
    oh = ow = 6
    x = jnp.arange(8 * 8 * 3, dtype=jnp.float32).reshape(8, 8, 3) / 37.0
    w = (jnp.arange(27 * 4, dtype=jnp.float32).reshape(27, 4) / 53.0
         ).astype(jnp.bfloat16)

    def _probe_kernel(x_ref, w_ref, o_ref):
        patches = _im2col(x_ref[...].astype(jnp.bfloat16), oh, ow, 3)
        o_ref[...] = jnp.dot(patches, w_ref[...],
                             preferred_element_type=jnp.float32)

    try:
        fn = pl.pallas_call(
            _probe_kernel,
            out_shape=jax.ShapeDtypeStruct((oh * ow, 4), jnp.float32))
        got = jax.block_until_ready(fn(x, w))
        want = jnp.dot(_im2col(x.astype(jnp.bfloat16), oh, ow, 3), w,
                       preferred_element_type=jnp.float32)
        _FOLD_SUPPORTED = bool(jnp.allclose(got, want, rtol=5e-2, atol=1e-2))
    except Exception:
        _FOLD_SUPPORTED = False
    return _FOLD_SUPPORTED


def _pick_tile_rows(H, W, cmax, two_stage):
    """Row tile so the f32 per-tile working set stays modest and the grid has
    >= 2 steps whenever H allows (pipelining + megacore sharding)."""
    halo = 4 if two_stage else 2
    budget = 1 << 20
    th = H
    if H % 2 == 0 and H >= 16:
        th = H // 2
    while th % 2 == 0 and th >= 16 and (th + halo) * (W + halo) * cmax * 4 > budget:
        th //= 2
    return th


# ----------------------------------------------------------------------------
# fused conv kernel factory
# ----------------------------------------------------------------------------
def _make_fused_conv_kernel(H, W, TH, cins, c1, cout, K, act1, act2,
                            residual, two_stage, fold):
    n_in = len(cins)
    if two_stage:
        rows_in = TH + 4          # 2-row halo on each side for the fused 3x3+3x3
        mh, mw = TH + 2, W + 2    # stage-1 output extent (recomputed halo)
    else:
        rows_in = TH + K - 1
        mh, mw = TH, W
    P = 0 if K == 1 else (2 if two_stage else 1)
    flat_w = fold or (K == 1)

    def stage_dot(xb, w_ref, oh, ow, cin):
        # xb: (oh+K-1, ow+K-1, cin) bf16 -> (oh*ow, c_dst) f32
        if flat_w:
            return jnp.dot(_im2col(xb, oh, ow, K), w_ref[...],
                           preferred_element_type=jnp.float32)
        out = None
        for dy in range(K):
            for dx in range(K):
                p_ = xb[dy:dy + oh, dx:dx + ow, :].reshape(oh * ow, cin)
                d = jnp.dot(p_, w_ref[dy, dx],
                            preferred_element_type=jnp.float32)
                out = d if out is None else out + d
        return out

    def kernel(*refs):
        x_refs = refs[:n_in]
        w1_refs = refs[n_in:2 * n_in]
        b1_ref = refs[2 * n_in]
        pos = 2 * n_in + 1
        if two_stage:
            w2_ref, b2_ref = refs[pos], refs[pos + 1]
            pos += 2
        o_ref = refs[pos]

        t = pl.program_id(1)
        r0 = t * TH
        if TH % 8 == 0:
            r0 = pl.multiple_of(r0, 8)

        # ---- stage 1: sum of per-source convs (== conv over the concat) ----
        acc = None
        res_slab = None
        for i in range(n_in):
            slab = x_refs[i][0, pl.ds(r0, rows_in), :, :]
            if i == 0 and residual == RES_FIRST:
                res_slab = slab
            d = stage_dot(slab.astype(jnp.bfloat16), w1_refs[i], mh, mw, cins[i])
            acc = d if acc is None else acc + d
        acc = _act(acc + b1_ref[...], act1)

        if two_stage:
            mid = acc.reshape(mh, mw, c1)
            # zero the recomputed halo that lies outside the image so the
            # second conv sees exact zero padding at the image border.
            lr = jax.lax.broadcasted_iota(jnp.int32, (mh, mw, 1), 0)
            lc = jax.lax.broadcasted_iota(jnp.int32, (mh, mw, 1), 1)
            gr = lr + (r0 - 1)
            inside = (gr >= 0) & (gr < H) & (lc >= 1) & (lc <= W)
            mid = jnp.where(inside, mid, 0.0)

            # ---- stage 2 ----
            out = stage_dot(mid.astype(jnp.bfloat16), w2_ref, TH, W, c1)
            out = _act(out + b2_ref[...], act2)
            if residual == RES_MID:
                out = out + mid[1:1 + TH, 1:1 + W, :].reshape(TH * W, cout)
            elif residual == RES_FIRST:
                out = out + res_slab[2:2 + TH, 2:2 + W, :].reshape(TH * W, cout)
        else:
            out = acc
            if residual == RES_FIRST:
                out = out + res_slab[P:P + TH, P:P + W, :].reshape(TH * W, cout)

        o_ref[0] = out.reshape(TH, W, cout)

    return kernel


@functools.lru_cache(maxsize=None)
def _build_fused_conv(B, H, W, cins, c1, cout, K, act1, act2, residual,
                      two_stage, fold):
    P = 0 if K == 1 else (2 if two_stage else 1)
    Hp, Wp = H + 2 * P, W + 2 * P
    cmax = max([c1, cout] + list(cins))
    TH = _pick_tile_rows(H, W, cmax, two_stage)
    flat_w = fold or (K == 1)

    kernel = _make_fused_conv_kernel(H, W, TH, cins, c1, cout, K, act1, act2,
                                     residual, two_stage, fold)

    # Inputs: full padded per-batch images (block index fixed along the row-tile
    # axis, so they are DMA'd once per batch element and stay VMEM-resident).
    in_specs = [pl.BlockSpec((1, Hp, Wp, ci), lambda b, t: (b, 0, 0, 0))
                for ci in cins]
    for ci in cins:
        if flat_w:
            in_specs.append(pl.BlockSpec((K * K * ci, c1), lambda b, t: (0, 0)))
        else:
            in_specs.append(pl.BlockSpec((K, K, ci, c1),
                                         lambda b, t: (0, 0, 0, 0)))
    in_specs.append(pl.BlockSpec((1, c1), lambda b, t: (0, 0)))
    if two_stage:
        if flat_w:
            in_specs.append(pl.BlockSpec((9 * c1, cout), lambda b, t: (0, 0)))
        else:
            in_specs.append(pl.BlockSpec((3, 3, c1, cout),
                                         lambda b, t: (0, 0, 0, 0)))
        in_specs.append(pl.BlockSpec((1, cout), lambda b, t: (0, 0)))

    return pl.pallas_call(
        kernel,
        out_shape=jax.ShapeDtypeStruct((B, H, W, cout), jnp.float32),
        grid_spec=pltpu.PrefetchScalarGridSpec(
            num_scalar_prefetch=0,
            grid=(B, H // TH),
            in_specs=in_specs,
            out_specs=pl.BlockSpec((1, TH, W, cout),
                                   lambda b, t: (b, t, 0, 0))),
        compiler_params=pltpu.CompilerParams(
            dimension_semantics=("parallel", "parallel"),
            vmem_limit_bytes=_VMEM_LIMIT))


def fused_conv(xs, p1, p2=None, act1=ACT_NONE, act2=ACT_NONE,
               residual=RES_NONE):
    """Fused (multi-input) conv (+ optional second conv) + bias + act + residual.

    xs: list of (B, H, W, Cin_i) f32 arrays (logically concatenated on channels)
    p1: {'w': (K, K, sum(Cin_i), Cmid), 'b': (Cmid,)}
    p2: optional {'w': (3, 3, Cmid, Cout), 'b': (Cout,)}
    """
    if not isinstance(xs, (list, tuple)):
        xs = [xs]
    xs = list(xs)
    B, H, W, _ = xs[0].shape
    cins = tuple(int(x.shape[-1]) for x in xs)
    w1 = p1["w"]
    K = int(w1.shape[0])
    c1 = int(w1.shape[-1])
    assert int(w1.shape[2]) == sum(cins)
    two_stage = p2 is not None
    if two_stage:
        assert K == 3 and int(p2["w"].shape[0]) == 3
        cout = int(p2["w"].shape[-1])
    else:
        cout = c1
    if residual == RES_FIRST:
        assert cins[0] == cout
    if residual == RES_MID:
        assert c1 == cout

    fold = _im2col_fold_supported()
    flat_w = fold or (K == 1)
    P = 0 if K == 1 else (2 if two_stage else 1)

    # one spatial halo pad per fused block (shared by both convs of the block)
    if P:
        xs = [jnp.pad(x, ((0, 0), (P, P), (P, P), (0, 0))) for x in xs]
    xs = [x.astype(jnp.float32) for x in xs]

    # split stage-1 weight per source, flatten for the im2col contraction, bf16
    w1_parts, off = [], 0
    for ci in cins:
        wpart = w1[:, :, off:off + ci, :]
        off += ci
        if flat_w:
            wpart = wpart.reshape(K * K * ci, c1)
        w1_parts.append(wpart.astype(jnp.bfloat16))
    b1 = p1["b"].reshape(1, c1).astype(jnp.float32)
    extra = []
    if two_stage:
        w2 = p2["w"]
        if flat_w:
            w2 = w2.reshape(9 * c1, cout)
        extra = [w2.astype(jnp.bfloat16),
                 p2["b"].reshape(1, cout).astype(jnp.float32)]

    fn = _build_fused_conv(int(B), int(H), int(W), cins, c1, cout, K,
                           act1, act2, residual, two_stage, fold)
    return fn(*xs, *w1_parts, b1, *extra)


def conv2d(x, p, act=ACT_NONE):
    return fused_conv([x], p, act1=act)


# ----------------------------------------------------------------------------
# Plain-JAX glue ops
# ----------------------------------------------------------------------------
def pixel_shuffle(x, r):
    # PyTorch PixelShuffle semantics (channel layout [Cout, r, r]) in NHWC.
    B, H, W, C = x.shape
    Cout = C // (r * r)
    x = x.reshape(B, H, W, Cout, r, r)
    x = jnp.transpose(x, (0, 1, 4, 2, 5, 3))
    return x.reshape(B, H * r, W * r, Cout)


def flow_warp(feat, flow):
    """Bilinear warp. feat: (B,H,W,C), flow: (B,H,W,2) with (dx, dy) channels.
    Zero padding outside the image.
    TODO(synk): this XLA gather could be moved into a Pallas kernel (in-VMEM
    gather fused with the following fg_dcn conv)."""
    B, H, W, C = feat.shape
    ys, xs = jnp.meshgrid(jnp.arange(H, dtype=jnp.float32),
                          jnp.arange(W, dtype=jnp.float32), indexing="ij")
    gx = xs[None] + flow[..., 0]
    gy = ys[None] + flow[..., 1]
    x0 = jnp.floor(gx)
    y0 = jnp.floor(gy)
    x1 = x0 + 1.0
    y1 = y0 + 1.0
    wx1 = gx - x0
    wx0 = 1.0 - wx1
    wy1 = gy - y0
    wy0 = 1.0 - wy1
    flat = feat.reshape(B, H * W, C)

    def gather(yc, xc):
        valid = ((xc >= 0) & (xc <= W - 1) & (yc >= 0) & (yc <= H - 1))
        xi = jnp.clip(xc, 0, W - 1).astype(jnp.int32)
        yi = jnp.clip(yc, 0, H - 1).astype(jnp.int32)
        idx = (yi * W + xi).reshape(B, H * W, 1)
        g = jnp.take_along_axis(flat, idx, axis=1).reshape(B, H, W, C)
        return g * valid.astype(feat.dtype)[..., None]

    out = (gather(y0, x0) * (wy0 * wx0)[..., None]
           + gather(y0, x1) * (wy0 * wx1)[..., None]
           + gather(y1, x0) * (wy1 * wx0)[..., None]
           + gather(y1, x1) * (wy1 * wx1)[..., None])
    return out


# ----------------------------------------------------------------------------
# Parameter init (deterministic, synthetic)
# ----------------------------------------------------------------------------
def _conv_init(key, k, cin, cout):
    kw, _ = jax.random.split(key)
    scale = 0.1 / jnp.sqrt(float(k * k * cin))
    w = jax.random.normal(kw, (k, k, cin, cout), jnp.float32) * scale
    b = jnp.zeros((cout,), jnp.float32)
    return {"w": w, "b": b}


def _rb_init(key, nf, mul=1):
    k1, k2 = jax.random.split(key)
    return {"conv1": _conv_init(k1, 3, nf * mul, nf),
            "conv2": _conv_init(k2, 3, nf, nf)}


def _dcn_init(key, nf):
    k1, k2 = jax.random.split(key)
    return {"conv_off": _conv_init(k1, 3, 3 * nf + 2, nf),
            "conv_out": _conv_init(k2, 3, nf, nf)}


# ----------------------------------------------------------------------------
# Sub-module forwards (each one is a single fused Pallas kernel launch)
# ----------------------------------------------------------------------------
def resblock_nobn(p, x):
    # x + conv2(relu(conv1(x))) fully fused (intermediate stays in VMEM)
    return fused_conv([x], p["conv1"], p["conv2"], act1=ACT_RELU,
                      act2=ACT_NONE, residual=RES_FIRST)


def resblock_init(p, xs):
    # TODO(synk): mutil.ResidualBlock_init source unavailable; stand-in keeps a
    # channel-reducing first conv with the residual taken after the reduction.
    return fused_conv(xs, p["conv1"], p["conv2"], act1=ACT_RELU,
                      act2=ACT_NONE, residual=RES_MID)


def run_blocks(blocks, x):
    for p in blocks:
        x = resblock_nobn(p, x)
    return x


def run_diff_blocks(blocks, xs):
    x = resblock_init(blocks[0], xs)
    for p in blocks[1:]:
        x = resblock_nobn(p, x)
    return x


def spynet(p, im1, im2):
    # TODO(synk): full coarse-to-fine SPyNet pyramid not replicated; a single
    # learned conv over the frame pair (passed as two kernel inputs) gives flow.
    return fused_conv([im1, im2], p, act1=ACT_NONE)


def refine_flows(p, flows):
    # TODO(synk): RefineFlow source unavailable; residual conv on flows only.
    B, M, H, W, _ = flows.shape
    if M == 0:
        return flows
    f = flows.reshape(B * M, H, W, 2)
    out = fused_conv([f], p, act1=ACT_NONE, residual=RES_FIRST)
    return out.reshape(B, M, H, W, 2)


def fg_dcn(p, w_fea, warped_fea, ref_fea, flow):
    # TODO(synk): FlowGuidedDCN2 deformable sampling (data-dependent gather) is
    # approximated by a fused conv stack over [w_fea, warped_fea, ref_fea, flow].
    return fused_conv([w_fea, warped_fea, ref_fea, flow], p["conv_off"],
                      p["conv_out"], act1=ACT_LRELU, act2=ACT_NONE)


def conv_hr_last(x, p_hr, p_last):
    # lrelu(conv_hr) -> conv_last fused; the 64-ch intermediate never hits HBM.
    return fused_conv([x], p_hr, p_last, act1=ACT_LRELU, act2=ACT_NONE)


# ----------------------------------------------------------------------------
# Real_STVR
# ----------------------------------------------------------------------------
class RealSTVR:
    def __init__(self, key, nf=64, nframes=3, front_RBs=5, back_RBs=30,
                 DCN_RBs=10):
        self.nf = nf
        keys = iter(jax.random.split(key, 256))
        nk = lambda: next(keys)
        p = {}
        p["spynet"] = _conv_init(nk(), 3, 6, 2)
        p["conv_first"] = _conv_init(nk(), 3, 3, nf)
        p["fe_VFI"] = [_rb_init(nk(), nf) for _ in range(front_RBs)]
        p["flow_refine"] = _conv_init(nk(), 3, 2, 2)
        p["fgDCN_forward"] = _dcn_init(nk(), nf)
        p["fgDCN_for_feature"] = [_rb_init(nk(), nf) for _ in range(3)]
        p["fgDCN_backward"] = _dcn_init(nk(), nf)
        p["fgDCN_back_feature"] = [_rb_init(nk(), nf) for _ in range(3)]
        p["fusion_inter"] = _conv_init(nk(), 1, 2 * nf, nf)
        p["fgDCN_forward_SR"] = _dcn_init(nk(), nf)
        p["fgDCN_backward_SR"] = _dcn_init(nk(), nf)
        p["fe_VSR_backward"] = ([_rb_init(nk(), nf, 2)] +
                                [_rb_init(nk(), nf) for _ in range(DCN_RBs - 1)])
        p["fe_VSR_forward"] = ([_rb_init(nk(), nf, 2)] +
                               [_rb_init(nk(), nf) for _ in range(DCN_RBs - 1)])
        p["fusion"] = ([_rb_init(nk(), nf, 3)] +
                       [_rb_init(nk(), nf) for _ in range(back_RBs - 1)])
        p["upconv1"] = _conv_init(nk(), 3, nf, nf * 4)
        p["upconv2"] = _conv_init(nk(), 3, nf, 64 * 4)
        p["conv_hr"] = _conv_init(nk(), 3, 64, 64)
        p["conv_last"] = _conv_init(nk(), 3, 64, 3)
        self.p = p

    # -------- flow helpers (flows stored as (B, M, H, W, 2)) --------
    def compute_flow(self, lrs):
        B, N, H, W, C = lrs.shape
        l1 = lrs[:, :-1].reshape(-1, H, W, C)
        l2 = lrs[:, 1:].reshape(-1, H, W, C)
        fb = spynet(self.p["spynet"], l1, l2).reshape(B, N - 1, H, W, 2)
        ff = spynet(self.p["spynet"], l2, l1).reshape(B, N - 1, H, W, 2)
        return ff, fb

    def compute_long_term_flow(self, lrs):
        B, N, H, W, C = lrs.shape
        l1 = lrs[:, :-2].reshape(-1, H, W, C)
        l2 = lrs[:, 2:].reshape(-1, H, W, C)
        fb = spynet(self.p["spynet"], l1, l2).reshape(B, N - 2, H, W, 2)
        ff = spynet(self.p["spynet"], l2, l1).reshape(B, N - 2, H, W, 2)
        return ff, fb

    def make_inter_flows(self, fb, ff):
        M = fb.shape[1]
        rb, rf = [], []
        for i in range(M * 2):
            if i % 2 == 0:
                rb.append(fb[:, i // 2] * 0.5)
                rf.append(fb[:, i // 2] * -0.5)
            else:
                rb.append(ff[:, i // 2] * -0.5)
                rf.append(ff[:, i // 2] * 0.5)
        return jnp.stack(rb, axis=1), jnp.stack(rf, axis=1)

    # -------- frame interpolation --------
    def make_interpolated_frames(self, N, L1_fea, flows_backward,
                                 flows_forward, isHFR):
        if isHFR:
            mul, end_point, flow_point = 2, -1, 1
        else:
            mul, end_point, flow_point = 1, 0, 0
        long_backward = []
        for i in range(N - 2, end_point, -1):
            w_fea = L1_fea[:, i + 1]
            flow = flows_backward[:, i * mul + flow_point]
            warped = flow_warp(w_fea, flow)
            inter = fg_dcn(self.p["fgDCN_backward"], w_fea, warped,
                           L1_fea[:, i - 1 - end_point], flow)
            inter = run_blocks(self.p["fgDCN_back_feature"], inter)
            long_backward.append(inter)
        long_backward = long_backward[::-1]
        forward_list = []
        for i in range(1, N - 1 - end_point):
            w_fea = L1_fea[:, i - 1]
            flow = flows_forward[:, (i - 1) * mul]
            warped = flow_warp(w_fea, flow)
            inter = fg_dcn(self.p["fgDCN_forward"], w_fea, warped,
                           L1_fea[:, i + 1 + end_point], flow)
            inter = run_blocks(self.p["fgDCN_for_feature"], inter)
            forward_list.append(inter)
        out = []
        for i in range(len(forward_list)):
            # 1x1 fusion conv over the two sources (no host concat)
            out.append(fused_conv([long_backward[i], forward_list[i]],
                                  self.p["fusion_inter"], act1=ACT_NONE))
        return out

    # -------- VSR --------
    def do_vsr(self, lrs, flows_backward, flows_forward):
        B, N, H, W, C = lrs.shape
        output_backward = []
        fea_prev = lrs[:, N - 1]
        for i in range(N - 1, -1, -1):
            fea_now = lrs[:, i]
            if i < N - 1:
                flow = flows_backward[:, i]
                fea_warped = flow_warp(fea_prev, flow)
                fea_prev = fg_dcn(self.p["fgDCN_backward_SR"], fea_prev,
                                  fea_warped, fea_now, flow)
            fea_prev = run_diff_blocks(self.p["fe_VSR_backward"],
                                       [fea_now, fea_prev])
            output_backward.append(fea_prev)
        output_forward_from_back = output_backward[::-1]

        fea_prev = lrs[:, 0]
        outs = []
        for i in range(N):
            fea_now = lrs[:, i]
            if i > 0:
                flow = flows_forward[:, i - 1]
                fea_warped = flow_warp(fea_prev, flow)
                fea_prev = fg_dcn(self.p["fgDCN_forward_SR"], fea_prev,
                                  fea_warped, fea_now, flow)
            fea_prev = run_diff_blocks(self.p["fe_VSR_forward"],
                                       [fea_now, fea_prev])
            out = run_diff_blocks(self.p["fusion"],
                                  [lrs[:, i], output_forward_from_back[i],
                                   fea_prev])
            # lrelu(pixel_shuffle(conv)) == pixel_shuffle(lrelu(conv)):
            # lrelu is fused into the conv kernel, shuffle after.
            out = pixel_shuffle(conv2d(out, self.p["upconv1"], ACT_LRELU), 2)
            out = pixel_shuffle(conv2d(out, self.p["upconv2"], ACT_LRELU), 2)
            out = conv_hr_last(out, self.p["conv_hr"], self.p["conv_last"])
            outs.append(out)
        return jnp.stack(outs, axis=1)

    # -------- full forward --------
    def forward(self, x_nchw):
        # x_nchw: (B, N, 3, H, W) float32 — PyTorch convention.
        x = jnp.transpose(x_nchw, (0, 1, 3, 4, 2)).astype(jnp.float32)  # NHWC
        B, N, H, W, C = x.shape

        flows_forward, flows_backward = self.compute_flow(x)
        long_flows_forward, long_flows_backward = self.compute_long_term_flow(x)

        L1 = conv2d(x.reshape(-1, H, W, C), self.p["conv_first"], ACT_LRELU)
        L1 = run_blocks(self.p["fe_VFI"], L1)
        L1_fea = L1.reshape(B, N, H, W, self.nf)

        flows_backward, flows_forward = self.make_inter_flows(
            flows_backward, flows_forward)
        flows_backward = refine_flows(self.p["flow_refine"], flows_backward)
        flows_forward = refine_flows(self.p["flow_refine"], flows_forward)

        fusion_inter_frames = self.make_interpolated_frames(
            N, L1_fea, flows_backward, flows_forward, True)

        lrs = []
        for i in range(N * 2 - 1):
            if i % 2 == 0:
                lrs.append(L1_fea[:, i // 2])
            else:
                lrs.append(fusion_inter_frames[i // 2])
        lrs = jnp.stack(lrs, axis=1)

        high_frame_SR_out = self.do_vsr(lrs, flows_backward, flows_forward)

        long_fb, long_ff = self.make_inter_flows(long_flows_backward,
                                                 long_flows_forward)
        long_fb = refine_flows(self.p["flow_refine"], long_fb)
        long_ff = refine_flows(self.p["flow_refine"], long_ff)

        long_back, long_for = [], []
        for i in range(0, N, 4):
            long_back.append(long_fb[:, i])
            long_back.append(long_fb[:, i + 1])
            long_for.append(long_ff[:, i])
            long_for.append(long_ff[:, i + 1])
        if N % 2 == 0:
            long_back.append(long_fb[:, -1])
            long_for.append(long_ff[:, -1])
        long_fb = jnp.stack(long_back, axis=1)
        long_ff = jnp.stack(long_for, axis=1)

        long_inter_frames = self.make_interpolated_frames(
            N, L1_fea, long_fb, long_ff, False)
        long_fusion_inter_frames = jnp.stack(long_inter_frames, axis=1)
        long_fb = long_fb[:, 1:-1]
        long_ff = long_ff[:, 1:-1]
        long_term_frame_SR_out = self.do_vsr(long_fusion_inter_frames,
                                             long_fb, long_ff)

        to_nchw = lambda t: jnp.transpose(t, (0, 1, 4, 2, 3))
        return (to_nchw(high_frame_SR_out),
                to_nchw(long_term_frame_SR_out),
                jax.lax.stop_gradient(to_nchw(L1_fea[:, 1:-1])),
                to_nchw(long_fusion_inter_frames))


# ----------------------------------------------------------------------------
if __name__ == "__main__":
    key = jax.random.PRNGKey(0)
    k_param, k_data = jax.random.split(key)

    # Small configuration consistent with the module constructor.
    nf, nframes, front_RBs, back_RBs, DCN_RBs = 16, 3, 2, 2, 2
    B, N, C, H, W = 1, 3, 3, 16, 16

    model = RealSTVR(k_param, nf=nf, nframes=nframes, front_RBs=front_RBs,
                     back_RBs=back_RBs, DCN_RBs=DCN_RBs)
    x = jax.random.normal(k_data, (B, N, C, H, W), jnp.float32) * 0.5

    outs = model.forward(x)
    outs = jax.block_until_ready(outs)

    # Sanity: shapes match the PyTorch forward contract.
    high, long_out, feats, long_fusion = outs
    assert high.shape == (B, 2 * N - 1, 3, 4 * H, 4 * W)
    assert long_out.shape == (B, N - 2, 3, 4 * H, 4 * W)
    assert feats.shape == (B, N - 2, nf, H, W)
    assert long_fusion.shape == (B, N - 2, nf, H, W)
    assert all(bool(jnp.all(jnp.isfinite(o))) for o in outs)
    print("KERNEL_OK")
</pallas_src>

<mosaic_0001>
module attributes {stable_mosaic.version = 11 : i64} {
  func.func @_probe_kernel(%arg0: memref<8x8x3xf32, #tpu.memory_space<vmem>>, %arg1: memref<27x4xbf16, #tpu.memory_space<vmem>>, %arg2: memref<36x4xf32, #tpu.memory_space<vmem>>) attributes {dimension_semantics = [], scalar_prefetch = 0 : i64, scratch_operands = 0 : i64, tpu.core_type = #tpu.core_type<tc>} {
    %c0 = arith.constant 0 : index
    %c0_0 = arith.constant 0 : index
    %c0_1 = arith.constant 0 : index
    %0 = vector.load %arg0[%c0, %c0_0, %c0_1] : memref<8x8x3xf32, #tpu.memory_space<vmem>>, vector<8x8x3xf32>
    %1 = arith.truncf %0 : vector<8x8x3xf32> to vector<8x8x3xbf16>
    %2 = vector.extract_strided_slice %1 {offsets = [0, 0, 0], sizes = [6, 6, 3], strides = [1, 1, 1]} : vector<8x8x3xbf16> to vector<6x6x3xbf16>
    %3 = vector.shape_cast %2 : vector<6x6x3xbf16> to vector<36x3xbf16>
    %4 = vector.extract_strided_slice %1 {offsets = [0, 1, 0], sizes = [6, 6, 3], strides = [1, 1, 1]} : vector<8x8x3xbf16> to vector<6x6x3xbf16>
    %5 = vector.shape_cast %4 : vector<6x6x3xbf16> to vector<36x3xbf16>
    %6 = vector.extract_strided_slice %1 {offsets = [0, 2, 0], sizes = [6, 6, 3], strides = [1, 1, 1]} : vector<8x8x3xbf16> to vector<6x6x3xbf16>
    %7 = vector.shape_cast %6 : vector<6x6x3xbf16> to vector<36x3xbf16>
    %8 = vector.extract_strided_slice %1 {offsets = [1, 0, 0], sizes = [6, 6, 3], strides = [1, 1, 1]} : vector<8x8x3xbf16> to vector<6x6x3xbf16>
    %9 = vector.shape_cast %8 : vector<6x6x3xbf16> to vector<36x3xbf16>
    %10 = vector.extract_strided_slice %1 {offsets = [1, 1, 0], sizes = [6, 6, 3], strides = [1, 1, 1]} : vector<8x8x3xbf16> to vector<6x6x3xbf16>
    %11 = vector.shape_cast %10 : vector<6x6x3xbf16> to vector<36x3xbf16>
    %12 = vector.extract_strided_slice %1 {offsets = [1, 2, 0], sizes = [6, 6, 3], strides = [1, 1, 1]} : vector<8x8x3xbf16> to vector<6x6x3xbf16>
    %13 = vector.shape_cast %12 : vector<6x6x3xbf16> to vector<36x3xbf16>
    %14 = vector.extract_strided_slice %1 {offsets = [2, 0, 0], sizes = [6, 6, 3], strides = [1, 1, 1]} : vector<8x8x3xbf16> to vector<6x6x3xbf16>
    %15 = vector.shape_cast %14 : vector<6x6x3xbf16> to vector<36x3xbf16>
    %16 = vector.extract_strided_slice %1 {offsets = [2, 1, 0], sizes = [6, 6, 3], strides = [1, 1, 1]} : vector<8x8x3xbf16> to vector<6x6x3xbf16>
    %17 = vector.shape_cast %16 : vector<6x6x3xbf16> to vector<36x3xbf16>
    %18 = vector.extract_strided_slice %1 {offsets = [2, 2, 0], sizes = [6, 6, 3], strides = [1, 1, 1]} : vector<8x8x3xbf16> to vector<6x6x3xbf16>
    %19 = vector.shape_cast %18 : vector<6x6x3xbf16> to vector<36x3xbf16>
    %20 = tpu.concatenate %3, %5, %7, %9, %11, %13, %15, %17, %19 in 1 : vector<36x3xbf16>, vector<36x3xbf16>, vector<36x3xbf16>, vector<36x3xbf16>, vector<36x3xbf16>, vector<36x3xbf16>, vector<36x3xbf16>, vector<36x3xbf16>, vector<36x3xbf16> -> vector<36x27xbf16>
    %c0_2 = arith.constant 0 : index
    %c0_3 = arith.constant 0 : index
    %21 = vector.load %arg1[%c0_2, %c0_3] : memref<27x4xbf16, #tpu.memory_space<vmem>>, vector<27x4xbf16>
    %cst = arith.constant dense<0.000000e+00> : vector<36x4xf32>
    %22 = tpu.matmul %20, %21, %cst {dimension_numbers = #tpu.dot_dimension_numbers<[1], [0], [0], [1], [0, 0, 1, 1], [], []>} : vector<36x27xbf16>, vector<27x4xbf16>, vector<36x4xf32> -> vector<36x4xf32>
    %c0_4 = arith.constant 0 : index
    %c0_5 = arith.constant 0 : index
    %23 = vector.load %arg2[%c0_4, %c0_5] : memref<36x4xf32, #tpu.memory_space<vmem>>, vector<36x4xf32>
    tpu.vector_store %arg2[%c0_4, %c0_5], %22 {strides = array<i32>} : memref<36x4xf32, #tpu.memory_space<vmem>>, vector<36x4xf32>,
    return
  }
}

module attributes {stable_mosaic.version = 11 : i64} {
  func.func @kernel(%arg0: i32, %arg1: i32, %arg2: memref<1x18x18x3xf32, #tpu.memory_space<vmem>>, %arg3: memref<1x18x18x3xf32, #tpu.memory_space<vmem>>, %arg4: memref<3x3x3x2xbf16, #tpu.memory_space<vmem>>, %arg5: memref<3x3x3x2xbf16, #tpu.memory_space<vmem>>, %arg6: memref<1x2xf32, #tpu.memory_space<vmem>>, %arg7: memref<1x8x16x2xf32, #tpu.memory_space<vmem>>) attributes {dimension_semantics = [#tpu.dimension_semantics<parallel>, #tpu.dimension_semantics<parallel>], iteration_bounds = array<i64: 2, 2>, scalar_prefetch = 0 : i64, scratch_operands = 0 : i64, tpu.core_type = #tpu.core_type<tc>, window_params = [{transform_indices = @transform_0, window_bounds = array<i64: 1, 18, 18, 3>}, {transform_indices = @transform_1, window_bounds = array<i64: 1, 18, 18, 3>}, {pipeline_mode = #tpu.pipeline_mode<synchronous>, transform_indices = @transform_2, window_bounds = array<i64: 3, 3, 3, 2>}, {pipeline_mode = #tpu.pipeline_mode<synchronous>, transform_indices = @transform_3, window_bounds = array<i64: 3, 3, 3, 2>}, {pipeline_mode = #tpu.pipeline_mode<synchronous>, transform_indices = @transform_4, window_bounds = array<i64: 1, 2>}, {transform_indices = @transform_5, window_bounds = array<i64: 1, 8, 16, 2>}]} {
    %c8_i32 = arith.constant 8 : i32
    %0 = arith.muli %arg1, %c8_i32 : i32
    %1 = tpu.assume_multiple %0, 8 : i32
    %c0 = arith.constant 0 : index
    %2 = arith.index_cast %1 : i32 to index
    %c0_0 = arith.constant 0 : index
    %c0_1 = arith.constant 0 : index
    %3 = vector.load %arg2[%c0, %2, %c0_0, %c0_1] : memref<1x18x18x3xf32, #tpu.memory_space<vmem>>, vector<1x10x18x3xf32>
    %4 = vector.shape_cast %3 : vector<1x10x18x3xf32> to vector<10x18x3xf32>
    %5 = arith.truncf %4 : vector<10x18x3xf32> to vector<10x18x3xbf16>
    %6 = vector.extract_strided_slice %5 {offsets = [0, 0, 0], sizes = [8, 16, 3], strides = [1, 1, 1]} : vector<10x18x3xbf16> to vector<8x16x3xbf16>
    %7 = vector.shape_cast %6 : vector<8x16x3xbf16> to vector<128x3xbf16>
    %c0_2 = arith.constant 0 : index
    %c0_3 = arith.constant 0 : index
    %c0_4 = arith.constant 0 : index
    %c0_5 = arith.constant 0 : index
    %8 = vector.load %arg4[%c0_2, %c0_3, %c0_4, %c0_5] : memref<3x3x3x2xbf16, #tpu.memory_space<vmem>>, vector<1x1x3x2xbf16>
    %9 = vector.shape_cast %8 : vector<1x1x3x2xbf16> to vector<3x2xbf16>
    %cst = arith.constant dense<0.000000e+00> : vector<128x2xf32>
    %10 = tpu.matmul %7, %9, %cst {dimension_numbers = #tpu.dot_dimension_numbers<[1], [0], [0], [1], [0, 0, 1, 1], [], []>} : vector<128x3xbf16>, vector<3x2xbf16>, vector<128x2xf32> -> vector<128x2xf32>
    %11 = vector.extract_strided_slice %5 {offsets = [0, 1, 0], sizes = [8, 16, 3], strides = [1, 1, 1]} : vector<10x18x3xbf16> to vector<8x16x3xbf16>
    %12 = vector.shape_cast %11 : vector<8x16x3xbf16> to vector<128x3xbf16>
    %c0_6 = arith.constant 0 : index
    %c1 = arith.constant 1 : index
    %c0_7 = arith.constant 0 : index
    %c0_8 = arith.constant 0 : index
    %13 = vector.load %arg4[%c0_6, %c1, %c0_7, %c0_8] : memref<3x3x3x2xbf16, #tpu.memory_space<vmem>>, vector<1x1x3x2xbf16>
    %14 = vector.shape_cast %13 : vector<1x1x3x2xbf16> to vector<3x2xbf16>
    %cst_9 = arith.constant dense<0.000000e+00> : vector<128x2xf32>
    %15 = tpu.matmul %12, %14, %cst_9 {dimension_numbers = #tpu.dot_dimension_numbers<[1], [0], [0], [1], [0, 0, 1, 1], [], []>} : vector<128x3xbf16>, vector<3x2xbf16>, vector<128x2xf32> -> vector<128x2xf32>
    %16 = arith.addf %10, %15 : vector<128x2xf32>
    %17 = vector.extract_strided_slice %5 {offsets = [0, 2, 0], sizes = [8, 16, 3], strides = [1, 1, 1]} : vector<10x18x3xbf16> to vector<8x16x3xbf16>
    %18 = vector.shape_cast %17 : vector<8x16x3xbf16> to vector<128x3xbf16>
    %c0_10 = arith.constant 0 : index
    %c2 = arith.constant 2 : index
    %c0_11 = arith.constant 0 : index
    %c0_12 = arith.constant 0 : index
    %19 = vector.load %arg4[%c0_10, %c2, %c0_11, %c0_12] : memref<3x3x3x2xbf16, #tpu.memory_space<vmem>>, vector<1x1x3x2xbf16>
    %20 = vector.shape_cast %19 : vector<1x1x3x2xbf16> to vector<3x2xbf16>
    %cst_13 = arith.constant dense<0.000000e+00> : vector<128x2xf32>
    %21 = tpu.matmul %18, %20, %cst_13 {dimension_numbers = #tpu.dot_dimension_numbers<[1], [0], [0], [1], [0, 0, 1, 1], [], []>} : vector<128x3xbf16>, vector<3x2xbf16>, vector<128x2xf32> -> vector<128x2xf32>
    %22 = arith.addf %16, %21 : vector<128x2xf32>
    %23 = vector.extract_strided_slice %5 {offsets = [1, 0, 0], sizes = [8, 16, 3], strides = [1, 1, 1]} : vector<10x18x3xbf16> to vector<8x16x3xbf16>
    %24 = vector.shape_cast %23 : vector<8x16x3xbf16> to vector<128x3xbf16>
    %c1_14 = arith.constant 1 : index
    %c0_15 = arith.constant 0 : index
    %c0_16 = arith.constant 0 : index
    %c0_17 = arith.constant 0 : index
    %25 = vector.load %arg4[%c1_14, %c0_15, %c0_16, %c0_17] : memref<3x3x3x2xbf16, #tpu.memory_space<vmem>>, vector<1x1x3x2xbf16>
    %26 = vector.shape_cast %25 : vector<1x1x3x2xbf16> to vector<3x2xbf16>
    %cst_18 = arith.constant dense<0.000000e+00> : vector<128x2xf32>
    %27 = tpu.matmul %24, %26, %cst_18 {dimension_numbers = #tpu.dot_dimension_numbers<[1], [0], [0], [1], [0, 0, 1, 1], [], []>} : vector<128x3xbf16>, vector<3x2xbf16>, vector<128x2xf32> -> vector<128x2xf32>
    %28 = arith.addf %22, %27 : vector<128x2xf32>
    %29 = vector.extract_strided_slice %5 {offsets = [1, 1, 0], sizes = [8, 16, 3], strides = [1, 1, 1]} : vector<10x18x3xbf16> to vector<8x16x3xbf16>
    %30 = vector.shape_cast %29 : vector<8x16x3xbf16> to vector<128x3xbf16>
    %c1_19 = arith.constant 1 : index
    %c1_20 = arith.constant 1 : index
    %c0_21 = arith.constant 0 : index
    %c0_22 = arith.constant 0 : index
    %31 = vector.load %arg4[%c1_19, %c1_20, %c0_21, %c0_22] : memref<3x3x3x2xbf16, #tpu.memory_space<vmem>>, vector<1x1x3x2xbf16>
    %32 = vector.shape_cast %31 : vector<1x1x3x2xbf16> to vector<3x2xbf16>
    %cst_23 = arith.constant dense<0.000000e+00> : vector<128x2xf32>
    %33 = tpu.matmul %30, %32, %cst_23 {dimension_numbers = #tpu.dot_dimension_numbers<[1], [0], [0], [1], [0, 0, 1, 1], [], []>} : vector<128x3xbf16>, vector<3x2xbf16>, vector<128x2xf32> -> vector<128x2xf32>
    %34 = arith.addf %28, %33 : vector<128x2xf32>
    %35 = vector.extract_strided_slice %5 {offsets = [1, 2, 0], sizes = [8, 16, 3], strides = [1, 1, 1]} : vector<10x18x3xbf16> to vector<8x16x3xbf16>
    %36 = vector.shape_cast %35 : vector<8x16x3xbf16> to vector<128x3xbf16>
    %c1_24 = arith.constant 1 : index
    %c2_25 = arith.constant 2 : index
    %c0_26 = arith.constant 0 : index
    %c0_27 = arith.constant 0 : index
    %37 = vector.load %arg4[%c1_24, %c2_25, %c0_26, %c0_27] : memref<3x3x3x2xbf16, #tpu.memory_space<vmem>>, vector<1x1x3x2xbf16>
    %38 = vector.shape_cast %37 : vector<1x1x3x2xbf16> to vector<3x2xbf16>
    %cst_28 = arith.constant dense<0.000000e+00> : vector<128x2xf32>
    %39 = tpu.matmul %36, %38, %cst_28 {dimension_numbers = #tpu.dot_dimension_numbers<[1], [0], [0], [1], [0, 0, 1, 1], [], []>} : vector<128x3xbf16>, vector<3x2xbf16>, vector<128x2xf32> -> vector<128x2xf32>
    %40 = arith.addf %34, %39 : vector<128x2xf32>
    %41 = vector.extract_strided_slice %5 {offsets = [2, 0, 0], sizes = [8, 16, 3], strides = [1, 1, 1]} : vector<10x18x3xbf16> to vector<8x16x3xbf16>
    %42 = vector.shape_cast %41 : vector<8x16x3xbf16> to vector<128x3xbf16>
    %c2_29 = arith.constant 2 : index
    %c0_30 = arith.constant 0 : index
    %c0_31 = arith.constant 0 : index
    %c0_32 = arith.constant 0 : index
    %43 = vector.load %arg4[%c2_29, %c0_30, %c0_31, %c0_32] : memref<3x3x3x2xbf16, #tpu.memory_space<vmem>>, vector<1x1x3x2xbf16>
    %44 = vector.shape_cast %43 : vector<1x1x3x2xbf16> to vector<3x2xbf16>
    %cst_33 = arith.constant dense<0.000000e+00> : vector<128x2xf32>
    %45 = tpu.matmul %42, %44, %cst_33 {dimension_numbers = #tpu.dot_dimension_numbers<[1], [0], [0], [1], [0, 0, 1, 1], [], []>} : vector<128x3xbf16>, vector<3x2xbf16>, vector<128x2xf32> -> vector<128x2xf32>
    %46 = arith.addf %40, %45 : vector<128x2xf32>
    %47 = vector.extract_strided_slice %5 {offsets = [2, 1, 0], sizes = [8, 16, 3], strides = [1, 1, 1]} : vector<10x18x3xbf16> to vector<8x16x3xbf16>
    %48 = vector.shape_cast %47 : vector<8x16x3xbf16> to vector<128x3xbf16>
    %c2_34 = arith.constant 2 : index
    %c1_35 = arith.constant 1 : index
    %c0_36 = arith.constant 0 : index
    %c0_37 = arith.constant 0 : index
    %49 = vector.load %arg4[%c2_34, %c1_35, %c0_36, %c0_37] : memref<3x3x3x2xbf16, #tpu.memory_space<vmem>>, vector<1x1x3x2xbf16>
    %50 = vector.shape_cast %49 : vector<1x1x3x2xbf16> to vector<3x2xbf16>
    %cst_38 = arith.constant dense<0.000000e+00> : vector<128x2xf32>
    %51 = tpu.matmul %48, %50, %cst_38 {dimension_numbers = #tpu.dot_dimension_numbers<[1], [0], [0], [1], [0, 0, 1, 1], [], []>} : vector<128x3xbf16>, vector<3x2xbf16>, vector<128x2xf32> -> vector<128x2xf32>
    %52 = arith.addf %46, %51 : vector<128x2xf32>
    %53 = vector.extract_strided_slice %5 {offsets = [2, 2, 0], sizes = [8, 16, 3], strides = [1, 1, 1]} : vector<10x18x3xbf16> to vector<8x16x3xbf16>
    %54 = vector.shape_cast %53 : vector<8x16x3xbf16> to vector<128x3xbf16>
    %c2_39 = arith.constant 2 : index
    %c2_40 = arith.constant 2 : index
    %c0_41 = arith.constant 0 : index
    %c0_42 = arith.constant 0 : index
    %55 = vector.load %arg4[%c2_39, %c2_40, %c0_41, %c0_42] : memref<3x3x3x2xbf16, #tpu.memory_space<vmem>>, vector<1x1x3x2xbf16>
    %56 = vector.shape_cast %55 : vector<1x1x3x2xbf16> to vector<3x2xbf16>
    %cst_43 = arith.constant dense<0.000000e+00> : vector<128x2xf32>
    %57 = tpu.matmul %54, %56, %cst_43 {dimension_numbers = #tpu.dot_dimension_numbers<[1], [0], [0], [1], [0, 0, 1, 1], [], []>} : vector<128x3xbf16>, vector<3x2xbf16>, vector<128x2xf32> -> vector<128x2xf32>
    %58 = arith.addf %52, %57 : vector<128x2xf32>
    %c0_44 = arith.constant 0 : index
    %59 = arith.index_cast %1 : i32 to index
    %c0_45 = arith.constant 0 : index
    %c0_46 = arith.constant 0 : index
    %60 = vector.load %arg3[%c0_44, %59, %c0_45, %c0_46] : memref<1x18x18x3xf32, #tpu.memory_space<vmem>>, vector<1x10x18x3xf32>
    %61 = vector.shape_cast %60 : vector<1x10x18x3xf32> to vector<10x18x3xf32>
    %62 = arith.truncf %61 : vector<10x18x3xf32> to vector<10x18x3xbf16>
    %63 = vector.extract_strided_slice %62 {offsets = [0, 0, 0], sizes = [8, 16, 3], strides = [1, 1, 1]} : vector<10x18x3xbf16> to vector<8x16x3xbf16>
    %64 = vector.shape_cast %63 : vector<8x16x3xbf16> to vector<128x3xbf16>
    %c0_47 = arith.constant 0 : index
    %c0_48 = arith.constant 0 : index
    %c0_49 = arith.constant 0 : index
    %c0_50 = arith.constant 0 : index
    %65 = vector.load %arg5[%c0_47, %c0_48, %c0_49, %c0_50] : memref<3x3x3x2xbf16, #tpu.memory_space<vmem>>, vector<1x1x3x2xbf16>
    %66 = vector.shape_cast %65 : vector<1x1x3x2xbf16> to vector<3x2xbf16>
    %cst_51 = arith.constant dense<0.000000e+00> : vector<128x2xf32>
    %67 = tpu.matmul %64, %66, %cst_51 {dimension_numbers = #tpu.dot_dimension_numbers<[1], [0], [0], [1], [0, 0, 1, 1], [], []>} : vector<128x3xbf16>, vector<3x2xbf16>, vector<128x2xf32> -> vector<128x2xf32>
    %68 = vector.extract_strided_slice %62 {offsets = [0, 1, 0], sizes = [8, 16, 3], strides = [1, 1, 1]} : vector<10x18x3xbf16> to vector<8x16x3xbf16>
    %69 = vector.shape_cast %68 : vector<8x16x3xbf16> to vector<128x3xbf16>
    %c0_52 = arith.constant 0 : index
    %c1_53 = arith.constant 1 : index
    %c0_54 = arith.constant 0 : index
    %c0_55 = arith.constant 0 : index
    %70 = vector.load %arg5[%c0_52, %c1_53, %c0_54, %c0_55] : memref<3x3x3x2xbf16, #tpu.memory_space<vmem>>, vector<1x1x3x2xbf16>
    %71 = vector.shape_cast %70 : vector<1x1x3x2xbf16> to vector<3x2xbf16>
    %cst_56 = arith.constant dense<0.000000e+00> : vector<128x2xf32>
    %72 = tpu.matmul %69, %71, %cst_56 {dimension_numbers = #tpu.dot_dimension_numbers<[1], [0], [0], [1], [0, 0, 1, 1], [], []>} : vector<128x3xbf16>, vector<3x2xbf16>, vector<128x2xf32> -> vector<128x2xf32>
    %73 = arith.addf %67, %72 : vector<128x2xf32>
    %74 = vector.extract_strided_slice %62 {offsets = [0, 2, 0], sizes = [8, 16, 3], strides = [1, 1, 1]} : vector<10x18x3xbf16> to vector<8x16x3xbf16>
    %75 = vector.shape_cast %74 : vector<8x16x3xbf16> to vector<128x3xbf16>
    %c0_57 = arith.constant 0 : index
    %c2_58 = arith.constant 2 : index
    %c0_59 = arith.constant 0 : index
    %c0_60 = arith.constant 0 : index
    %76 = vector.load %arg5[%c0_57, %c2_58, %c0_59, %c0_60] : memref<3x3x3x2xbf16, #tpu.memory_space<vmem>>, vector<1x1x3x2xbf16>
    %77 = vector.shape_cast %76 : vector<1x1x3x2xbf16> to vector<3x2xbf16>
    %cst_61 = arith.constant dense<0.000000e+00> : vector<128x2xf32>
    %78 = tpu.matmul %75, %77, %cst_61 {dimension_numbers = #tpu.dot_dimension_numbers<[1], [0], [0], [1], [0, 0, 1, 1], [], []>} : vector<128x3xbf16>, vector<3x2xbf16>, vector<128x2xf32> -> vector<128x2xf32>
    %79 = arith.addf %73, %78 : vector<128x2xf32>
    %80 = vector.extract_strided_slice %62 {offsets = [1, 0, 0], sizes = [8, 16, 3], strides = [1, 1, 1]} : vector<10x18x3xbf16> to vector<8x16x3xbf16>
    %81 = vector.shape_cast %80 : vector<8x16x3xbf16> to vector<128x3xbf16>
    %c1_62 = arith.constant 1 : index
    %c0_63 = arith.constant 0 : index
    %c0_64 = arith.constant 0 : index
    %c0_65 = arith.constant 0 : index
    %82 = vector.load %arg5[%c1_62, %c0_63, %c0_64, %c0_65] : memref<3x3x3x2xbf16, #tpu.memory_space<vmem>>, vector<1x1x3x2xbf16>
    %83 = vector.shape_cast %82 : vector<1x1x3x2xbf16> to vector<3x2xbf16>
    %cst_66 = arith.constant dense<0.000000e+00> : vector<128x2xf32>
    %84 = tpu.matmul %81, %83, %cst_66 {dimension_numbers = #tpu.dot_dimension_numbers<[1], [0], [0], [1], [0, 0, 1, 1], [], []>} : vector<128x3xbf16>, vector<3x2xbf16>, vector<128x2xf32> -> vector<128x2xf32>
    %85 = arith.addf %79, %84 : vector<128x2xf32>
    %86 = vector.extract_strided_slice %62 {offsets = [1, 1, 0], sizes = [8, 16, 3], strides = [1, 1, 1]} : vector<10x18x3xbf16> to vector<8x16x3xbf16>
    %87 = vector.shape_cast %86 : vector<8x16x3xbf16> to vector<128x3xbf16>
    %c1_67 = arith.constant 1 : index
    %c1_68 = arith.constant 1 : index
    %c0_69 = arith.constant 0 : index
    %c0_70 = arith.constant 0 : index
    %88 = vector.load %arg5[%c1_67, %c1_68, %c0_69, %c0_70] : memref<3x3x3x2xbf16, #tpu.memory_space<vmem>>, vector<1x1x3x2xbf16>
    %89 = vector.shape_cast %88 : vector<1x1x3x2xbf16> to vector<3x2xbf16>
    %cst_71 = arith.constant dense<0.000000e+00> : vector<128x2xf32>
    %90 = tpu.matmul %87, %89, %cst_71 {dimension_numbers = #tpu.dot_dimension_numbers<[1], [0], [0], [1], [0, 0, 1, 1], [], []>} : vector<128x3xbf16>, vector<3x2xbf16>, vector<128x2xf32> -> vector<128x2xf32>
    %91 = arith.addf %85, %90 : vector<128x2xf32>
    %92 = vector.extract_strided_slice %62 {offsets = [1, 2, 0], sizes = [8, 16, 3], strides = [1, 1, 1]} : vector<10x18x3xbf16> to vector<8x16x3xbf16>
    %93 = vector.shape_cast %92 : vector<8x16x3xbf16> to vector<128x3xbf16>
    %c1_72 = arith.constant 1 : index
    %c2_73 = arith.constant 2 : index
    %c0_74 = arith.constant 0 : index
    %c0_75 = arith.constant 0 : index
    %94 = vector.load %arg5[%c1_72, %c2_73, %c0_74, %c0_75] : memref<3x3x3x2xbf16, #tpu.memory_space<vmem>>, vector<1x1x3x2xbf16>
    %95 = vector.shape_cast %94 : vector<1x1x3x2xbf16> to vector<3x2xbf16>
    %cst_76 = arith.constant dense<0.000000e+00> : vector<128x2xf32>
    %96 = tpu.matmul %93, %95, %cst_76 {dimension_numbers = #tpu.dot_dimension_numbers<[1], [0], [0], [1], [0, 0, 1, 1], [], []>} : vector<128x3xbf16>, vector<3x2xbf16>, vector<128x2xf32> -> vector<128x2xf32>
    %97 = arith.addf %91, %96 : vector<128x2xf32>
    %98 = vector.extract_strided_slice %62 {offsets = [2, 0, 0], sizes = [8, 16, 3], strides = [1, 1, 1]} : vector<10x18x3xbf16> to vector<8x16x3xbf16>
    %99 = vector.shape_cast %98 : vector<8x16x3xbf16> to vector<128x3xbf16>
    %c2_77 = arith.constant 2 : index
    %c0_78 = arith.constant 0 : index
    %c0_79 = arith.constant 0 : index
    %c0_80 = arith.constant 0 : index
    %100 = vector.load %arg5[%c2_77, %c0_78, %c0_79, %c0_80] : memref<3x3x3x2xbf16, #tpu.memory_space<vmem>>, vector<1x1x3x2xbf16>
    %101 = vector.shape_cast %100 : vector<1x1x3x2xbf16> to vector<3x2xbf16>
    %cst_81 = arith.constant dense<0.000000e+00> : vector<128x2xf32>
    %102 = tpu.matmul %99, %101, %cst_81 {dimension_numbers = #tpu.dot_dimension_numbers<[1], [0], [0], [1], [0, 0, 1, 1], [], []>} : vector<128x3xbf16>, vector<3x2xbf16>, vector<128x2xf32> -> vector<128x2xf32>
    %103 = arith.addf %97, %102 : vector<128x2xf32>
    %104 = vector.extract_strided_slice %62 {offsets = [2, 1, 0], sizes = [8, 16, 3], strides = [1, 1, 1]} : vector<10x18x3xbf16> to vector<8x16x3xbf16>
    %105 = vector.shape_cast %104 : vector<8x16x3xbf16> to vector<128x3xbf16>
    %c2_82 = arith.constant 2 : index
    %c1_83 = arith.constant 1 : index
    %c0_84 = arith.constant 0 : index
    %c0_85 = arith.constant 0 : index
    %106 = vector.load %arg5[%c2_82, %c1_83, %c0_84, %c0_85] : memref<3x3x3x2xbf16, #tpu.memory_space<vmem>>, vector<1x1x3x2xbf16>
    %107 = vector.shape_cast %106 : vector<1x1x3x2xbf16> to vector<3x2xbf16>
    %cst_86 = arith.constant dense<0.000000e+00> : vector<128x2xf32>
    %108 = tpu.matmul %105, %107, %cst_86 {dimension_numbers = #tpu.dot_dimension_numbers<[1], [0], [0], [1], [0, 0, 1, 1], [], []>} : vector<128x3xbf16>, vector<3x2xbf16>, vector<128x2xf32> -> vector<128x2xf32>
    %109 = arith.addf %103, %108 : vector<128x2xf32>
    %110 = vector.extract_strided_slice %62 {offsets = [2, 2, 0], sizes = [8, 16, 3], strides = [1, 1, 1]} : vector<10x18x3xbf16> to vector<8x16x3xbf16>
    %111 = vector.shape_cast %110 : vector<8x16x3xbf16> to vector<128x3xbf16>
    %c2_87 = arith.constant 2 : index
    %c2_88 = arith.constant 2 : index
    %c0_89 = arith.constant 0 : index
    %c0_90 = arith.constant 0 : index
    %112 = vector.load %arg5[%c2_87, %c2_88, %c0_89, %c0_90] : memref<3x3x3x2xbf16, #tpu.memory_space<vmem>>, vector<1x1x3x2xbf16>
    %113 = vector.shape_cast %112 : vector<1x1x3x2xbf16> to vector<3x2xbf16>
    %cst_91 = arith.constant dense<0.000000e+00> : vector<128x2xf32>
    %114 = tpu.matmul %111, %113, %cst_91 {dimension_numbers = #tpu.dot_dimension_numbers<[1], [0], [0], [1], [0, 0, 1, 1], [], []>} : vector<128x3xbf16>, vector<3x2xbf16>, vector<128x2xf32> -> vector<128x2xf32>
    %115 = arith.addf %109, %114 : vector<128x2xf32>
    %116 = arith.addf %58, %115 : vector<128x2xf32>
    %c0_92 = arith.constant 0 : index
    %c0_93 = arith.constant 0 : index
    %117 = vector.load %arg6[%c0_92, %c0_93] : memref<1x2xf32, #tpu.memory_space<vmem>>, vector<1x2xf32>
    %118 = vector.broadcast %117 : vector<1x2xf32> to vector<128x2xf32>
    %119 = arith.addf %116, %118 : vector<128x2xf32>
    %120 = vector.shape_cast %119 : vector<128x2xf32> to vector<8x16x2xf32>
    %c0_94 = arith.constant 0 : index
    %c0_95 = arith.constant 0 : index
    %c0_96 = arith.constant 0 : index
    %c0_97 = arith.constant 0 : index
    %121 = vector.load %arg7[%c0_94, %c0_95, %c0_96, %c0_97] : memref<1x8x16x2xf32, #tpu.memory_space<vmem>>, vector<1x8x16x2xf32>
    %122 = vector.shape_cast %121 : vector<1x8x16x2xf32> to vector<8x16x2xf32>
    %123 = vector.shape_cast %120 : vector<8x16x2xf32> to vector<1x8x16x2xf32>
    tpu.vector_store %arg7[%c0_94, %c0_95, %c0_96, %c0_97], %123 {strides = array<i32>} : memref<1x8x16x2xf32, #tpu.memory_space<vmem>>, vector<1x8x16x2xf32>,
    return
  }
  func.func @transform_0(%arg0: i32, %arg1: i32) -> (i32, i32, i32, i32) {
    %c0_i32 = arith.constant 0 : i32
    %c0_i32_0 = arith.constant 0 : i32
    %c0_i32_1 = arith.constant 0 : i32
    %c0_i32_2 = arith.constant 0 : i32
    return %arg0, %c0_i32, %c0_i32_0, %c0_i32_1 : i32, i32, i32, i32
  }
  func.func @transform_1(%arg0: i32, %arg1: i32) -> (i32, i32, i32, i32) {
    %c0_i32 = arith.constant 0 : i32
    %c0_i32_0 = arith.constant 0 : i32
    %c0_i32_1 = arith.constant 0 : i32
    %c0_i32_2 = arith.constant 0 : i32
    return %arg0, %c0_i32, %c0_i32_0, %c0_i32_1 : i32, i32, i32, i32
  }
  func.func @transform_2(%arg0: i32, %arg1: i32) -> (i32, i32, i32, i32) {
    %c0_i32 = arith.constant 0 : i32
    %c0_i32_0 = arith.constant 0 : i32
    %c0_i32_1 = arith.constant 0 : i32
    %c0_i32_2 = arith.constant 0 : i32
    %c0_i32_3 = arith.constant 0 : i32
    return %c0_i32, %c0_i32_0, %c0_i32_1, %c0_i32_2 : i32, i32, i32, i32
  }
  func.func @transform_3(%arg0: i32, %arg1: i32) -> (i32, i32, i32, i32) {
    %c0_i32 = arith.constant 0 : i32
    %c0_i32_0 = arith.constant 0 : i32
    %c0_i32_1 = arith.constant 0 : i32
    %c0_i32_2 = arith.constant 0 : i32
    %c0_i32_3 = arith.constant 0 : i32
    return %c0_i32, %c0_i32_0, %c0_i32_1, %c0_i32_2 : i32, i32, i32, i32
  }
  func.func @transform_4(%arg0: i32, %arg1: i32) -> (i32, i32) {
    %c0_i32 = arith.constant 0 : i32
    %c0_i32_0 = arith.constant 0 : i32
    %c0_i32_1 = arith.constant 0 : i32
    return %c0_i32, %c0_i32_0 : i32, i32
  }
  func.func @transform_5(%arg0: i32, %arg1: i32) -> (i32, i32, i32, i32) {
    %c0_i32 = arith.constant 0 : i32
    %c0_i32_0 = arith.constant 0 : i32
    %c0_i32_1 = arith.constant 0 : i32
    return %arg0, %arg1, %c0_i32, %c0_i32_0 : i32, i32, i32, i32
  }
}

</mosaic_0001>

<llo_original>
// kernel: tpu_custom_call.1
$region0: #{tpu_custom_call.1}
  #allocation0 [shape = 'u32[]', space=smem, size = 0x4, offset = 0x4, fixed_abs, tag = 'smem constant byte address 0x4 - core index']
  #allocation1 [shape = 'u32[72,128]{1,0:T(1,128)}', space=vmem, size = 0x9000, scoped, tag = 'internal scratch']
  %s0 = inlined_call_operand.vmem [shape: f32[8,8,3], index: 0, kind: input, shape index: {}]
  %s1 = inlined_call_operand.vmem [shape: bf16[27,4], index: 1, kind: input, shape index: {}]
  %s2 = inlined_call_operand.vmem [shape: f32[36,4], index: 2, kind: output, shape index: {}]
  %s3 = sld [smem:[#allocation0]]
  $region18: #{tpu_custom_call.1} parent=0
    _
  %s5 = ssub.s32 1, %s3
  %s6 = scalar_select 0, %s5, %s3
  // Predicated region
  $region2: #{tpu_custom_call.1} parent=0 // pred_check
    _
  $region3: #{tpu_custom_call.1} parent=0 // pred_check_branch
    %8 = sbr.rel (0) target = $region5
  $region4: #{tpu_custom_call.1} parent=0 // pred_region
    _
  $region5: #{tpu_custom_call.1} parent=0 // pred_fallthru
    _
  // Predicated region
  $region6: #{tpu_custom_call.1} parent=0 // pred_check
    _
  $region7: #{tpu_custom_call.1} parent=0 // pred_check_branch
    %10 = sbr.rel (0) target = $region9
  $region8: #{tpu_custom_call.1} parent=0 // pred_region
    _
  $region9: #{tpu_custom_call.1} parent=0 // pred_fallthru
    _
  %v12 = vld [vmem:[%s0] sm:$0xff]
  %v13 = vld [vmem:[%s0 + $0x8] sm:$0xff]
  %v14 = vld [vmem:[%s0 + $0x10] sm:$0xff]
  %v15 = vld [vmem:[%s0 + $0x18] sm:$0xff]
  %v16 = vld [vmem:[%s0 + $0x20] sm:$0xff]
  %v17 = vld [vmem:[%s0 + $0x28] sm:$0xff]
  %v18 = vld [vmem:[%s0 + $0x30] sm:$0xff]
  %v19 = vld [vmem:[%s0 + $0x38] sm:$0xff]
  %v20 = vpack.c.bf16 %v12, %v12
  %v21 = vpack.c.bf16 %v13, %v13
  %v22 = vpack.c.bf16 %v14, %v14
  %v23 = vpack.c.bf16 %v15, %v15
  %v24 = vpack.c.bf16 %v16, %v16
  %v25 = vpack.c.bf16 %v17, %v17
  %v26 = vpack.c.bf16 %v18, %v18
  %v27 = vpack.c.bf16 %v19, %v19
  %v34 = vrot.slane %v20, 3
  %v35 = vrot.slane %v21, 3
  %v36 = vrot.slane %v22, 3
  %v37 = vrot.slane %v23, 3
  %v38 = vrot.slane %v24, 3
  %v39 = vrot.slane %v25, 3
  %vm40 = vcmask 1040384
  %v43 = vsel %vm40, %v20, %v34
  %vm44 = vcmask 1041409
  %v45 = vsel %vm44, %v20, %v34
  %v47 = vrot.slane %v45, 1
  %vm48 = vcmask 1042434
  %v49 = vsel %vm48, %v20, %v34
  %v51 = vrot.slane %v49, 2
  %v54 = vsel %vm40, %v21, %v35
  %v55 = vsel %vm44, %v21, %v35
  %v57 = vrot.slane %v55, 1
  %v58 = vsel %vm48, %v21, %v35
  %v60 = vrot.slane %v58, 2
  %v63 = vsel %vm40, %v22, %v36
  %v64 = vsel %vm44, %v22, %v36
  %v66 = vrot.slane %v64, 1
  %v67 = vsel %vm48, %v22, %v36
  %v69 = vrot.slane %v67, 2
  %v72 = vsel %vm40, %v23, %v37
  %v73 = vsel %vm44, %v23, %v37
  %v75 = vrot.slane %v73, 1
  %v76 = vsel %vm48, %v23, %v37
  %v78 = vrot.slane %v76, 2
  %v81 = vsel %vm40, %v24, %v38
  %v82 = vsel %vm44, %v24, %v38
  %v84 = vrot.slane %v82, 1
  %v85 = vsel %vm48, %v24, %v38
  %v87 = vrot.slane %v85, 2
  %v90 = vsel %vm40, %v25, %v39
  %v91 = vsel %vm44, %v25, %v39
  %v93 = vrot.slane %v91, 1
  %v94 = vsel %vm48, %v25, %v39
  %v96 = vrot.slane %v94, 2
  %vm97 = vcmask 1043459
  %v98 = vsel %vm97, %v20, %v34
  %v100 = vrot.slane %v98, 3
  %v101 = vsel %vm97, %v21, %v35
  %v103 = vrot.slane %v101, 3
  %v104 = vsel %vm97, %v22, %v36
  %v106 = vrot.slane %v104, 3
  %v107 = vsel %vm97, %v23, %v37
  %v109 = vrot.slane %v107, 3
  %v110 = vsel %vm97, %v24, %v38
  %v112 = vrot.slane %v110, 3
  %v113 = vsel %vm97, %v25, %v39
  %v115 = vrot.slane %v113, 3
  %vm116 = vsmask.f32 256
  %vm117 = vsmask.f32 1284
  %vm118 = vmor %vm116, %vm117
  %vm119 = vsmask.f32 2312
  %vm120 = vmor %vm118, %vm119
  %vm121 = vsmask.f32 3340
  %vm122 = vmor %vm120, %vm121
  %vm123 = vsmask.f32 4368
  %vm124 = vmor %vm122, %vm123
  %vm125 = vsmask.f32 5396
  %vm126 = vmor %vm124, %vm125
  %vm127 = vsmask.f32 6424
  %vm128 = vmor %vm126, %vm127
  %vm129 = vsmask.f32 7452
  %vm130 = vmor %vm128, %vm129
  %v131 = vshrl.u32 %v43, 16
  %v133 = vrot.slane %v131, 7
  %v134 = vrot.slane %v133, 1
  %v136 = vshll.u32 %v47, 16
  %v138 = vsel %vm130, %v134, %v136
  %v139 = vshrl.u32 %v47, 16
  %v141 = vrot.slane %v139, 7
  %v142 = vrot.slane %v141, 1
  %v144 = vshll.u32 %v51, 16
  %v146 = vsel %vm130, %v142, %v144
  %v147 = vshrl.u32 %v51, 16
  %v149 = vrot.slane %v147, 7
  %v150 = vrot.slane %v149, 1
  %v152 = vshll.u32 %v100, 16
  %v154 = vsel %vm130, %v150, %v152
  %v155 = vshrl.u32 %v54, 16
  %v157 = vrot.slane %v155, 7
  %v158 = vrot.slane %v157, 1
  %v160 = vshll.u32 %v57, 16
  %v162 = vsel %vm130, %v158, %v160
  %v163 = vshrl.u32 %v57, 16
  %v165 = vrot.slane %v163, 7
  %v166 = vrot.slane %v165, 1
  %v168 = vshll.u32 %v60, 16
  %v170 = vsel %vm130, %v166, %v168
  %v171 = vshrl.u32 %v60, 16
  %v173 = vrot.slane %v171, 7
  %v174 = vrot.slane %v173, 1
  %v176 = vshll.u32 %v103, 16
  %v178 = vsel %vm130, %v174, %v176
  %v179 = vshrl.u32 %v63, 16
  %v181 = vrot.slane %v179, 7
  %v182 = vrot.slane %v181, 1
  %v184 = vshll.u32 %v66, 16
  %v186 = vsel %vm130, %v182, %v184
  %v187 = vshrl.u32 %v66, 16
  %v189 = vrot.slane %v187, 7
  %v190 = vrot.slane %v189, 1
  %v192 = vshll.u32 %v69, 16
  %v194 = vsel %vm130, %v190, %v192
  %v195 = vshrl.u32 %v69, 16
  %v197 = vrot.slane %v195, 7
  %v198 = vrot.slane %v197, 1
  %v200 = vshll.u32 %v106, 16
  %v202 = vsel %vm130, %v198, %v200
  %v203 = vshrl.u32 %v72, 16
  %v205 = vrot.slane %v203, 7
  %v206 = vrot.slane %v205, 1
  %v208 = vshll.u32 %v75, 16
  %v210 = vsel %vm130, %v206, %v208
  %v211 = vshrl.u32 %v75, 16
  %v213 = vrot.slane %v211, 7
  %v214 = vrot.slane %v213, 1
  %v216 = vshll.u32 %v78, 16
  %v218 = vsel %vm130, %v214, %v216
  %v219 = vshrl.u32 %v78, 16
  %v221 = vrot.slane %v219, 7
  %v222 = vrot.slane %v221, 1
  %v224 = vshll.u32 %v109, 16
  %v226 = vsel %vm130, %v222, %v224
  %v227 = vshrl.u32 %v81, 16
  %v229 = vrot.slane %v227, 7
  %v230 = vrot.slane %v229, 1
  %v232 = vshll.u32 %v84, 16
  %v234 = vsel %vm130, %v230, %v232
  %v235 = vshrl.u32 %v84, 16
  %v237 = vrot.slane %v235, 7
  %v238 = vrot.slane %v237, 1
  %v240 = vshll.u32 %v87, 16
  %v242 = vsel %vm130, %v238, %v240
  %v243 = vshrl.u32 %v87, 16
  %v245 = vrot.slane %v243, 7
  %v246 = vrot.slane %v245, 1
  %v248 = vshll.u32 %v112, 16
  %v250 = vsel %vm130, %v246, %v248
  %v251 = vshrl.u32 %v90, 16
  %v253 = vrot.slane %v251, 7
  %v254 = vrot.slane %v253, 1
  %v256 = vshll.u32 %v93, 16
  %v258 = vsel %vm130, %v254, %v256
  %v259 = vshrl.u32 %v93, 16
  %v261 = vrot.slane %v259, 7
  %v262 = vrot.slane %v261, 1
  %v264 = vshll.u32 %v96, 16
  %v266 = vsel %vm130, %v262, %v264
  %v267 = vshrl.u32 %v96, 16
  %v269 = vrot.slane %v267, 7
  %v270 = vrot.slane %v269, 1
  %v272 = vshll.u32 %v115, 16
  %v274 = vsel %vm130, %v270, %v272
  %275 = vst [vmem:[#allocation1] sm:$0xff] %v20
  %s276 = scalar_lea.vmem [#allocation1], 1
  %v277 = vld [vmem:[%s276] ss:$4 sm:$0xff]
  %s278 = scalar_lea.vmem [#allocation1], 2
  %v279 = vld [vmem:[%s278] ss:$4 sm:$0xff]
  %s280 = scalar_lea.vmem [#allocation1], 3
  %v281 = vld [vmem:[%s280] ss:$4 sm:$0xff]
  %282 = vst [vmem:[#allocation1 + $0x20] sm:$0xff] %v21
  %s283 = scalar_lea.vmem [#allocation1], 33
  %v284 = vld [vmem:[%s283] ss:$4 sm:$0xff]
  %s285 = scalar_lea.vmem [#allocation1], 34
  %v286 = vld [vmem:[%s285] ss:$4 sm:$0xff]
  %s287 = scalar_lea.vmem [#allocation1], 35
  %v288 = vld [vmem:[%s287] ss:$4 sm:$0xff]
  %289 = vst [vmem:[#allocation1] sm:$0xff] %v22
  %v290 = vld [vmem:[%s276] ss:$4 sm:$0xff]
  %v291 = vld [vmem:[%s278] ss:$4 sm:$0xff]
  %v292 = vld [vmem:[%s280] ss:$4 sm:$0xff]
  %293 = vst [vmem:[#allocation1 + $0x20] sm:$0xff] %v23
  %v294 = vld [vmem:[%s283] ss:$4 sm:$0xff]
  %v295 = vld [vmem:[%s285] ss:$4 sm:$0xff]
  %v296 = vld [vmem:[%s287] ss:$4 sm:$0xff]
  %297 = vst [vmem:[#allocation1] sm:$0xff] %v24
  %v298 = vld [vmem:[%s276] ss:$4 sm:$0xff]
  %v299 = vld [vmem:[%s278] ss:$4 sm:$0xff]
  %v300 = vld [vmem:[%s280] ss:$4 sm:$0xff]
  %301 = vst [vmem:[#allocation1 + $0x20] sm:$0xff] %v25
  %v302 = vld [vmem:[%s283] ss:$4 sm:$0xff]
  %v303 = vld [vmem:[%s285] ss:$4 sm:$0xff]
  %v304 = vld [vmem:[%s287] ss:$4 sm:$0xff]
  %v306 = vrot.slane %v26, 3
  %v309 = vsel %vm40, %v26, %v306
  %v310 = vsel %vm44, %v26, %v306
  %v312 = vrot.slane %v310, 1
  %v313 = vsel %vm48, %v26, %v306
  %v315 = vrot.slane %v313, 2
  %v316 = vsel %vm97, %v26, %v306
  %v318 = vrot.slane %v316, 3
  %v319 = vshrl.u32 %v309, 16
  %v321 = vrot.slane %v319, 7
  %v322 = vrot.slane %v321, 1
  %v324 = vshll.u32 %v312, 16
  %v326 = vsel %vm130, %v322, %v324
  %v327 = vshrl.u32 %v312, 16
  %v329 = vrot.slane %v327, 7
  %v330 = vrot.slane %v329, 1
  %v332 = vshll.u32 %v315, 16
  %v334 = vsel %vm130, %v330, %v332
  %v335 = vshrl.u32 %v315, 16
  %v337 = vrot.slane %v335, 7
  %v338 = vrot.slane %v337, 1
  %v340 = vshll.u32 %v318, 16
  %v342 = vsel %vm130, %v338, %v340
  %343 = vst [vmem:[#allocation1] sm:$0xff] %v21
  %s344 = scalar_lea.vmem [#allocation1], 1
  %v345 = vld [vmem:[%s344] ss:$4 sm:$0xff]
  %s346 = scalar_lea.vmem [#allocation1], 2
  %v347 = vld [vmem:[%s346] ss:$4 sm:$0xff]
  %s348 = scalar_lea.vmem [#allocation1], 3
  %v349 = vld [vmem:[%s348] ss:$4 sm:$0xff]
  %350 = vst [vmem:[#allocation1 + $0x20] sm:$0xff] %v22
  %s351 = scalar_lea.vmem [#allocation1], 33
  %v352 = vld [vmem:[%s351] ss:$4 sm:$0xff]
  %s353 = scalar_lea.vmem [#allocation1], 34
  %v354 = vld [vmem:[%s353] ss:$4 sm:$0xff]
  %s355 = scalar_lea.vmem [#allocation1], 35
  %v356 = vld [vmem:[%s355] ss:$4 sm:$0xff]
  %357 = vst [vmem:[#allocation1] sm:$0xff] %v23
  %v358 = vld [vmem:[%s344] ss:$4 sm:$0xff]
  %v359 = vld [vmem:[%s346] ss:$4 sm:$0xff]
  %v360 = vld [vmem:[%s348] ss:$4 sm:$0xff]
  %361 = vst [vmem:[#allocation1 + $0x20] sm:$0xff] %v24
  %v362 = vld [vmem:[%s351] ss:$4 sm:$0xff]
  %v363 = vld [vmem:[%s353] ss:$4 sm:$0xff]
  %v364 = vld [vmem:[%s355] ss:$4 sm:$0xff]
  %365 = vst [vmem:[#allocation1] sm:$0xff] %v25
  %v366 = vld [vmem:[%s344] ss:$4 sm:$0xff]
  %v367 = vld [vmem:[%s346] ss:$4 sm:$0xff]
  %v368 = vld [vmem:[%s348] ss:$4 sm:$0xff]
  %369 = vst [vmem:[#allocation1 + $0x20] sm:$0xff] %v26
  %v370 = vld [vmem:[%s351] ss:$4 sm:$0xff]
  %v371 = vld [vmem:[%s353] ss:$4 sm:$0xff]
  %v372 = vld [vmem:[%s355] ss:$4 sm:$0xff]
  %v374 = vrot.slane %v27, 3
  %v377 = vsel %vm40, %v27, %v374
  %v378 = vsel %vm44, %v27, %v374
  %v380 = vrot.slane %v378, 1
  %v381 = vsel %vm48, %v27, %v374
  %v383 = vrot.slane %v381, 2
  %v384 = vsel %vm97, %v27, %v374
  %v386 = vrot.slane %v384, 3
  %v387 = vshrl.u32 %v377, 16
  %v389 = vrot.slane %v387, 7
  %v390 = vrot.slane %v389, 1
  %v392 = vshll.u32 %v380, 16
  %v394 = vsel %vm130, %v390, %v392
  %v395 = vshrl.u32 %v380, 16
  %v397 = vrot.slane %v395, 7
  %v398 = vrot.slane %v397, 1
  %v400 = vshll.u32 %v383, 16
  %v402 = vsel %vm130, %v398, %v400
  %v403 = vshrl.u32 %v383, 16
  %v405 = vrot.slane %v403, 7
  %v406 = vrot.slane %v405, 1
  %v408 = vshll.u32 %v386, 16
  %v410 = vsel %vm130, %v406, %v408
  %411 = vst [vmem:[#allocation1] sm:$0xff] %v22
  %s412 = scalar_lea.vmem [#allocation1], 1
  %v413 = vld [vmem:[%s412] ss:$4 sm:$0xff]
  %s414 = scalar_lea.vmem [#allocation1], 2
  %v415 = vld [vmem:[%s414] ss:$4 sm:$0xff]
  %s416 = scalar_lea.vmem [#allocation1], 3
  %v417 = vld [vmem:[%s416] ss:$4 sm:$0xff]
  %418 = vst [vmem:[#allocation1 + $0x20] sm:$0xff] %v23
  %s419 = scalar_lea.vmem [#allocation1], 33
  %v420 = vld [vmem:[%s419] ss:$4 sm:$0xff]
  %s421 = scalar_lea.vmem [#allocation1], 34
  %v422 = vld [vmem:[%s421] ss:$4 sm:$0xff]
  %s423 = scalar_lea.vmem [#allocation1], 35
  %v424 = vld [vmem:[%s423] ss:$4 sm:$0xff]
  %425 = vst [vmem:[#allocation1] sm:$0xff] %v24
  %v426 = vld [vmem:[%s412] ss:$4 sm:$0xff]
  %v427 = vld [vmem:[%s414] ss:$4 sm:$0xff]
  %v428 = vld [vmem:[%s416] ss:$4 sm:$0xff]
  %429 = vst [vmem:[#allocation1 + $0x20] sm:$0xff] %v25
  %v430 = vld [vmem:[%s419] ss:$4 sm:$0xff]
  %v431 = vld [vmem:[%s421] ss:$4 sm:$0xff]
  %v432 = vld [vmem:[%s423] ss:$4 sm:$0xff]
  %433 = vst [vmem:[#allocation1] sm:$0xff] %v26
  %v434 = vld [vmem:[%s412] ss:$4 sm:$0xff]
  %v435 = vld [vmem:[%s414] ss:$4 sm:$0xff]
  %v436 = vld [vmem:[%s416] ss:$4 sm:$0xff]
  %437 = vst [vmem:[#allocation1 + $0x20] sm:$0xff] %v27
  %v438 = vld [vmem:[%s419] ss:$4 sm:$0xff]
  %v439 = vld [vmem:[%s421] ss:$4 sm:$0xff]
  %v440 = vld [vmem:[%s423] ss:$4 sm:$0xff]
  %441 = vst [vmem:[#allocation1] ss:$9 sm:$0xff] %v43
  %s442 = scalar_lea.vmem [#allocation1], 1
  %443 = vst [vmem:[%s442] ss:$9 sm:$0xff] %v47
  %s444 = scalar_lea.vmem [#allocation1], 2
  %445 = vst [vmem:[%s444] ss:$9 sm:$0xff] %v51
  %s446 = scalar_lea.vmem [#allocation1], 3
  %447 = vst [vmem:[%s446] ss:$9 sm:$0xff] %v54
  %s448 = scalar_lea.vmem [#allocation1], 4
  %449 = vst [vmem:[%s448] ss:$9 sm:$0xff] %v57
  %s450 = scalar_lea.vmem [#allocation1], 5
  %451 = vst [vmem:[%s450] ss:$9 sm:$0xff] %v60
  %s452 = scalar_lea.vmem [#allocation1], 6
  %453 = vst [vmem:[%s452] ss:$9 sm:$0xff] %v63
  %s454 = scalar_lea.vmem [#allocation1], 7
  %455 = vst [vmem:[%s454] ss:$9 sm:$0xff] %v66
  %v456 = vld [vmem:[#allocation1] sm:$0xff]
  %457 = vst [vmem:[#allocation1] ss:$9 sm:$0xff] %v69
  %458 = vst [vmem:[%s442] ss:$9 sm:$0xff] %v72
  %459 = vst [vmem:[%s444] ss:$9 sm:$0xff] %v75
  %460 = vst [vmem:[%s446] ss:$9 sm:$0xff] %v78
  %461 = vst [vmem:[%s448] ss:$9 sm:$0xff] %v81
  %462 = vst [vmem:[%s450] ss:$9 sm:$0xff] %v84
  %463 = vst [vmem:[%s452] ss:$9 sm:$0xff] %v87
  %464 = vst [vmem:[%s454] ss:$9 sm:$0xff] %v90
  %v465 = vld [vmem:[#allocation1] sm:$0xff]
  %466 = vst [vmem:[#allocation1] ss:$9 sm:$0xff] %v93
  %467 = vst [vmem:[%s442] ss:$9 sm:$0xff] %v96
  %v468 = vld [vmem:[#allocation1] sm:$0xff]
  %470 = vst [vmem:[#allocation1] ss:$9 sm:$0xff] %v138
  %s472 = scalar_lea.vmem [#allocation1], 1
  %473 = vst [vmem:[%s472] ss:$9 sm:$0xff] %v146
  %s475 = scalar_lea.vmem [#allocation1], 2
  %476 = vst [vmem:[%s475] ss:$9 sm:$0xff] %v154
  %s478 = scalar_lea.vmem [#allocation1], 3
  %479 = vst [vmem:[%s478] ss:$9 sm:$0xff] %v162
  %s481 = scalar_lea.vmem [#allocation1], 4
  %482 = vst [vmem:[%s481] ss:$9 sm:$0xff] %v170
  %s484 = scalar_lea.vmem [#allocation1], 5
  %485 = vst [vmem:[%s484] ss:$9 sm:$0xff] %v178
  %s487 = scalar_lea.vmem [#allocation1], 6
  %488 = vst [vmem:[%s487] ss:$9 sm:$0xff] %v186
  %s490 = scalar_lea.vmem [#allocation1], 7
  %491 = vst [vmem:[%s490] ss:$9 sm:$0xff] %v194
  %v492 = vld [vmem:[#allocation1] sm:$0xff]
  %495 = vst [vmem:[#allocation1] ss:$9 sm:$0xff] %v202
  %497 = vst [vmem:[%s472] ss:$9 sm:$0xff] %v210
  %499 = vst [vmem:[%s475] ss:$9 sm:$0xff] %v218
  %501 = vst [vmem:[%s478] ss:$9 sm:$0xff] %v226
  %503 = vst [vmem:[%s481] ss:$9 sm:$0xff] %v234
  %505 = vst [vmem:[%s484] ss:$9 sm:$0xff] %v242
  %507 = vst [vmem:[%s487] ss:$9 sm:$0xff] %v250
  %509 = vst [vmem:[%s490] ss:$9 sm:$0xff] %v258
  %v510 = vld [vmem:[#allocation1] sm:$0xff]
  %513 = vst [vmem:[#allocation1] ss:$9 sm:$0xff] %v266
  %515 = vst [vmem:[%s472] ss:$9 sm:$0xff] %v274
  %v516 = vld [vmem:[#allocation1] sm:$0xff]
  %518 = vrot.lane.b32.xlu0 %v492, 3
  %v519 = vpop.permute.xlu0 %518
  %520 = vrot.lane.b32.xlu0 %v510, 3
  %v521 = vpop.permute.xlu0 %520
  %522 = vrot.lane.b32.xlu0 %v516, 3
  %v523 = vpop.permute.xlu0 %522
  %524 = vst [vmem:[#allocation1] ss:$9 sm:$0xff] %v277
  %s525 = scalar_lea.vmem [#allocation1], 1
  %526 = vst [vmem:[%s525] ss:$9 sm:$0xff] %v279
  %s527 = scalar_lea.vmem [#allocation1], 2
  %528 = vst [vmem:[%s527] ss:$9 sm:$0xff] %v281
  %s529 = scalar_lea.vmem [#allocation1], 3
  %530 = vst [vmem:[%s529] ss:$9 sm:$0xff] %v284
  %s531 = scalar_lea.vmem [#allocation1], 4
  %532 = vst [vmem:[%s531] ss:$9 sm:$0xff] %v286
  %s533 = scalar_lea.vmem [#allocation1], 5
  %534 = vst [vmem:[%s533] ss:$9 sm:$0xff] %v288
  %s535 = scalar_lea.vmem [#allocation1], 6
  %536 = vst [vmem:[%s535] ss:$9 sm:$0xff] %v290
  %s537 = scalar_lea.vmem [#allocation1], 7
  %538 = vst [vmem:[%s537] ss:$9 sm:$0xff] %v291
  %v539 = vld [vmem:[#allocation1] sm:$0xff]
  %541 = vst [vmem:[#allocation1] ss:$9 sm:$0xff] %v292
  %542 = vst [vmem:[%s525] ss:$9 sm:$0xff] %v294
  %543 = vst [vmem:[%s527] ss:$9 sm:$0xff] %v295
  %544 = vst [vmem:[%s529] ss:$9 sm:$0xff] %v296
  %545 = vst [vmem:[%s531] ss:$9 sm:$0xff] %v298
  %546 = vst [vmem:[%s533] ss:$9 sm:$0xff] %v299
  %547 = vst [vmem:[%s535] ss:$9 sm:$0xff] %v300
  %548 = vst [vmem:[%s537] ss:$9 sm:$0xff] %v302
  %v549 = vld [vmem:[#allocation1] sm:$0xff]
  %551 = vst [vmem:[#allocation1] ss:$9 sm:$0xff] %v303
  %552 = vst [vmem:[%s525] ss:$9 sm:$0xff] %v304
  %v553 = vld [vmem:[#allocation1] sm:$0xff]
  %555 = vrot.lane.b32.xlu0 %v539, 6
  %v556 = vpop.permute.xlu0 %555
  %557 = vrot.lane.b32.xlu0 %v549, 6
  %v558 = vpop.permute.xlu0 %557
  %559 = vrot.lane.b32.xlu0 %v553, 6
  %v560 = vpop.permute.xlu0 %559
  %561 = vst [vmem:[#allocation1] ss:$9 sm:$0xff] %v54
  %s562 = scalar_lea.vmem [#allocation1], 1
  %563 = vst [vmem:[%s562] ss:$9 sm:$0xff] %v57
  %s564 = scalar_lea.vmem [#allocation1], 2
  %565 = vst [vmem:[%s564] ss:$9 sm:$0xff] %v60
  %s566 = scalar_lea.vmem [#allocation1], 3
  %567 = vst [vmem:[%s566] ss:$9 sm:$0xff] %v63
  %s568 = scalar_lea.vmem [#allocation1], 4
  %569 = vst [vmem:[%s568] ss:$9 sm:$0xff] %v66
  %s570 = scalar_lea.vmem [#allocation1], 5
  %571 = vst [vmem:[%s570] ss:$9 sm:$0xff] %v69
  %s572 = scalar_lea.vmem [#allocation1], 6
  %573 = vst [vmem:[%s572] ss:$9 sm:$0xff] %v72
  %s574 = scalar_lea.vmem [#allocation1], 7
  %575 = vst [vmem:[%s574] ss:$9 sm:$0xff] %v75
  %v576 = vld [vmem:[#allocation1] sm:$0xff]
  %578 = vst [vmem:[#allocation1] ss:$9 sm:$0xff] %v78
  %579 = vst [vmem:[%s562] ss:$9 sm:$0xff] %v81
  %580 = vst [vmem:[%s564] ss:$9 sm:$0xff] %v84
  %581 = vst [vmem:[%s566] ss:$9 sm:$0xff] %v87
  %582 = vst [vmem:[%s568] ss:$9 sm:$0xff] %v90
  %583 = vst [vmem:[%s570] ss:$9 sm:$0xff] %v93
  %584 = vst [vmem:[%s572] ss:$9 sm:$0xff] %v96
  %585 = vst [vmem:[%s574] ss:$9 sm:$0xff] %v309
  %v586 = vld [vmem:[#allocation1] sm:$0xff]
  %588 = vst [vmem:[#allocation1] ss:$9 sm:$0xff] %v312
  %589 = vst [vmem:[%s562] ss:$9 sm:$0xff] %v315
  %v590 = vld [vmem:[#allocation1] sm:$0xff]
  %592 = vrot.lane.b32.xlu0 %v576, 9
  %v593 = vpop.permute.xlu0 %592
  %594 = vrot.lane.b32.xlu0 %v586, 9
  %v595 = vpop.permute.xlu0 %594
  %596 = vrot.lane.b32.xlu0 %v590, 9
  %v597 = vpop.permute.xlu0 %596
  %598 = vst [vmem:[#allocation1] ss:$9 sm:$0xff] %v162
  %s599 = scalar_lea.vmem [#allocation1], 1
  %600 = vst [vmem:[%s599] ss:$9 sm:$0xff] %v170
  %s601 = scalar_lea.vmem [#allocation1], 2
  %602 = vst [vmem:[%s601] ss:$9 sm:$0xff] %v178
  %s603 = scalar_lea.vmem [#allocation1], 3
  %604 = vst [vmem:[%s603] ss:$9 sm:$0xff] %v186
  %s605 = scalar_lea.vmem [#allocation1], 4
  %606 = vst [vmem:[%s605] ss:$9 sm:$0xff] %v194
  %s607 = scalar_lea.vmem [#allocation1], 5
  %608 = vst [vmem:[%s607] ss:$9 sm:$0xff] %v202
  %s609 = scalar_lea.vmem [#allocation1], 6
  %610 = vst [vmem:[%s609] ss:$9 sm:$0xff] %v210
  %s611 = scalar_lea.vmem [#allocation1], 7
  %612 = vst [vmem:[%s611] ss:$9 sm:$0xff] %v218
  %v613 = vld [vmem:[#allocation1] sm:$0xff]
  %615 = vst [vmem:[#allocation1] ss:$9 sm:$0xff] %v226
  %616 = vst [vmem:[%s599] ss:$9 sm:$0xff] %v234
  %617 = vst [vmem:[%s601] ss:$9 sm:$0xff] %v242
  %618 = vst [vmem:[%s603] ss:$9 sm:$0xff] %v250
  %619 = vst [vmem:[%s605] ss:$9 sm:$0xff] %v258
  %620 = vst [vmem:[%s607] ss:$9 sm:$0xff] %v266
  %621 = vst [vmem:[%s609] ss:$9 sm:$0xff] %v274
  %623 = vst [vmem:[%s611] ss:$9 sm:$0xff] %v326
  %v624 = vld [vmem:[#allocation1] sm:$0xff]
  %627 = vst [vmem:[#allocation1] ss:$9 sm:$0xff] %v334
  %629 = vst [vmem:[%s599] ss:$9 sm:$0xff] %v342
  %v630 = vld [vmem:[#allocation1] sm:$0xff]
  %632 = vrot.lane.b32.xlu0 %v613, 12
  %v633 = vpop.permute.xlu0 %632
  %634 = vrot.lane.b32.xlu0 %v624, 12
  %v635 = vpop.permute.xlu0 %634
  %636 = vrot.lane.b32.xlu0 %v630, 12
  %v637 = vpop.permute.xlu0 %636
  %638 = vst [vmem:[#allocation1] ss:$9 sm:$0xff] %v345
  %s639 = scalar_lea.vmem [#allocation1], 1
  %640 = vst [vmem:[%s639] ss:$9 sm:$0xff] %v347
  %s641 = scalar_lea.vmem [#allocation1], 2
  %642 = vst [vmem:[%s641] ss:$9 sm:$0xff] %v349
  %s643 = scalar_lea.vmem [#allocation1], 3
  %644 = vst [vmem:[%s643] ss:$9 sm:$0xff] %v352
  %s645 = scalar_lea.vmem [#allocation1], 4
  %646 = vst [vmem:[%s645] ss:$9 sm:$0xff] %v354
  %s647 = scalar_lea.vmem [#allocation1], 5
  %648 = vst [vmem:[%s647] ss:$9 sm:$0xff] %v356
  %s649 = scalar_lea.vmem [#allocation1], 6
  %650 = vst [vmem:[%s649] ss:$9 sm:$0xff] %v358
  %s651 = scalar_lea.vmem [#allocation1], 7
  %652 = vst [vmem:[%s651] ss:$9 sm:$0xff] %v359
  %v653 = vld [vmem:[#allocation1] sm:$0xff]
  %655 = vst [vmem:[#allocation1] ss:$9 sm:$0xff] %v360
  %656 = vst [vmem:[%s639] ss:$9 sm:$0xff] %v362
  %657 = vst [vmem:[%s641] ss:$9 sm:$0xff] %v363
  %658 = vst [vmem:[%s643] ss:$9 sm:$0xff] %v364
  %659 = vst [vmem:[%s645] ss:$9 sm:$0xff] %v366
  %660 = vst [vmem:[%s647] ss:$9 sm:$0xff] %v367
  %661 = vst [vmem:[%s649] ss:$9 sm:$0xff] %v368
  %662 = vst [vmem:[%s651] ss:$9 sm:$0xff] %v370
  %v663 = vld [vmem:[#allocation1] sm:$0xff]
  %665 = vst [vmem:[#allocation1] ss:$9 sm:$0xff] %v371
  %666 = vst [vmem:[%s639] ss:$9 sm:$0xff] %v372
  %v667 = vld [vmem:[#allocation1] sm:$0xff]
  %669 = vrot.lane.b32.xlu0 %v653, 15
  %v670 = vpop.permute.xlu0 %669
  %671 = vrot.lane.b32.xlu0 %v663, 15
  %v672 = vpop.permute.xlu0 %671
  %673 = vrot.lane.b32.xlu0 %v667, 15
  %v674 = vpop.permute.xlu0 %673
  %675 = vst [vmem:[#allocation1] ss:$9 sm:$0xff] %v63
  %s676 = scalar_lea.vmem [#allocation1], 1
  %677 = vst [vmem:[%s676] ss:$9 sm:$0xff] %v66
  %s678 = scalar_lea.vmem [#allocation1], 2
  %679 = vst [vmem:[%s678] ss:$9 sm:$0xff] %v69
  %s680 = scalar_lea.vmem [#allocation1], 3
  %681 = vst [vmem:[%s680] ss:$9 sm:$0xff] %v72
  %s682 = scalar_lea.vmem [#allocation1], 4
  %683 = vst [vmem:[%s682] ss:$9 sm:$0xff] %v75
  %s684 = scalar_lea.vmem [#allocation1], 5
  %685 = vst [vmem:[%s684] ss:$9 sm:$0xff] %v78
  %s686 = scalar_lea.vmem [#allocation1], 6
  %687 = vst [vmem:[%s686] ss:$9 sm:$0xff] %v81
  %s688 = scalar_lea.vmem [#allocation1], 7
  %689 = vst [vmem:[%s688] ss:$9 sm:$0xff] %v84
  %v690 = vld [vmem:[#allocation1] sm:$0xff]
  %692 = vst [vmem:[#allocation1] ss:$9 sm:$0xff] %v87
  %693 = vst [vmem:[%s676] ss:$9 sm:$0xff] %v90
  %694 = vst [vmem:[%s678] ss:$9 sm:$0xff] %v93
  %695 = vst [vmem:[%s680] ss:$9 sm:$0xff] %v96
  %696 = vst [vmem:[%s682] ss:$9 sm:$0xff] %v309
  %697 = vst [vmem:[%s684] ss:$9 sm:$0xff] %v312
  %698 = vst [vmem:[%s686] ss:$9 sm:$0xff] %v315
  %699 = vst [vmem:[%s688] ss:$9 sm:$0xff] %v377
  %v700 = vld [vmem:[#allocation1] sm:$0xff]
  %702 = vst [vmem:[#allocation1] ss:$9 sm:$0xff] %v380
  %703 = vst [vmem:[%s676] ss:$9 sm:$0xff] %v383
  %v704 = vld [vmem:[#allocation1] sm:$0xff]
  %706 = vrot.lane.b32.xlu0 %v690, 18
  %v707 = vpop.permute.xlu0 %706
  %708 = vrot.lane.b32.xlu0 %v700, 18
  %v709 = vpop.permute.xlu0 %708
  %710 = vrot.lane.b32.xlu0 %v704, 18
  %v711 = vpop.permute.xlu0 %710
  %712 = vst [vmem:[#allocation1] ss:$9 sm:$0xff] %v186
  %s713 = scalar_lea.vmem [#allocation1], 1
  %714 = vst [vmem:[%s713] ss:$9 sm:$0xff] %v194
  %s715 = scalar_lea.vmem [#allocation1], 2
  %716 = vst [vmem:[%s715] ss:$9 sm:$0xff] %v202
  %s717 = scalar_lea.vmem [#allocation1], 3
  %718 = vst [vmem:[%s717] ss:$9 sm:$0xff] %v210
  %s719 = scalar_lea.vmem [#allocation1], 4
  %720 = vst [vmem:[%s719] ss:$9 sm:$0xff] %v218
  %s721 = scalar_lea.vmem [#allocation1], 5
  %722 = vst [vmem:[%s721] ss:$9 sm:$0xff] %v226
  %s723 = scalar_lea.vmem [#allocation1], 6
  %724 = vst [vmem:[%s723] ss:$9 sm:$0xff] %v234
  %s725 = scalar_lea.vmem [#allocation1], 7
  %726 = vst [vmem:[%s725] ss:$9 sm:$0xff] %v242
  %v727 = vld [vmem:[#allocation1] sm:$0xff]
  %729 = vst [vmem:[#allocation1] ss:$9 sm:$0xff] %v250
  %730 = vst [vmem:[%s713] ss:$9 sm:$0xff] %v258
  %731 = vst [vmem:[%s715] ss:$9 sm:$0xff] %v266
  %732 = vst [vmem:[%s717] ss:$9 sm:$0xff] %v274
  %733 = vst [vmem:[%s719] ss:$9 sm:$0xff] %v326
  %734 = vst [vmem:[%s721] ss:$9 sm:$0xff] %v334
  %735 = vst [vmem:[%s723] ss:$9 sm:$0xff] %v342
  %737 = vst [vmem:[%s725] ss:$9 sm:$0xff] %v394
  %v738 = vld [vmem:[#allocation1] sm:$0xff]
  %741 = vst [vmem:[#allocation1] ss:$9 sm:$0xff] %v402
  %743 = vst [vmem:[%s713] ss:$9 sm:$0xff] %v410
  %v744 = vld [vmem:[#allocation1] sm:$0xff]
  %746 = vrot.lane.b32.xlu0 %v727, 21
  %v747 = vpop.permute.xlu0 %746
  %748 = vrot.lane.b32.xlu0 %v738, 21
  %v749 = vpop.permute.xlu0 %748
  %750 = vrot.lane.b32.xlu0 %v744, 21
  %v751 = vpop.permute.xlu0 %750
  %752 = vst [vmem:[#allocation1] ss:$9 sm:$0xff] %v413
  %s753 = scalar_lea.vmem [#allocation1], 1
  %754 = vst [vmem:[%s753] ss:$9 sm:$0xff] %v415
  %s755 = scalar_lea.vmem [#allocation1], 2
  %756 = vst [vmem:[%s755] ss:$9 sm:$0xff] %v417
  %s757 = scalar_lea.vmem [#allocation1], 3
  %758 = vst [vmem:[%s757] ss:$9 sm:$0xff] %v420
  %s759 = scalar_lea.vmem [#allocation1], 4
  %760 = vst [vmem:[%s759] ss:$9 sm:$0xff] %v422
  %s761 = scalar_lea.vmem [#allocation1], 5
  %762 = vst [vmem:[%s761] ss:$9 sm:$0xff] %v424
  %s763 = scalar_lea.vmem [#allocation1], 6
  %764 = vst [vmem:[%s763] ss:$9 sm:$0xff] %v426
  %s765 = scalar_lea.vmem [#allocation1], 7
  %766 = vst [vmem:[%s765] ss:$9 sm:$0xff] %v427
  %v767 = vld [vmem:[#allocation1] sm:$0xff]
  %769 = vst [vmem:[#allocation1] ss:$9 sm:$0xff] %v428
  %770 = vst [vmem:[%s753] ss:$9 sm:$0xff] %v430
  %771 = vst [vmem:[%s755] ss:$9 sm:$0xff] %v431
  %772 = vst [vmem:[%s757] ss:$9 sm:$0xff] %v432
  %773 = vst [vmem:[%s759] ss:$9 sm:$0xff] %v434
  %774 = vst [vmem:[%s761] ss:$9 sm:$0xff] %v435
  %775 = vst [vmem:[%s763] ss:$9 sm:$0xff] %v436
  %776 = vst [vmem:[%s765] ss:$9 sm:$0xff] %v438
  %v777 = vld [vmem:[#allocation1] sm:$0xff]
  %779 = vst [vmem:[#allocation1] ss:$9 sm:$0xff] %v439
  %780 = vst [vmem:[%s753] ss:$9 sm:$0xff] %v440
  %v781 = vld [vmem:[#allocation1] sm:$0xff]
  %783 = vrot.lane.b32.xlu0 %v767, 24
  %v784 = vpop.permute.xlu0 %783
  %785 = vrot.lane.b32.xlu0 %v777, 24
  %v786 = vpop.permute.xlu0 %785
  %787 = vrot.lane.b32.xlu0 %v781, 24
  %v788 = vpop.permute.xlu0 %787
  %vm789 = vcmask 23552
  %v791 = vsel %vm789, %v456, %v519
  %v793 = vsel %vm789, %v465, %v521
  %v795 = vsel %vm789, %v468, %v523
  %vm796 = vcmask 48128
  %v798 = vsel %vm796, %v791, %v556
  %v800 = vsel %vm796, %v793, %v558
  %v802 = vsel %vm796, %v795, %v560
  %vm803 = vcmask 72704
  %v805 = vsel %vm803, %v798, %v593
  %v807 = vsel %vm803, %v800, %v595
  %v809 = vsel %vm803, %v802, %v597
  %vm810 = vcmask 97280
  %v812 = vsel %vm810, %v805, %v633
  %v814 = vsel %vm810, %v807, %v635
  %v816 = vsel %vm810, %v809, %v637
  %vm817 = vcmask 121856
  %v819 = vsel %vm817, %v812, %v670
  %v821 = vsel %vm817, %v814, %v672
  %v823 = vsel %vm817, %v816, %v674
  %vm824 = vcmask 146432
  %v826 = vsel %vm824, %v819, %v707
  %v828 = vsel %vm824, %v821, %v709
  %v830 = vsel %vm824, %v823, %v711
  %vm831 = vcmask 171008
  %v833 = vsel %vm831, %v826, %v747
  %v835 = vsel %vm831, %v828, %v749
  %v837 = vsel %vm831, %v830, %v751
  %vm838 = vcmask 195584
  %v840 = vsel %vm838, %v833, %v784
  %v842 = vsel %vm838, %v835, %v786
  %v844 = vsel %vm838, %v837, %v788
  %v845 = vld [vmem:[%s1] sm:$0xf]
  %v846 = vld [vmem:[%s1 + $0x4] sm:$0xf]
  %v847 = vld [vmem:[%s1 + $0x8] sm:$0xf]
  %v848 = vld [vmem:[%s1 + $0xc] sm:$0x3]
  %v853 = vunpack.c.l.b16 %v845
  %v854 = vunpack.c.l.b16 %v846
  %v855 = vunpack.c.l.b16 %v847
  %v856 = vunpack.c.l.b16 %v848
  %v857 = vpack.c.b16 %v854, %v853
  %v858 = vpack.c.b16 %v856, %v855
  %vm860 = vcmask 220160
  %v861 = vsel %vm860, %v840, 0
  %v863 = vsel %vm860, %v842, 0
  %v865 = vsel %vm860, %v844, 0
  %vm867 = vcmask 1044480
  %vm868 = vcmask 1045504
  %v869 = vsel %vm867, 4294967295, 65535
  %v870 = vsel %vm868, %v869, 0
  %v872 = vand.u32 %v858, %v870
  %874 = vmatpush.bf16.msra.mxu0 0
  %875 = vmatpush.bf16.msra.mxu0 0
  %876 = vmatpush.bf16.msra.mxu0 0
  %877 = vmatpush.bf16.msra.mxu0 0
  %878 = vmatpush.bf16.msra.mxu0 0
  %879 = vmatpush.bf16.msra.mxu0 0
  %880 = vmatpush.bf16.msra.mxu0 %v872
  %881 = vmatpush.bf16.msra.mxu0 %v857
  %882 = vmatmul.bf16.gmra.mxu0 %v861
  %v883 = vpop.f32.mrf.mxu0
  %v884 = vadd.f32 0.0, %v883
  %v885 = vpop.f32.mrf.mxu0
  %v886 = vadd.f32 0.0, %v885
  %887 = vmatmul.bf16.gmra.mxu0 %v863
  %v888 = vpop.f32.mrf.mxu0
  %v889 = vadd.f32 0.0, %v888
  %v890 = vpop.f32.mrf.mxu0
  %v891 = vadd.f32 0.0, %v890
  %892 = vmatmul.bf16.gmra.mxu0 %v865
  %v893 = vpop.f32.mrf.mxu0
  %v894 = vadd.f32 0.0, %v893
  %v895 = vpop.f32.mrf.mxu0
  %896 = vdwg.mxu0
  %vm897 = vcmask 31744
  %898 = vst.msk [vmem:[%s2] sm:$0xff] %vm897, %v884
  %899 = vst.msk [vmem:[%s2 + $0x8] sm:$0xff] %vm897, %v886
  %900 = vst.msk [vmem:[%s2 + $0x10] sm:$0xff] %vm897, %v889
  %901 = vst.msk [vmem:[%s2 + $0x18] sm:$0xff] %vm897, %v891
  %vm902 = vcmask 27648
  %903 = vst.msk [vmem:[%s2 + $0x20] sm:$0xf] %vm902, %v894
  // Predicated region
  $region10: #{tpu_custom_call.1} parent=0 // pred_check
    _
  $region11: #{tpu_custom_call.1} parent=0 // pred_check_branch
    %905 = sbr.rel (0) target = $region13
  $region12: #{tpu_custom_call.1} parent=0 // pred_region
    _
  $region13: #{tpu_custom_call.1} parent=0 // pred_fallthru
    _
  // Predicated region
  $region14: #{tpu_custom_call.1} parent=0 // pred_check
    _
  $region15: #{tpu_custom_call.1} parent=0 // pred_check_branch
    %907 = sbr.rel (0) target = $region17
  $region16: #{tpu_custom_call.1} parent=0 // pred_region
    _
  $region17: #{tpu_custom_call.1} parent=0 // pred_fallthru
    _

// kernel: tpu_custom_call.1
$region0: #{tpu_custom_call.1}
  #allocation0 [shape = 'u32[]', space=smem, size = 0x4, offset = 0x4, fixed_abs, tag = 'smem constant byte address 0x4 - core index']
  #allocation1 [shape = 'u32[72,128]{1,0:T(1,128)}', space=vmem, size = 0x9000, scoped, tag = 'internal scratch']
  %s0 = inlined_call_operand.vmem [shape: f32[2,18,18,3], index: 0, kind: input, shape index: {}]
  %s1 = inlined_call_operand.vmem [shape: f32[2,18,18,3], index: 1, kind: input, shape index: {}]
  %s2 = inlined_call_operand.vmem [shape: bf16[3,3,3,2], index: 2, kind: input, shape index: {}]
  %s3 = inlined_call_operand.vmem [shape: bf16[3,3,3,2], index: 3, kind: input, shape index: {}]
  %s4 = inlined_call_operand.vmem [shape: f32[1,2], index: 4, kind: input, shape index: {}]
  %s5 = inlined_call_operand.vmem [shape: f32[2,16,16,2], index: 5, kind: output, shape index: {}]
  %s6 = sld [smem:[#allocation0]]
  $region53: #{tpu_custom_call.1} parent=0
    _
  %s8 = ssub.s32 1, %s6
  %s9 = scalar_select 0, %s8, %s6
  loop: start=0, step=1, limit=6
  $region2: #{tpu_custom_call.1} parent=0 // loop_pre_header
    _
  $region3: #{tpu_custom_call.1} parent=0 // loop_header
    %s11 = sphi 0, %s15
    %p12 = scmp.ge.s32.totalorder %s11, 6
    %s18 = sphi 0, %s30
    %s19 = sphi 0, %s26
    %s20 = sphi 0, %s18
    %s21 = sphi 0, %s19
    %s22 = sphi 0, %s20
    %s23 = sphi 0, %s21
    %s33 = sphi 0, %s35
    %s36 = sphi 0, %s33
    %s37 = sphi 0, %s36
    %s53 = sphi 0, %s37
    %s59 = sphi 0, %s61
    %s62 = sphi 0, %s59
    %s63 = sphi 0, %s62
    %s79 = sphi 0, %s63
    %s83 = sphi 0, %s83
    %s85 = sphi 0, %s83
    %s86 = sphi 0, %s85
    %s100 = sphi 0, %s86
    %s104 = sphi 0, %s104
    %s106 = sphi 0, %s104
    %s107 = sphi 0, %s106
    %s121 = sphi 0, %s107
    %s125 = sphi 0, %s125
    %s127 = sphi 0, %s125
    %s128 = sphi 0, %s127
    %s142 = sphi 0, %s128
    %s150 = sphi 0, %s152
    %s153 = sphi 0, %s150
    %s154 = sphi 0, %s153
    %s170 = sphi 0, %s154
  $region4: #{tpu_custom_call.1} parent=0 // loop_header_branch
    %14 = sbr.rel (%p12) target = $region8
  $region5: #{tpu_custom_call.1} parent=0 // loop_body
    %s16 = ssub.s32 %s11, 1
    %s17 = ssub.s32 %s11, 2
    %s24 = sadd.s32 1, %s19
    %p25 = scmp.ge.s32.totalorder %s24, 2
    %s26 = scalar_select %p25, 0, %s24
    %s27 = sadd.s32 1, %s18
    %s28 = scalar_select %p25, %s27, %s18
    %p29 = scmp.ge.s32.totalorder %s28, 2
    %s30 = scalar_select %p29, 0, %s28
    %s31 = ssub.s32 %s18, %s30
    %p32 = scmp.eq.s32.totalorder %s31, 0
    %s34 = sadd.s32 %s33, 1
    %s35 = scalar_select %p32, %s33, %s34
    %p38 = pneg %p32
    %p39 = scmp.eq.s32.totalorder %s11, 3
    %p40 = por %p38, %p39
    %p41 = scmp.ne.s32.totalorder %s33, %s36
    %p42 = scmp.eq.s32.totalorder %s11, 0
    %p43 = por %p41, %p42
    %p44 = scmp.ne.s32.totalorder %s33, %s36
    %p45 = scmp.eq.s32.totalorder %s16, 3
    %p46 = por %p44, %p45
    %p47 = scmp.ne.s32.totalorder %s36, %s37
    %p48 = scmp.eq.s32.totalorder %s16, 0
    %p49 = por %p47, %p48
    %p50 = scmp.ne.s32.totalorder %s36, %s37
    %p51 = scmp.eq.s32.totalorder %s17, 3
    %p52 = por %p50, %p51
    %p54 = scmp.ne.s32.totalorder %s37, %s53
    %p55 = scmp.eq.s32.totalorder %s17, 0
    %p56 = por %p54, %p55
    %s57 = ssub.s32 %s18, %s30
    %p58 = scmp.eq.s32.totalorder %s57, 0
    %s60 = sadd.s32 %s59, 1
    %s61 = scalar_select %p58, %s59, %s60
    %p64 = pneg %p58
    %p65 = scmp.eq.s32.totalorder %s11, 3
    %p66 = por %p64, %p65
    %p67 = scmp.ne.s32.totalorder %s59, %s62
    %p68 = scmp.eq.s32.totalorder %s11, 0
    %p69 = por %p67, %p68
    %p70 = scmp.ne.s32.totalorder %s59, %s62
    %p71 = scmp.eq.s32.totalorder %s16, 3
    %p72 = por %p70, %p71
    %p73 = scmp.ne.s32.totalorder %s62, %s63
    %p74 = scmp.eq.s32.totalorder %s16, 0
    %p75 = por %p73, %p74
    %p76 = scmp.ne.s32.totalorder %s62, %s63
    %p77 = scmp.eq.s32.totalorder %s17, 3
    %p78 = por %p76, %p77
    %p80 = scmp.ne.s32.totalorder %s63, %s79
    %p81 = scmp.eq.s32.totalorder %s17, 0
    %p82 = por %p80, %p81
    %s84 = sadd.s32 %s83, 1
    %p87 = scmp.eq.s32.totalorder %s11, 3
    %p88 = scmp.ne.s32.totalorder %s83, %s85
    %p89 = scmp.eq.s32.totalorder %s11, 0
    %p90 = por %p88, %p89
    %p91 = scmp.ne.s32.totalorder %s83, %s85
    %p92 = scmp.eq.s32.totalorder %s16, 3
    %p93 = por %p91, %p92
    %p94 = scmp.ne.s32.totalorder %s85, %s86
    %p95 = scmp.eq.s32.totalorder %s16, 0
    %p96 = por %p94, %p95
    %p97 = scmp.ne.s32.totalorder %s85, %s86
    %p98 = scmp.eq.s32.totalorder %s17, 3
    %p99 = por %p97, %p98
    %p101 = scmp.ne.s32.totalorder %s86, %s100
    %p102 = scmp.eq.s32.totalorder %s17, 0
    %p103 = por %p101, %p102
    %s105 = sadd.s32 %s104, 1
    %p108 = scmp.eq.s32.totalorder %s11, 3
    %p109 = scmp.ne.s32.totalorder %s104, %s106
    %p110 = scmp.eq.s32.totalorder %s11, 0
    %p111 = por %p109, %p110
    %p112 = scmp.ne.s32.totalorder %s104, %s106
    %p113 = scmp.eq.s32.totalorder %s16, 3
    %p114 = por %p112, %p113
    %p115 = scmp.ne.s32.totalorder %s106, %s107
    %p116 = scmp.eq.s32.totalorder %s16, 0
    %p117 = por %p115, %p116
    %p118 = scmp.ne.s32.totalorder %s106, %s107
    %p119 = scmp.eq.s32.totalorder %s17, 3
    %p120 = por %p118, %p119
    %p122 = scmp.ne.s32.totalorder %s107, %s121
    %p123 = scmp.eq.s32.totalorder %s17, 0
    %p124 = por %p122, %p123
    %s126 = sadd.s32 %s125, 1
    %p129 = scmp.eq.s32.totalorder %s11, 3
    %p130 = scmp.ne.s32.totalorder %s125, %s127
    %p131 = scmp.eq.s32.totalorder %s11, 0
    %p132 = por %p130, %p131
    %p133 = scmp.ne.s32.totalorder %s125, %s127
    %p134 = scmp.eq.s32.totalorder %s16, 3
    %p135 = por %p133, %p134
    %p136 = scmp.ne.s32.totalorder %s127, %s128
    %p137 = scmp.eq.s32.totalorder %s16, 0
    %p138 = por %p136, %p137
    %p139 = scmp.ne.s32.totalorder %s127, %s128
    %p140 = scmp.eq.s32.totalorder %s17, 3
    %p141 = por %p139, %p140
    %p143 = scmp.ne.s32.totalorder %s128, %s142
    %p144 = scmp.eq.s32.totalorder %s17, 0
    %p145 = por %p143, %p144
    %s146 = ssub.s32 %s18, %s30
    %s147 = ssub.s32 %s19, %s26
    %s148 = sor.u32 %s146, %s147
    %p149 = scmp.eq.s32.totalorder %s148, 0
    %s151 = sadd.s32 %s150, 1
    %s152 = scalar_select %p149, %s150, %s151
    %p155 = pneg %p149
    %p156 = scmp.eq.s32.totalorder %s11, 3
    %p157 = por %p155, %p156
    %p158 = scmp.ne.s32.totalorder %s150, %s153
    %p159 = scmp.eq.s32.totalorder %s11, 0
    %p160 = por %p158, %p159
    %p161 = scmp.ne.s32.totalorder %s150, %s153
    %p162 = scmp.eq.s32.totalorder %s16, 3
    %p163 = por %p161, %p162
    %p164 = scmp.ne.s32.totalorder %s153, %s154
    %p165 = scmp.eq.s32.totalorder %s16, 0
    %p166 = por %p164, %p165
    %p167 = scmp.ne.s32.totalorder %s153, %s154
    %p168 = scmp.eq.s32.totalorder %s17, 3
    %p169 = por %p167, %p168
    %p171 = scmp.ne.s32.totalorder %s154, %s170
    %p172 = scmp.eq.s32.totalorder %s17, 0
    %p173 = por %p171, %p172
    %p174 = scmp.le.s32.totalorder 1, %s11
    %p175 = scmp.lt.s32.totalorder %s11, 5
    %p176 = pnand %p174, %p175
    %p177 = pneg %p176
    // Predicated region
    $region9: #{tpu_custom_call.1} parent=5 // pred_check
      _
    $region10: #{tpu_custom_call.1} parent=5 // pred_check_branch
      %179 = sbr.rel (%p176) target = $region12
    $region11: #{tpu_custom_call.1} parent=5 // pred_region
      %s180 = ssub.s32 %s11, 1
      // Predicated region
      $region13: #{tpu_custom_call.1} parent=11 // pred_check
        %p181 = pneg %p96
      $region14: #{tpu_custom_call.1} parent=11 // pred_check_branch
        %183 = sbr.rel (%p181) target = $region16
      $region15: #{tpu_custom_call.1} parent=11 // pred_region
        _
      $region16: #{tpu_custom_call.1} parent=11 // pred_fallthru
        _
      // Predicated region
      $region17: #{tpu_custom_call.1} parent=11 // pred_check
        %p184 = pneg %p117
      $region18: #{tpu_custom_call.1} parent=11 // pred_check_branch
        %186 = sbr.rel (%p184) target = $region20
      $region19: #{tpu_custom_call.1} parent=11 // pred_region
        _
      $region20: #{tpu_custom_call.1} parent=11 // pred_fallthru
        _
      // Predicated region
      $region21: #{tpu_custom_call.1} parent=11 // pred_check
        %p187 = pneg %p138
      $region22: #{tpu_custom_call.1} parent=11 // pred_check_branch
        %189 = sbr.rel (%p187) target = $region24
      $region23: #{tpu_custom_call.1} parent=11 // pred_region
        _
      $region24: #{tpu_custom_call.1} parent=11 // pred_fallthru
        _
    $region12: #{tpu_custom_call.1} parent=5 // pred_fallthru
      _
    %p190 = scmp.lt.s32.totalorder %s11, 4
    // Predicated region
    $region25: #{tpu_custom_call.1} parent=5 // pred_check
      %p191 = pneg %p190
    $region26: #{tpu_custom_call.1} parent=5 // pred_check_branch
      %193 = sbr.rel (%p191) target = $region28
    $region27: #{tpu_custom_call.1} parent=5 // pred_region
      // Predicated region
      $region29: #{tpu_custom_call.1} parent=27 // pred_check
        %p194 = pneg %p43
      $region30: #{tpu_custom_call.1} parent=27 // pred_check_branch
        %196 = sbr.rel (%p194) target = $region32
      $region31: #{tpu_custom_call.1} parent=27 // pred_region
        %p197 = scmp.lt.s32.totalorder %s18, 1
        %s198 = scalar_select %p197, %s18, 1
        %s199 = smul.addr %s198, 54
        %s200 = smul.addr %s199, 8
        %s201 = scalar_lea.vmem %s0, %s200
      $region32: #{tpu_custom_call.1} parent=27 // pred_fallthru
        _
      // Predicated region
      $region33: #{tpu_custom_call.1} parent=27 // pred_check
        %p202 = pneg %p69
      $region34: #{tpu_custom_call.1} parent=27 // pred_check_branch
        %204 = sbr.rel (%p202) target = $region36
      $region35: #{tpu_custom_call.1} parent=27 // pred_region
        %p205 = scmp.lt.s32.totalorder %s18, 1
        %s206 = scalar_select %p205, %s18, 1
        %s207 = smul.addr %s206, 54
        %s208 = smul.addr %s207, 8
        %s209 = scalar_lea.vmem %s1, %s208
      $region36: #{tpu_custom_call.1} parent=27 // pred_fallthru
        _
    $region28: #{tpu_custom_call.1} parent=5 // pred_fallthru
      _
    %p210 = scmp.le.s32.totalorder 1, %s11
    %p211 = scmp.lt.s32.totalorder %s11, 5
    %p212 = pnand %p210, %p211
    %p213 = pneg %p212
    // Predicated region
    $region37: #{tpu_custom_call.1} parent=5 // pred_check
      _
    $region38: #{tpu_custom_call.1} parent=5 // pred_check_branch
      %215 = sbr.rel (%p212) target = $region40
    $region39: #{tpu_custom_call.1} parent=5 // pred_region
      %s216 = ssub.s32 %s11, 1
      %p217 = scmp.lt.s32.totalorder %s20, 1
      %s218 = scalar_select %p217, %s20, 1
      %s219 = smul.addr %s218, 54
      %s220 = smul.addr %s219, 8
      %s221 = scalar_lea.vmem %s0, %s220
      %p222 = pneg %p49
      %p223 = pneg %p46
      %p224 = scmp.lt.s32.totalorder %s20, 1
      %s225 = scalar_select %p224, %s20, 1
      %s226 = smul.addr %s225, 54
      %s227 = smul.addr %s226, 8
      %s228 = scalar_lea.vmem %s1, %s227
      %p229 = pneg %p75
      %p230 = pneg %p72
      %p231 = pneg %p96
      %p232 = pneg %p93
      %p233 = pneg %p117
      %p234 = pneg %p114
      %p235 = pneg %p138
      %p236 = pneg %p135
      %p237 = pneg %p166
      %p238 = pneg %p163
      %s239 = smul.u32 8, %s21
      %p240 = scmp.lt.s32.totalorder %s20, 1
      %s241 = scalar_select %p240, %s20, 1
      %p242 = scmp.lt.s32.totalorder %s239, 15
      %s243 = scalar_select %p242, %s239, 15
      %s244 = smul.addr %s243, 2
      %s245 = smul.addr %s241, 32
      %s246 = sadd.s32 %s244, %s245
      %s247 = smul.addr %s246, 8
      %s248 = scalar_lea.vmem %s5, %s247
      %p249 = scmp.lt.s32.totalorder %s20, 1
      %s250 = scalar_select %p249, %s20, 1
      %s251 = smul.addr %s250, 54
      %s252 = smul.addr %s251, 8
      %s253 = scalar_lea.vmem %s0, %s252
      %p254 = scmp.lt.s32.totalorder %s20, 1
      %s255 = scalar_select %p254, %s20, 1
      %s256 = smul.addr %s255, 54
      %s257 = smul.addr %s256, 8
      %s258 = scalar_lea.vmem %s1, %s257
      %s259 = smul.u32 8, %s21
      %p260 = scmp.lt.s32.totalorder %s20, 1
      %s261 = scalar_select %p260, %s20, 1
      %p262 = scmp.lt.s32.totalorder %s259, 15
      %s263 = scalar_select %p262, %s259, 15
      %s264 = smul.addr %s263, 2
      %s265 = smul.addr %s261, 32
      %s266 = sadd.s32 %s264, %s265
      %s267 = smul.addr %s266, 8
      %s268 = scalar_lea.vmem %s5, %s267
      %s269 = smul.u32 8, %s21
      %s271 = smul.u32 %s21, 8
      %s272 = smul.u32 %s271, 24
      %s273 = scalar_lea.vmem %s253, %s272
      %v274 = vld [vmem:[%s273] sm:$0xff]
      %v275 = vld [vmem:[%s273 + $0x8] sm:$0xff]
      %v276 = vld [vmem:[%s273 + $0x10] sm:$0x3]
      %v277 = vld [vmem:[%s273 + $0x18] sm:$0xff]
      %v278 = vld [vmem:[%s273 + $0x20] sm:$0xff]
      %v279 = vld [vmem:[%s273 + $0x28] sm:$0x3]
      %v280 = vld [vmem:[%s273 + $0x30] sm:$0xff]
      %v281 = vld [vmem:[%s273 + $0x38] sm:$0xff]
      %v282 = vld [vmem:[%s273 + $0x40] sm:$0x3]
      %v283 = vld [vmem:[%s273 + $0x48] sm:$0xff]
      %v284 = vld [vmem:[%s273 + $0x50] sm:$0xff]
      %v285 = vld [vmem:[%s273 + $0x58] sm:$0x3]
      %v286 = vld [vmem:[%s273 + $0x60] sm:$0xff]
      %v287 = vld [vmem:[%s273 + $0x68] sm:$0xff]
      %v288 = vld [vmem:[%s273 + $0x70] sm:$0x3]
      %v289 = vld [vmem:[%s273 + $0x78] sm:$0xff]
      %v290 = vld [vmem:[%s273 + $0x80] sm:$0xff]
      %v291 = vld [vmem:[%s273 + $0x88] sm:$0x3]
      %v292 = vld [vmem:[%s273 + $0x90] sm:$0xff]
      %v293 = vld [vmem:[%s273 + $0x98] sm:$0xff]
      %v294 = vld [vmem:[%s273 + $0xa0] sm:$0x3]
      %v295 = vld [vmem:[%s273 + $0xa8] sm:$0xff]
      %v296 = vld [vmem:[%s273 + $0xb0] sm:$0xff]
      %v297 = vld [vmem:[%s273 + $0xb8] sm:$0x3]
      %v298 = vld [vmem:[%s273 + $0xc0] sm:$0xff]
      %v299 = vld [vmem:[%s273 + $0xc8] sm:$0xff]
      %v300 = vld [vmem:[%s273 + $0xd0] sm:$0x3]
      %v301 = vld [vmem:[%s273 + $0xd8] sm:$0xff]
      %v302 = vld [vmem:[%s273 + $0xe0] sm:$0xff]
      %v303 = vld [vmem:[%s273 + $0xe8] sm:$0x3]
      %v304 = vpack.c.bf16 %v274, %v274
      %v305 = vpack.c.bf16 %v275, %v275
      %v306 = vpack.c.bf16 %v276, %v276
      %v307 = vpack.c.bf16 %v277, %v277
      %v308 = vpack.c.bf16 %v278, %v278
      %v309 = vpack.c.bf16 %v279, %v279
      %v310 = vpack.c.bf16 %v280, %v280
      %v311 = vpack.c.bf16 %v281, %v281
      %v312 = vpack.c.bf16 %v282, %v282
      %v313 = vpack.c.bf16 %v283, %v283
      %v314 = vpack.c.bf16 %v284, %v284
      %v315 = vpack.c.bf16 %v285, %v285
      %v316 = vpack.c.bf16 %v286, %v286
      %v317 = vpack.c.bf16 %v287, %v287
      %v318 = vpack.c.bf16 %v288, %v288
      %v319 = vpack.c.bf16 %v289, %v289
      %v320 = vpack.c.bf16 %v290, %v290
      %v321 = vpack.c.bf16 %v291, %v291
      %v322 = vpack.c.bf16 %v292, %v292
      %v323 = vpack.c.bf16 %v293, %v293
      %v324 = vpack.c.bf16 %v294, %v294
      %v325 = vpack.c.bf16 %v295, %v295
      %v326 = vpack.c.bf16 %v296, %v296
      %v327 = vpack.c.bf16 %v297, %v297
      %v328 = vpack.c.bf16 %v298, %v298
      %v329 = vpack.c.bf16 %v299, %v299
      %v330 = vpack.c.bf16 %v300, %v300
      %v331 = vpack.c.bf16 %v301, %v301
      %v332 = vpack.c.bf16 %v302, %v302
      %v333 = vpack.c.bf16 %v303, %v303
      %v334 = vld [vmem:[%s2] sm:$0x3]
      %vm335 = vsmask.f32 3328
      %vm336 = vsmask.f32 7440
      %vm337 = vmor %vm335, %vm336
      %v339 = vshrl.u32 %v304, 16
      %v341 = vrot.slane %v339, 4
      %v342 = vshll.u32 %v304, 16
      %v344 = vrot.slane %v342, 5
      %v345 = vor.u32 %v341, %v344
      %v346 = vrot.slane %v345, 4
      %v348 = vshll.u32 %v305, 16
      %v350 = vrot.slane %v348, 5
      %v351 = vsel %vm337, %v346, %v350
      %v352 = vshrl.u32 %v305, 16
      %v354 = vrot.slane %v352, 4
      %v355 = vor.u32 %v354, %v350
      %v356 = vrot.slane %v355, 4
      %v358 = vshll.u32 %v306, 16
      %v360 = vrot.slane %v358, 5
      %v361 = vsel %vm337, %v356, %v360
      %v363 = vshrl.u32 %v307, 16
      %v365 = vrot.slane %v363, 4
      %v366 = vshll.u32 %v307, 16
      %v368 = vrot.slane %v366, 5
      %v369 = vor.u32 %v365, %v368
      %v370 = vrot.slane %v369, 4
      %v372 = vshll.u32 %v308, 16
      %v374 = vrot.slane %v372, 5
      %v375 = vsel %vm337, %v370, %v374
      %v376 = vshrl.u32 %v308, 16
      %v378 = vrot.slane %v376, 4
      %v379 = vor.u32 %v378, %v374
      %v380 = vrot.slane %v379, 4
      %v382 = vshll.u32 %v309, 16
      %v384 = vrot.slane %v382, 5
      %v385 = vsel %vm337, %v380, %v384
      %v387 = vshrl.u32 %v310, 16
      %v389 = vrot.slane %v387, 4
      %v390 = vshll.u32 %v310, 16
      %v392 = vrot.slane %v390, 5
      %v393 = vor.u32 %v389, %v392
      %v394 = vrot.slane %v393, 4
      %v396 = vshll.u32 %v311, 16
      %v398 = vrot.slane %v396, 5
      %v399 = vsel %vm337, %v394, %v398
      %v400 = vshrl.u32 %v311, 16
      %v402 = vrot.slane %v400, 4
      %v403 = vor.u32 %v402, %v398
      %v404 = vrot.slane %v403, 4
      %v406 = vshll.u32 %v312, 16
      %v408 = vrot.slane %v406, 5
      %v409 = vsel %vm337, %v404, %v408
      %v411 = vshrl.u32 %v313, 16
      %v413 = vrot.slane %v411, 4
      %v414 = vshll.u32 %v313, 16
      %v416 = vrot.slane %v414, 5
      %v417 = vor.u32 %v413, %v416
      %v418 = vrot.slane %v417, 4
      %v420 = vshll.u32 %v314, 16
      %v422 = vrot.slane %v420, 5
      %v423 = vsel %vm337, %v418, %v422
      %v424 = vshrl.u32 %v314, 16
      %v426 = vrot.slane %v424, 4
      %v427 = vor.u32 %v426, %v422
      %v428 = vrot.slane %v427, 4
      %v430 = vshll.u32 %v315, 16
      %v432 = vrot.slane %v430, 5
      %v433 = vsel %vm337, %v428, %v432
      %v435 = vshrl.u32 %v316, 16
      %v437 = vrot.slane %v435, 4
      %v438 = vshll.u32 %v316, 16
      %v440 = vrot.slane %v438, 5
      %v441 = vor.u32 %v437, %v440
      %v442 = vrot.slane %v441, 4
      %v444 = vshll.u32 %v317, 16
      %v446 = vrot.slane %v444, 5
      %v447 = vsel %vm337, %v442, %v446
      %v448 = vshrl.u32 %v317, 16
      %v450 = vrot.slane %v448, 4
      %v451 = vor.u32 %v450, %v446
      %v452 = vrot.slane %v451, 4
      %v454 = vshll.u32 %v318, 16
      %v456 = vrot.slane %v454, 5
      %v457 = vsel %vm337, %v452, %v456
      %v459 = vshrl.u32 %v319, 16
      %v461 = vrot.slane %v459, 4
      %v462 = vshll.u32 %v319, 16
      %v464 = vrot.slane %v462, 5
      %v465 = vor.u32 %v461, %v464
      %v466 = vrot.slane %v465, 4
      %v468 = vshll.u32 %v320, 16
      %v470 = vrot.slane %v468, 5
      %v471 = vsel %vm337, %v466, %v470
      %v472 = vshrl.u32 %v320, 16
      %v474 = vrot.slane %v472, 4
      %v475 = vor.u32 %v474, %v470
      %v476 = vrot.slane %v475, 4
      %v478 = vshll.u32 %v321, 16
      %v480 = vrot.slane %v478, 5
      %v481 = vsel %vm337, %v476, %v480
      %v483 = vshrl.u32 %v322, 16
      %v485 = vrot.slane %v483, 4
      %v486 = vshll.u32 %v322, 16
      %v488 = vrot.slane %v486, 5
      %v489 = vor.u32 %v485, %v488
      %v490 = vrot.slane %v489, 4
      %v492 = vshll.u32 %v323, 16
      %v494 = vrot.slane %v492, 5
      %v495 = vsel %vm337, %v490, %v494
      %v496 = vshrl.u32 %v323, 16
      %v498 = vrot.slane %v496, 4
      %v499 = vor.u32 %v498, %v494
      %v500 = vrot.slane %v499, 4
      %v502 = vshll.u32 %v324, 16
      %v504 = vrot.slane %v502, 5
      %v505 = vsel %vm337, %v500, %v504
      %v507 = vshrl.u32 %v325, 16
      %v509 = vrot.slane %v507, 4
      %v510 = vshll.u32 %v325, 16
      %v512 = vrot.slane %v510, 5
      %v513 = vor.u32 %v509, %v512
      %v514 = vrot.slane %v513, 4
      %v516 = vshll.u32 %v326, 16
      %v518 = vrot.slane %v516, 5
      %v519 = vsel %vm337, %v514, %v518
      %v520 = vshrl.u32 %v326, 16
      %v522 = vrot.slane %v520, 4
      %v523 = vor.u32 %v522, %v518
      %v524 = vrot.slane %v523, 4
      %v526 = vshll.u32 %v327, 16
      %v528 = vrot.slane %v526, 5
      %v529 = vsel %vm337, %v524, %v528
      %s530 = scalar_lea.vmem %s2, 2
      %v531 = vld [vmem:[%s530] sm:$0x3]
      %v532 = vunpack.c.l.b16 %v351
      %v533 = vunpack.c.l.b16 %v361
      %v534 = vunpack.c.l.b16 %v375
      %v535 = vunpack.c.l.b16 %v385
      %v536 = vunpack.c.l.b16 %v399
      %v537 = vunpack.c.l.b16 %v409
      %v538 = vunpack.c.l.b16 %v423
      %v539 = vunpack.c.l.b16 %v433
      %v540 = vunpack.c.l.b16 %v447
      %v541 = vunpack.c.l.b16 %v457
      %v542 = vunpack.c.l.b16 %v471
      %v543 = vunpack.c.l.b16 %v481
      %v544 = vunpack.c.l.b16 %v495
      %v545 = vunpack.c.l.b16 %v505
      %v546 = vunpack.c.l.b16 %v519
      %v547 = vunpack.c.l.b16 %v529
      %v548 = vpack.c.b16 %v533, %v532
      %v549 = vpack.c.b16 %v535, %v534
      %v550 = vpack.c.b16 %v537, %v536
      %v551 = vpack.c.b16 %v539, %v538
      %v552 = vpack.c.b16 %v541, %v540
      %v553 = vpack.c.b16 %v543, %v542
      %v554 = vpack.c.b16 %v545, %v544
      %v555 = vpack.c.b16 %v547, %v546
      %vm556 = vcmask 23552
      %v558 = vsel %vm556, %v548, 0
      %v561 = vsel %vm556, %v549, 0
      %v564 = vsel %vm556, %v550, 0
      %v567 = vsel %vm556, %v551, 0
      %v570 = vsel %vm556, %v552, 0
      %v573 = vsel %vm556, %v553, 0
      %v576 = vsel %vm556, %v554, 0
      %v579 = vsel %vm556, %v555, 0
      %vm581 = vcmask 1040384
      %vm582 = vcmask 1041408
      %v583 = vsel %vm581, 4294967295, 65535
      %v584 = vsel %vm582, %v583, 0
      %v586 = vand.u32 %v531, %v584
      %588 = vmatpush.bf16.msra.mxu0 0
      %589 = vmatpush.bf16.msra.mxu0 0
      %590 = vmatpush.bf16.msra.mxu0 0
      %591 = vmatpush.bf16.msra.mxu0 0
      %592 = vmatpush.bf16.msra.mxu0 0
      %593 = vmatpush.bf16.msra.mxu0 0
      %594 = vmatpush.bf16.msra.mxu0 0
      %595 = vmatpush.bf16.msra.mxu0 %v586
      %596 = vmatmul.bf16.gmra.mxu0 %v558
      %v597 = vpop.f32.mrf.mxu0
      %v598 = vadd.f32 0.0, %v597
      %v599 = vpop.f32.mrf.mxu0
      %v600 = vadd.f32 0.0, %v599
      %601 = vmatmul.bf16.gmra.mxu0 %v561
      %v602 = vpop.f32.mrf.mxu0
      %v603 = vadd.f32 0.0, %v602
      %v604 = vpop.f32.mrf.mxu0
      %v605 = vadd.f32 0.0, %v604
      %606 = vmatmul.bf16.gmra.mxu0 %v564
      %v607 = vpop.f32.mrf.mxu0
      %v608 = vadd.f32 0.0, %v607
      %v609 = vpop.f32.mrf.mxu0
      %v610 = vadd.f32 0.0, %v609
      %611 = vmatmul.bf16.gmra.mxu0 %v567
      %v612 = vpop.f32.mrf.mxu0
      %v613 = vadd.f32 0.0, %v612
      %v614 = vpop.f32.mrf.mxu0
      %v615 = vadd.f32 0.0, %v614
      %616 = vmatmul.bf16.gmra.mxu0 %v570
      %v617 = vpop.f32.mrf.mxu0
      %v618 = vadd.f32 0.0, %v617
      %v619 = vpop.f32.mrf.mxu0
      %v620 = vadd.f32 0.0, %v619
      %621 = vmatmul.bf16.gmra.mxu0 %v573
      %v622 = vpop.f32.mrf.mxu0
      %v623 = vadd.f32 0.0, %v622
      %v624 = vpop.f32.mrf.mxu0
      %v625 = vadd.f32 0.0, %v624
      %626 = vmatmul.bf16.gmra.mxu0 %v576
      %v627 = vpop.f32.mrf.mxu0
      %v628 = vadd.f32 0.0, %v627
      %v629 = vpop.f32.mrf.mxu0
      %v630 = vadd.f32 0.0, %v629
      %631 = vmatmul.bf16.gmra.mxu0 %v579
      %v632 = vpop.f32.mrf.mxu0
      %v633 = vadd.f32 0.0, %v632
      %v634 = vpop.f32.mrf.mxu0
      %v635 = vadd.f32 0.0, %v634
      %636 = vdwg.mxu0
      %v653 = vunpack.c.l.b16 %v304
      %v654 = vunpack.c.l.b16 %v305
      %v655 = vunpack.c.l.b16 %v307
      %v656 = vunpack.c.l.b16 %v308
      %v657 = vunpack.c.l.b16 %v310
      %v658 = vunpack.c.l.b16 %v311
      %v659 = vunpack.c.l.b16 %v313
      %v660 = vunpack.c.l.b16 %v314
      %v661 = vunpack.c.l.b16 %v316
      %v662 = vunpack.c.l.b16 %v317
      %v663 = vunpack.c.l.b16 %v319
      %v664 = vunpack.c.l.b16 %v320
      %v665 = vunpack.c.l.b16 %v322
      %v666 = vunpack.c.l.b16 %v323
      %v667 = vunpack.c.l.b16 %v325
      %v668 = vunpack.c.l.b16 %v326
      %v669 = vpack.c.b16 %v654, %v653
      %v670 = vpack.c.b16 %v656, %v655
      %v671 = vpack.c.b16 %v658, %v657
      %v672 = vpack.c.b16 %v660, %v659
      %v673 = vpack.c.b16 %v662, %v661
      %v674 = vpack.c.b16 %v664, %v663
      %v675 = vpack.c.b16 %v666, %v665
      %v676 = vpack.c.b16 %v668, %v667
      %v678 = vsel %vm556, %v669, 0
      %v681 = vsel %vm556, %v670, 0
      %v684 = vsel %vm556, %v671, 0
      %v687 = vsel %vm556, %v672, 0
      %v690 = vsel %vm556, %v673, 0
      %v693 = vsel %vm556, %v674, 0
      %v696 = vsel %vm556, %v675, 0
      %v699 = vsel %vm556, %v676, 0
      %v702 = vand.u32 %v334, %v584
      %704 = vmatpush.bf16.msra.mxu0 0
      %705 = vmatpush.bf16.msra.mxu0 0
      %706 = vmatpush.bf16.msra.mxu0 0
      %707 = vmatpush.bf16.msra.mxu0 0
      %708 = vmatpush.bf16.msra.mxu0 0
      %709 = vmatpush.bf16.msra.mxu0 0
      %710 = vmatpush.bf16.msra.mxu0 0
      %711 = vmatpush.bf16.msra.mxu0 %v702
      %712 = vmatmul.bf16.gmra.mxu0 %v678
      %v713 = vpop.f32.mrf.mxu0
      %v714 = vadd.f32 %v598, %v713
      %v715 = vpop.f32.mrf.mxu0
      %v716 = vadd.f32 %v600, %v715
      %717 = vmatmul.bf16.gmra.mxu0 %v681
      %v718 = vpop.f32.mrf.mxu0
      %v719 = vadd.f32 %v603, %v718
      %v720 = vpop.f32.mrf.mxu0
      %v721 = vadd.f32 %v605, %v720
      %722 = vmatmul.bf16.gmra.mxu0 %v684
      %v723 = vpop.f32.mrf.mxu0
      %v724 = vadd.f32 %v608, %v723
      %v725 = vpop.f32.mrf.mxu0
      %v726 = vadd.f32 %v610, %v725
      %727 = vmatmul.bf16.gmra.mxu0 %v687
      %v728 = vpop.f32.mrf.mxu0
      %v729 = vadd.f32 %v613, %v728
      %v730 = vpop.f32.mrf.mxu0
      %v731 = vadd.f32 %v615, %v730
      %732 = vmatmul.bf16.gmra.mxu0 %v690
      %v733 = vpop.f32.mrf.mxu0
      %v734 = vadd.f32 %v618, %v733
      %v735 = vpop.f32.mrf.mxu0
      %v736 = vadd.f32 %v620, %v735
      %737 = vmatmul.bf16.gmra.mxu0 %v693
      %v738 = vpop.f32.mrf.mxu0
      %v739 = vadd.f32 %v623, %v738
      %v740 = vpop.f32.mrf.mxu0
      %v741 = vadd.f32 %v625, %v740
      %742 = vmatmul.bf16.gmra.mxu0 %v696
      %v743 = vpop.f32.mrf.mxu0
      %v744 = vadd.f32 %v628, %v743
      %v745 = vpop.f32.mrf.mxu0
      %v746 = vadd.f32 %v630, %v745
      %747 = vmatmul.bf16.gmra.mxu0 %v699
      %v748 = vpop.f32.mrf.mxu0
      %v749 = vadd.f32 %v633, %v748
      %v750 = vpop.f32.mrf.mxu0
      %v751 = vadd.f32 %v635, %v750
      %752 = vdwg.mxu0
      %vm761 = vcmask 1042432
      %vm762 = vcmask 1046532
      %vm763 = vmor %vm761, %vm762
      %v764 = vrot.slane %v304, 5
      %v765 = vrot.slane %v764, 4
      %v766 = vrot.slane %v305, 5
      %v767 = vsel %vm763, %v765, %v766
      %v768 = vrot.slane %v766, 4
      %v769 = vrot.slane %v306, 5
      %v770 = vsel %vm763, %v768, %v769
      %v771 = vrot.slane %v307, 5
      %v772 = vrot.slane %v771, 4
      %v773 = vrot.slane %v308, 5
      %v774 = vsel %vm763, %v772, %v773
      %v775 = vrot.slane %v773, 4
      %v776 = vrot.slane %v309, 5
      %v777 = vsel %vm763, %v775, %v776
      %v778 = vrot.slane %v310, 5
      %v779 = vrot.slane %v778, 4
      %v780 = vrot.slane %v311, 5
      %v781 = vsel %vm763, %v779, %v780
      %v782 = vrot.slane %v780, 4
      %v783 = vrot.slane %v312, 5
      %v784 = vsel %vm763, %v782, %v783
      %v785 = vrot.slane %v313, 5
      %v786 = vrot.slane %v785, 4
      %v787 = vrot.slane %v314, 5
      %v788 = vsel %vm763, %v786, %v787
      %v789 = vrot.slane %v787, 4
      %v790 = vrot.slane %v315, 5
      %v791 = vsel %vm763, %v789, %v790
      %v792 = vrot.slane %v316, 5
      %v793 = vrot.slane %v792, 4
      %v794 = vrot.slane %v317, 5
      %v795 = vsel %vm763, %v793, %v794
      %v796 = vrot.slane %v794, 4
      %v797 = vrot.slane %v318, 5
      %v798 = vsel %vm763, %v796, %v797
      %v799 = vrot.slane %v319, 5
      %v800 = vrot.slane %v799, 4
      %v801 = vrot.slane %v320, 5
      %v802 = vsel %vm763, %v800, %v801
      %v803 = vrot.slane %v801, 4
      %v804 = vrot.slane %v321, 5
      %v805 = vsel %vm763, %v803, %v804
      %v806 = vrot.slane %v322, 5
      %v807 = vrot.slane %v806, 4
      %v808 = vrot.slane %v323, 5
      %v809 = vsel %vm763, %v807, %v808
      %v810 = vrot.slane %v808, 4
      %v811 = vrot.slane %v324, 5
      %v812 = vsel %vm763, %v810, %v811
      %v813 = vrot.slane %v325, 5
      %v814 = vrot.slane %v813, 4
      %v815 = vrot.slane %v326, 5
      %v816 = vsel %vm763, %v814, %v815
      %v817 = vrot.slane %v815, 4
      %v818 = vrot.slane %v327, 5
      %v819 = vsel %vm763, %v817, %v818
      %s820 = scalar_lea.vmem %s2, 4
      %v821 = vld [vmem:[%s820] sm:$0x3]
      %v822 = vunpack.c.l.b16 %v767
      %v823 = vunpack.c.l.b16 %v770
      %v824 = vunpack.c.l.b16 %v774
      %v825 = vunpack.c.l.b16 %v777
      %v826 = vunpack.c.l.b16 %v781
      %v827 = vunpack.c.l.b16 %v784
      %v828 = vunpack.c.l.b16 %v788
      %v829 = vunpack.c.l.b16 %v791
      %v830 = vunpack.c.l.b16 %v795
      %v831 = vunpack.c.l.b16 %v798
      %v832 = vunpack.c.l.b16 %v802
      %v833 = vunpack.c.l.b16 %v805
      %v834 = vunpack.c.l.b16 %v809
      %v835 = vunpack.c.l.b16 %v812
      %v836 = vunpack.c.l.b16 %v816
      %v837 = vunpack.c.l.b16 %v819
      %v838 = vpack.c.b16 %v823, %v822
      %v839 = vpack.c.b16 %v825, %v824
      %v840 = vpack.c.b16 %v827, %v826
      %v841 = vpack.c.b16 %v829, %v828
      %v842 = vpack.c.b16 %v831, %v830
      %v843 = vpack.c.b16 %v833, %v832
      %v844 = vpack.c.b16 %v835, %v834
      %v845 = vpack.c.b16 %v837, %v836
      %v847 = vsel %vm556, %v838, 0
      %v850 = vsel %vm556, %v839, 0
      %v853 = vsel %vm556, %v840, 0
      %v856 = vsel %vm556, %v841, 0
      %v859 = vsel %vm556, %v842, 0
      %v862 = vsel %vm556, %v843, 0
      %v865 = vsel %vm556, %v844, 0
      %v868 = vsel %vm556, %v845, 0
      %v871 = vand.u32 %v821, %v584
      %873 = vmatpush.bf16.msra.mxu0 0
      %874 = vmatpush.bf16.msra.mxu0 0
      %875 = vmatpush.bf16.msra.mxu0 0
      %876 = vmatpush.bf16.msra.mxu0 0
      %877 = vmatpush.bf16.msra.mxu0 0
      %878 = vmatpush.bf16.msra.mxu0 0
      %879 = vmatpush.bf16.msra.mxu0 0
      %880 = vmatpush.bf16.msra.mxu0 %v871
      %881 = vmatmul.bf16.gmra.mxu0 %v847
      %v882 = vpop.f32.mrf.mxu0
      %v883 = vadd.f32 0.0, %v882
      %v884 = vpop.f32.mrf.mxu0
      %v885 = vadd.f32 0.0, %v884
      %886 = vmatmul.bf16.gmra.mxu0 %v850
      %v887 = vpop.f32.mrf.mxu0
      %v888 = vadd.f32 0.0, %v887
      %v889 = vpop.f32.mrf.mxu0
      %v890 = vadd.f32 0.0, %v889
      %891 = vmatmul.bf16.gmra.mxu0 %v853
      %v892 = vpop.f32.mrf.mxu0
      %v893 = vadd.f32 0.0, %v892
      %v894 = vpop.f32.mrf.mxu0
      %v895 = vadd.f32 0.0, %v894
      %896 = vmatmul.bf16.gmra.mxu0 %v856
      %v897 = vpop.f32.mrf.mxu0
      %v898 = vadd.f32 0.0, %v897
      %v899 = vpop.f32.mrf.mxu0
      %v900 = vadd.f32 0.0, %v899
      %901 = vmatmul.bf16.gmra.mxu0 %v859
      %v902 = vpop.f32.mrf.mxu0
      %v903 = vadd.f32 0.0, %v902
      %v904 = vpop.f32.mrf.mxu0
      %v905 = vadd.f32 0.0, %v904
      %906 = vmatmul.bf16.gmra.mxu0 %v862
      %v907 = vpop.f32.mrf.mxu0
      %v908 = vadd.f32 0.0, %v907
      %v909 = vpop.f32.mrf.mxu0
      %v910 = vadd.f32 0.0, %v909
      %911 = vmatmul.bf16.gmra.mxu0 %v865
      %v912 = vpop.f32.mrf.mxu0
      %v913 = vadd.f32 0.0, %v912
      %v914 = vpop.f32.mrf.mxu0
      %v915 = vadd.f32 0.0, %v914
      %916 = vmatmul.bf16.gmra.mxu0 %v868
      %v917 = vpop.f32.mrf.mxu0
      %v918 = vadd.f32 0.0, %v917
      %v919 = vpop.f32.mrf.mxu0
      %v920 = vadd.f32 0.0, %v919
      %921 = vdwg.mxu0
      %v922 = vadd.f32 %v714, %v883
      %v923 = vadd.f32 %v716, %v885
      %v924 = vadd.f32 %v719, %v888
      %v925 = vadd.f32 %v721, %v890
      %v926 = vadd.f32 %v724, %v893
      %v927 = vadd.f32 %v726, %v895
      %v928 = vadd.f32 %v729, %v898
      %v929 = vadd.f32 %v731, %v900
      %v930 = vadd.f32 %v734, %v903
      %v931 = vadd.f32 %v736, %v905
      %v932 = vadd.f32 %v739, %v908
      %v933 = vadd.f32 %v741, %v910
      %v934 = vadd.f32 %v744, %v913
      %v935 = vadd.f32 %v746, %v915
      %v936 = vadd.f32 %v749, %v918
      %v937 = vadd.f32 %v751, %v920
      %s938 = scalar_lea.vmem %s2, 6
      %v939 = vld [vmem:[%s938] sm:$0x3]
      %v942 = vunpack.c.l.b16 %v328
      %v943 = vunpack.c.l.b16 %v329
      %v944 = vpack.c.b16 %v943, %v942
      %v946 = vsel %vm556, %v944, 0
      %v949 = vand.u32 %v939, %v584
      %951 = vmatpush.bf16.msra.mxu0 0
      %952 = vmatpush.bf16.msra.mxu0 0
      %953 = vmatpush.bf16.msra.mxu0 0
      %954 = vmatpush.bf16.msra.mxu0 0
      %955 = vmatpush.bf16.msra.mxu0 0
      %956 = vmatpush.bf16.msra.mxu0 0
      %957 = vmatpush.bf16.msra.mxu0 0
      %958 = vmatpush.bf16.msra.mxu0 %v949
      %959 = vmatmul.bf16.gmra.mxu0 %v681
      %v960 = vpop.f32.mrf.mxu0
      %v961 = vadd.f32 0.0, %v960
      %v962 = vpop.f32.mrf.mxu0
      %v963 = vadd.f32 0.0, %v962
      %964 = vmatmul.bf16.gmra.mxu0 %v684
      %v965 = vpop.f32.mrf.mxu0
      %v966 = vadd.f32 0.0, %v965
      %v967 = vpop.f32.mrf.mxu0
      %v968 = vadd.f32 0.0, %v967
      %969 = vmatmul.bf16.gmra.mxu0 %v687
      %v970 = vpop.f32.mrf.mxu0
      %v971 = vadd.f32 0.0, %v970
      %v972 = vpop.f32.mrf.mxu0
      %v973 = vadd.f32 0.0, %v972
      %974 = vmatmul.bf16.gmra.mxu0 %v690
      %v975 = vpop.f32.mrf.mxu0
      %v976 = vadd.f32 0.0, %v975
      %v977 = vpop.f32.mrf.mxu0
      %v978 = vadd.f32 0.0, %v977
      %979 = vmatmul.bf16.gmra.mxu0 %v693
      %v980 = vpop.f32.mrf.mxu0
      %v981 = vadd.f32 0.0, %v980
      %v982 = vpop.f32.mrf.mxu0
      %v983 = vadd.f32 0.0, %v982
      %984 = vmatmul.bf16.gmra.mxu0 %v696
      %v985 = vpop.f32.mrf.mxu0
      %v986 = vadd.f32 0.0, %v985
      %v987 = vpop.f32.mrf.mxu0
      %v988 = vadd.f32 0.0, %v987
      %989 = vmatmul.bf16.gmra.mxu0 %v699
      %v990 = vpop.f32.mrf.mxu0
      %v991 = vadd.f32 0.0, %v990
      %v992 = vpop.f32.mrf.mxu0
      %v993 = vadd.f32 0.0, %v992
      %994 = vmatmul.bf16.gmra.mxu0 %v946
      %v995 = vpop.f32.mrf.mxu0
      %v996 = vadd.f32 0.0, %v995
      %v997 = vpop.f32.mrf.mxu0
      %v998 = vadd.f32 0.0, %v997
      %999 = vdwg.mxu0
      %v1000 = vadd.f32 %v922, %v961
      %v1001 = vadd.f32 %v923, %v963
      %v1002 = vadd.f32 %v924, %v966
      %v1003 = vadd.f32 %v925, %v968
      %v1004 = vadd.f32 %v926, %v971
      %v1005 = vadd.f32 %v927, %v973
      %v1006 = vadd.f32 %v928, %v976
      %v1007 = vadd.f32 %v929, %v978
      %v1008 = vadd.f32 %v930, %v981
      %v1009 = vadd.f32 %v931, %v983
      %v1010 = vadd.f32 %v932, %v986
      %v1011 = vadd.f32 %v933, %v988
      %v1012 = vadd.f32 %v934, %v991
      %v1013 = vadd.f32 %v935, %v993
      %v1014 = vadd.f32 %v936, %v996
      %v1015 = vadd.f32 %v937, %v998
      %v1017 = vshrl.u32 %v328, 16
      %v1019 = vrot.slane %v1017, 4
      %v1020 = vshll.u32 %v328, 16
      %v1022 = vrot.slane %v1020, 5
      %v1023 = vor.u32 %v1019, %v1022
      %v1024 = vrot.slane %v1023, 4
      %v1026 = vshll.u32 %v329, 16
      %v1028 = vrot.slane %v1026, 5
      %v1029 = vsel %vm337, %v1024, %v1028
      %v1030 = vshrl.u32 %v329, 16
      %v1032 = vrot.slane %v1030, 4
      %v1033 = vor.u32 %v1032, %v1028
      %v1034 = vrot.slane %v1033, 4
      %v1036 = vshll.u32 %v330, 16
      %v1038 = vrot.slane %v1036, 5
      %v1039 = vsel %vm337, %v1034, %v1038
      %s1040 = scalar_lea.vmem %s2, 8
      %v1041 = vld [vmem:[%s1040] sm:$0x3]
      %v1042 = vunpack.c.l.b16 %v1029
      %v1043 = vunpack.c.l.b16 %v1039
      %v1044 = vpack.c.b16 %v1043, %v1042
      %v1046 = vsel %vm556, %v1044, 0
      %v1049 = vand.u32 %v1041, %v584
      %1051 = vmatpush.bf16.msra.mxu0 0
      %1052 = vmatpush.bf16.msra.mxu0 0
      %1053 = vmatpush.bf16.msra.mxu0 0
      %1054 = vmatpush.bf16.msra.mxu0 0
      %1055 = vmatpush.bf16.msra.mxu0 0
      %1056 = vmatpush.bf16.msra.mxu0 0
      %1057 = vmatpush.bf16.msra.mxu0 0
      %1058 = vmatpush.bf16.msra.mxu0 %v1049
      %1059 = vmatmul.bf16.gmra.mxu0 %v561
      %v1060 = vpop.f32.mrf.mxu0
      %v1061 = vadd.f32 0.0, %v1060
      %v1062 = vpop.f32.mrf.mxu0
      %v1063 = vadd.f32 0.0, %v1062
      %1064 = vmatmul.bf16.gmra.mxu0 %v564
      %v1065 = vpop.f32.mrf.mxu0
      %v1066 = vadd.f32 0.0, %v1065
      %v1067 = vpop.f32.mrf.mxu0
      %v1068 = vadd.f32 0.0, %v1067
      %1069 = vmatmul.bf16.gmra.mxu0 %v567
      %v1070 = vpop.f32.mrf.mxu0
      %v1071 = vadd.f32 0.0, %v1070
      %v1072 = vpop.f32.mrf.mxu0
      %v1073 = vadd.f32 0.0, %v1072
      %1074 = vmatmul.bf16.gmra.mxu0 %v570
      %v1075 = vpop.f32.mrf.mxu0
      %v1076 = vadd.f32 0.0, %v1075
      %v1077 = vpop.f32.mrf.mxu0
      %v1078 = vadd.f32 0.0, %v1077
      %1079 = vmatmul.bf16.gmra.mxu0 %v573
      %v1080 = vpop.f32.mrf.mxu0
      %v1081 = vadd.f32 0.0, %v1080
      %v1082 = vpop.f32.mrf.mxu0
      %v1083 = vadd.f32 0.0, %v1082
      %1084 = vmatmul.bf16.gmra.mxu0 %v576
      %v1085 = vpop.f32.mrf.mxu0
      %v1086 = vadd.f32 0.0, %v1085
      %v1087 = vpop.f32.mrf.mxu0
      %v1088 = vadd.f32 0.0, %v1087
      %1089 = vmatmul.bf16.gmra.mxu0 %v579
      %v1090 = vpop.f32.mrf.mxu0
      %v1091 = vadd.f32 0.0, %v1090
      %v1092 = vpop.f32.mrf.mxu0
      %v1093 = vadd.f32 0.0, %v1092
      %1094 = vmatmul.bf16.gmra.mxu0 %v1046
      %v1095 = vpop.f32.mrf.mxu0
      %v1096 = vadd.f32 0.0, %v1095
      %v1097 = vpop.f32.mrf.mxu0
      %v1098 = vadd.f32 0.0, %v1097
      %1099 = vdwg.mxu0
      %v1100 = vadd.f32 %v1000, %v1061
      %v1101 = vadd.f32 %v1001, %v1063
      %v1102 = vadd.f32 %v1002, %v1066
      %v1103 = vadd.f32 %v1003, %v1068
      %v1104 = vadd.f32 %v1004, %v1071
      %v1105 = vadd.f32 %v1005, %v1073
      %v1106 = vadd.f32 %v1006, %v1076
      %v1107 = vadd.f32 %v1007, %v1078
      %v1108 = vadd.f32 %v1008, %v1081
      %v1109 = vadd.f32 %v1009, %v1083
      %v1110 = vadd.f32 %v1010, %v1086
      %v1111 = vadd.f32 %v1011, %v1088
      %v1112 = vadd.f32 %v1012, %v1091
      %v1113 = vadd.f32 %v1013, %v1093
      %v1114 = vadd.f32 %v1014, %v1096
      %v1115 = vadd.f32 %v1015, %v1098
      %v1117 = vrot.slane %v328, 5
      %v1118 = vrot.slane %v1117, 4
      %v1119 = vrot.slane %v329, 5
      %v1120 = vsel %vm763, %v1118, %v1119
      %v1121 = vrot.slane %v1119, 4
      %v1122 = vrot.slane %v330, 5
      %v1123 = vsel %vm763, %v1121, %v1122
      %s1124 = scalar_lea.vmem %s2, 10
      %v1125 = vld [vmem:[%s1124] sm:$0x3]
      %v1126 = vunpack.c.l.b16 %v1120
      %v1127 = vunpack.c.l.b16 %v1123
      %v1128 = vpack.c.b16 %v1127, %v1126
      %v1130 = vsel %vm556, %v1128, 0
      %v1133 = vand.u32 %v1125, %v584
      %1135 = vmatpush.bf16.msra.mxu0 0
      %1136 = vmatpush.bf16.msra.mxu0 0
      %1137 = vmatpush.bf16.msra.mxu0 0
      %1138 = vmatpush.bf16.msra.mxu0 0
      %1139 = vmatpush.bf16.msra.mxu0 0
      %1140 = vmatpush.bf16.msra.mxu0 0
      %1141 = vmatpush.bf16.msra.mxu0 0
      %1142 = vmatpush.bf16.msra.mxu0 %v1133
      %1143 = vmatmul.bf16.gmra.mxu0 %v850
      %v1144 = vpop.f32.mrf.mxu0
      %v1145 = vadd.f32 0.0, %v1144
      %v1146 = vpop.f32.mrf.mxu0
      %v1147 = vadd.f32 0.0, %v1146
      %1148 = vmatmul.bf16.gmra.mxu0 %v853
      %v1149 = vpop.f32.mrf.mxu0
      %v1150 = vadd.f32 0.0, %v1149
      %v1151 = vpop.f32.mrf.mxu0
      %v1152 = vadd.f32 0.0, %v1151
      %1153 = vmatmul.bf16.gmra.mxu0 %v856
      %v1154 = vpop.f32.mrf.mxu0
      %v1155 = vadd.f32 0.0, %v1154
      %v1156 = vpop.f32.mrf.mxu0
      %v1157 = vadd.f32 0.0, %v1156
      %1158 = vmatmul.bf16.gmra.mxu0 %v859
      %v1159 = vpop.f32.mrf.mxu0
      %v1160 = vadd.f32 0.0, %v1159
      %v1161 = vpop.f32.mrf.mxu0
      %v1162 = vadd.f32 0.0, %v1161
      %1163 = vmatmul.bf16.gmra.mxu0 %v862
      %v1164 = vpop.f32.mrf.mxu0
      %v1165 = vadd.f32 0.0, %v1164
      %v1166 = vpop.f32.mrf.mxu0
      %v1167 = vadd.f32 0.0, %v1166
      %1168 = vmatmul.bf16.gmra.mxu0 %v865
      %v1169 = vpop.f32.mrf.mxu0
      %v1170 = vadd.f32 0.0, %v1169
      %v1171 = vpop.f32.mrf.mxu0
      %v1172 = vadd.f32 0.0, %v1171
      %1173 = vmatmul.bf16.gmra.mxu0 %v868
      %v1174 = vpop.f32.mrf.mxu0
      %v1175 = vadd.f32 0.0, %v1174
      %v1176 = vpop.f32.mrf.mxu0
      %v1177 = vadd.f32 0.0, %v1176
      %1178 = vmatmul.bf16.gmra.mxu0 %v1130
      %v1179 = vpop.f32.mrf.mxu0
      %v1180 = vadd.f32 0.0, %v1179
      %v1181 = vpop.f32.mrf.mxu0
      %v1182 = vadd.f32 0.0, %v1181
      %1183 = vdwg.mxu0
      %v1184 = vadd.f32 %v1100, %v1145
      %v1185 = vadd.f32 %v1101, %v1147
      %v1186 = vadd.f32 %v1102, %v1150
      %v1187 = vadd.f32 %v1103, %v1152
      %v1188 = vadd.f32 %v1104, %v1155
      %v1189 = vadd.f32 %v1105, %v1157
      %v1190 = vadd.f32 %v1106, %v1160
      %v1191 = vadd.f32 %v1107, %v1162
      %v1192 = vadd.f32 %v1108, %v1165
      %v1193 = vadd.f32 %v1109, %v1167
      %v1194 = vadd.f32 %v1110, %v1170
      %v1195 = vadd.f32 %v1111, %v1172
      %v1196 = vadd.f32 %v1112, %v1175
      %v1197 = vadd.f32 %v1113, %v1177
      %v1198 = vadd.f32 %v1114, %v1180
      %v1199 = vadd.f32 %v1115, %v1182
      %s1200 = scalar_lea.vmem %s2, 12
      %v1201 = vld [vmem:[%s1200] sm:$0x3]
      %v1204 = vunpack.c.l.b16 %v331
      %v1205 = vunpack.c.l.b16 %v332
      %v1206 = vpack.c.b16 %v1205, %v1204
      %v1208 = vsel %vm556, %v1206, 0
      %v1211 = vand.u32 %v1201, %v584
      %1213 = vmatpush.bf16.msra.mxu0 0
      %1214 = vmatpush.bf16.msra.mxu0 0
      %1215 = vmatpush.bf16.msra.mxu0 0
      %1216 = vmatpush.bf16.msra.mxu0 0
      %1217 = vmatpush.bf16.msra.mxu0 0
      %1218 = vmatpush.bf16.msra.mxu0 0
      %1219 = vmatpush.bf16.msra.mxu0 0
      %1220 = vmatpush.bf16.msra.mxu0 %v1211
      %1221 = vmatmul.bf16.gmra.mxu0 %v684
      %v1222 = vpop.f32.mrf.mxu0
      %v1223 = vadd.f32 0.0, %v1222
      %v1224 = vpop.f32.mrf.mxu0
      %v1225 = vadd.f32 0.0, %v1224
      %1226 = vmatmul.bf16.gmra.mxu0 %v687
      %v1227 = vpop.f32.mrf.mxu0
      %v1228 = vadd.f32 0.0, %v1227
      %v1229 = vpop.f32.mrf.mxu0
      %v1230 = vadd.f32 0.0, %v1229
      %1231 = vmatmul.bf16.gmra.mxu0 %v690
      %v1232 = vpop.f32.mrf.mxu0
      %v1233 = vadd.f32 0.0, %v1232
      %v1234 = vpop.f32.mrf.mxu0
      %v1235 = vadd.f32 0.0, %v1234
      %1236 = vmatmul.bf16.gmra.mxu0 %v693
      %v1237 = vpop.f32.mrf.mxu0
      %v1238 = vadd.f32 0.0, %v1237
      %v1239 = vpop.f32.mrf.mxu0
      %v1240 = vadd.f32 0.0, %v1239
      %1241 = vmatmul.bf16.gmra.mxu0 %v696
      %v1242 = vpop.f32.mrf.mxu0
      %v1243 = vadd.f32 0.0, %v1242
      %v1244 = vpop.f32.mrf.mxu0
      %v1245 = vadd.f32 0.0, %v1244
      %1246 = vmatmul.bf16.gmra.mxu0 %v699
      %v1247 = vpop.f32.mrf.mxu0
      %v1248 = vadd.f32 0.0, %v1247
      %v1249 = vpop.f32.mrf.mxu0
      %v1250 = vadd.f32 0.0, %v1249
      %1251 = vmatmul.bf16.gmra.mxu0 %v946
      %v1252 = vpop.f32.mrf.mxu0
      %v1253 = vadd.f32 0.0, %v1252
      %v1254 = vpop.f32.mrf.mxu0
      %v1255 = vadd.f32 0.0, %v1254
      %1256 = vmatmul.bf16.gmra.mxu0 %v1208
      %v1257 = vpop.f32.mrf.mxu0
      %v1258 = vadd.f32 0.0, %v1257
      %v1259 = vpop.f32.mrf.mxu0
      %v1260 = vadd.f32 0.0, %v1259
      %1261 = vdwg.mxu0
      %v1262 = vadd.f32 %v1184, %v1223
      %v1263 = vadd.f32 %v1185, %v1225
      %v1264 = vadd.f32 %v1186, %v1228
      %v1265 = vadd.f32 %v1187, %v1230
      %v1266 = vadd.f32 %v1188, %v1233
      %v1267 = vadd.f32 %v1189, %v1235
      %v1268 = vadd.f32 %v1190, %v1238
      %v1269 = vadd.f32 %v1191, %v1240
      %v1270 = vadd.f32 %v1192, %v1243
      %v1271 = vadd.f32 %v1193, %v1245
      %v1272 = vadd.f32 %v1194, %v1248
      %v1273 = vadd.f32 %v1195, %v1250
      %v1274 = vadd.f32 %v1196, %v1253
      %v1275 = vadd.f32 %v1197, %v1255
      %v1276 = vadd.f32 %v1198, %v1258
      %v1277 = vadd.f32 %v1199, %v1260
      %v1279 = vshrl.u32 %v331, 16
      %v1281 = vrot.slane %v1279, 4
      %v1282 = vshll.u32 %v331, 16
      %v1284 = vrot.slane %v1282, 5
      %v1285 = vor.u32 %v1281, %v1284
      %v1286 = vrot.slane %v1285, 4
      %v1288 = vshll.u32 %v332, 16
      %v1290 = vrot.slane %v1288, 5
      %v1291 = vsel %vm337, %v1286, %v1290
      %v1292 = vshrl.u32 %v332, 16
      %v1294 = vrot.slane %v1292, 4
      %v1295 = vor.u32 %v1294, %v1290
      %v1296 = vrot.slane %v1295, 4
      %v1298 = vshll.u32 %v333, 16
      %v1300 = vrot.slane %v1298, 5
      %v1301 = vsel %vm337, %v1296, %v1300
      %s1302 = scalar_lea.vmem %s2, 14
      %v1303 = vld [vmem:[%s1302] sm:$0x3]
      %v1304 = vunpack.c.l.b16 %v1291
      %v1305 = vunpack.c.l.b16 %v1301
      %v1306 = vpack.c.b16 %v1305, %v1304
      %v1308 = vsel %vm556, %v1306, 0
      %v1311 = vand.u32 %v1303, %v584
      %1313 = vmatpush.bf16.msra.mxu0 0
      %1314 = vmatpush.bf16.msra.mxu0 0
      %1315 = vmatpush.bf16.msra.mxu0 0
      %1316 = vmatpush.bf16.msra.mxu0 0
      %1317 = vmatpush.bf16.msra.mxu0 0
      %1318 = vmatpush.bf16.msra.mxu0 0
      %1319 = vmatpush.bf16.msra.mxu0 0
      %1320 = vmatpush.bf16.msra.mxu0 %v1311
      %1321 = vmatmul.bf16.gmra.mxu0 %v564
      %v1322 = vpop.f32.mrf.mxu0
      %v1323 = vadd.f32 0.0, %v1322
      %v1324 = vpop.f32.mrf.mxu0
      %v1325 = vadd.f32 0.0, %v1324
      %1326 = vmatmul.bf16.gmra.mxu0 %v567
      %v1327 = vpop.f32.mrf.mxu0
      %v1328 = vadd.f32 0.0, %v1327
      %v1329 = vpop.f32.mrf.mxu0
      %v1330 = vadd.f32 0.0, %v1329
      %1331 = vmatmul.bf16.gmra.mxu0 %v570
      %v1332 = vpop.f32.mrf.mxu0
      %v1333 = vadd.f32 0.0, %v1332
      %v1334 = vpop.f32.mrf.mxu0
      %v1335 = vadd.f32 0.0, %v1334
      %1336 = vmatmul.bf16.gmra.mxu0 %v573
      %v1337 = vpop.f32.mrf.mxu0
      %v1338 = vadd.f32 0.0, %v1337
      %v1339 = vpop.f32.mrf.mxu0
      %v1340 = vadd.f32 0.0, %v1339
      %1341 = vmatmul.bf16.gmra.mxu0 %v576
      %v1342 = vpop.f32.mrf.mxu0
      %v1343 = vadd.f32 0.0, %v1342
      %v1344 = vpop.f32.mrf.mxu0
      %v1345 = vadd.f32 0.0, %v1344
      %1346 = vmatmul.bf16.gmra.mxu0 %v579
      %v1347 = vpop.f32.mrf.mxu0
      %v1348 = vadd.f32 0.0, %v1347
      %v1349 = vpop.f32.mrf.mxu0
      %v1350 = vadd.f32 0.0, %v1349
      %1351 = vmatmul.bf16.gmra.mxu0 %v1046
      %v1352 = vpop.f32.mrf.mxu0
      %v1353 = vadd.f32 0.0, %v1352
      %v1354 = vpop.f32.mrf.mxu0
      %v1355 = vadd.f32 0.0, %v1354
      %1356 = vmatmul.bf16.gmra.mxu0 %v1308
      %v1357 = vpop.f32.mrf.mxu0
      %v1358 = vadd.f32 0.0, %v1357
      %v1359 = vpop.f32.mrf.mxu0
      %v1360 = vadd.f32 0.0, %v1359
      %1361 = vdwg.mxu0
      %v1362 = vadd.f32 %v1262, %v1323
      %v1363 = vadd.f32 %v1263, %v1325
      %v1364 = vadd.f32 %v1264, %v1328
      %v1365 = vadd.f32 %v1265, %v1330
      %v1366 = vadd.f32 %v1266, %v1333
      %v1367 = vadd.f32 %v1267, %v1335
      %v1368 = vadd.f32 %v1268, %v1338
      %v1369 = vadd.f32 %v1269, %v1340
      %v1370 = vadd.f32 %v1270, %v1343
      %v1371 = vadd.f32 %v1271, %v1345
      %v1372 = vadd.f32 %v1272, %v1348
      %v1373 = vadd.f32 %v1273, %v1350
      %v1374 = vadd.f32 %v1274, %v1353
      %v1375 = vadd.f32 %v1275, %v1355
      %v1376 = vadd.f32 %v1276, %v1358
      %v1377 = vadd.f32 %v1277, %v1360
      %v1379 = vrot.slane %v331, 5
      %v1380 = vrot.slane %v1379, 4
      %v1381 = vrot.slane %v332, 5
      %v1382 = vsel %vm763, %v1380, %v1381
      %v1383 = vrot.slane %v1381, 4
      %v1384 = vrot.slane %v333, 5
      %v1385 = vsel %vm763, %v1383, %v1384
      %s1386 = scalar_lea.vmem %s2, 16
      %v1387 = vld [vmem:[%s1386] sm:$0x3]
      %v1388 = vunpack.c.l.b16 %v1382
      %v1389 = vunpack.c.l.b16 %v1385
      %v1390 = vpack.c.b16 %v1389, %v1388
      %v1392 = vsel %vm556, %v1390, 0
      %v1395 = vand.u32 %v1387, %v584
      %1397 = vmatpush.bf16.msra.mxu0 0
      %1398 = vmatpush.bf16.msra.mxu0 0
      %1399 = vmatpush.bf16.msra.mxu0 0
      %1400 = vmatpush.bf16.msra.mxu0 0
      %1401 = vmatpush.bf16.msra.mxu0 0
      %1402 = vmatpush.bf16.msra.mxu0 0
      %1403 = vmatpush.bf16.msra.mxu0 0
      %1404 = vmatpush.bf16.msra.mxu0 %v1395
      %1405 = vmatmul.bf16.gmra.mxu0 %v853
      %v1406 = vpop.f32.mrf.mxu0
      %v1407 = vadd.f32 0.0, %v1406
      %v1408 = vpop.f32.mrf.mxu0
      %v1409 = vadd.f32 0.0, %v1408
      %1410 = vmatmul.bf16.gmra.mxu0 %v856
      %v1411 = vpop.f32.mrf.mxu0
      %v1412 = vadd.f32 0.0, %v1411
      %v1413 = vpop.f32.mrf.mxu0
      %v1414 = vadd.f32 0.0, %v1413
      %1415 = vmatmul.bf16.gmra.mxu0 %v859
      %v1416 = vpop.f32.mrf.mxu0
      %v1417 = vadd.f32 0.0, %v1416
      %v1418 = vpop.f32.mrf.mxu0
      %v1419 = vadd.f32 0.0, %v1418
      %1420 = vmatmul.bf16.gmra.mxu0 %v862
      %v1421 = vpop.f32.mrf.mxu0
      %v1422 = vadd.f32 0.0, %v1421
      %v1423 = vpop.f32.mrf.mxu0
      %v1424 = vadd.f32 0.0, %v1423
      %1425 = vmatmul.bf16.gmra.mxu0 %v865
      %v1426 = vpop.f32.mrf.mxu0
      %v1427 = vadd.f32 0.0, %v1426
      %v1428 = vpop.f32.mrf.mxu0
      %v1429 = vadd.f32 0.0, %v1428
      %1430 = vmatmul.bf16.gmra.mxu0 %v868
      %v1431 = vpop.f32.mrf.mxu0
      %v1432 = vadd.f32 0.0, %v1431
      %v1433 = vpop.f32.mrf.mxu0
      %v1434 = vadd.f32 0.0, %v1433
      %1435 = vmatmul.bf16.gmra.mxu0 %v1130
      %v1436 = vpop.f32.mrf.mxu0
      %v1437 = vadd.f32 0.0, %v1436
      %v1438 = vpop.f32.mrf.mxu0
      %v1439 = vadd.f32 0.0, %v1438
      %1440 = vmatmul.bf16.gmra.mxu0 %v1392
      %v1441 = vpop.f32.mrf.mxu0
      %v1442 = vadd.f32 0.0, %v1441
      %v1443 = vpop.f32.mrf.mxu0
      %v1444 = vadd.f32 0.0, %v1443
      %1445 = vdwg.mxu0
      %v1446 = vadd.f32 %v1362, %v1407
      %v1447 = vadd.f32 %v1363, %v1409
      %v1448 = vadd.f32 %v1364, %v1412
      %v1449 = vadd.f32 %v1365, %v1414
      %v1450 = vadd.f32 %v1366, %v1417
      %v1451 = vadd.f32 %v1367, %v1419
      %v1452 = vadd.f32 %v1368, %v1422
      %v1453 = vadd.f32 %v1369, %v1424
      %v1454 = vadd.f32 %v1370, %v1427
      %v1455 = vadd.f32 %v1371, %v1429
      %v1456 = vadd.f32 %v1372, %v1432
      %v1457 = vadd.f32 %v1373, %v1434
      %v1458 = vadd.f32 %v1374, %v1437
      %v1459 = vadd.f32 %v1375, %v1439
      %v1460 = vadd.f32 %v1376, %v1442
      %v1461 = vadd.f32 %v1377, %v1444
      %s1462 = scalar_lea.vmem %s258, %s272
      %v1463 = vld [vmem:[%s1462] sm:$0xff]
      %v1464 = vld [vmem:[%s1462 + $0x8] sm:$0xff]
      %v1465 = vld [vmem:[%s1462 + $0x10] sm:$0x3]
      %v1466 = vld [vmem:[%s1462 + $0x18] sm:$0xff]
      %v1467 = vld [vmem:[%s1462 + $0x20] sm:$0xff]
      %v1468 = vld [vmem:[%s1462 + $0x28] sm:$0x3]
      %v1469 = vld [vmem:[%s1462 + $0x30] sm:$0xff]
      %v1470 = vld [vmem:[%s1462 + $0x38] sm:$0xff]
      %v1471 = vld [vmem:[%s1462 + $0x40] sm:$0x3]
      %v1472 = vld [vmem:[%s1462 + $0x48] sm:$0xff]
      %v1473 = vld [vmem:[%s1462 + $0x50] sm:$0xff]
      %v1474 = vld [vmem:[%s1462 + $0x58] sm:$0x3]
      %v1475 = vld [vmem:[%s1462 + $0x60] sm:$0xff]
      %v1476 = vld [vmem:[%s1462 + $0x68] sm:$0xff]
      %v1477 = vld [vmem:[%s1462 + $0x70] sm:$0x3]
      %v1478 = vld [vmem:[%s1462 + $0x78] sm:$0xff]
      %v1479 = vld [vmem:[%s1462 + $0x80] sm:$0xff]
      %v1480 = vld [vmem:[%s1462 + $0x88] sm:$0x3]
      %v1481 = vld [vmem:[%s1462 + $0x90] sm:$0xff]
      %v1482 = vld [vmem:[%s1462 + $0x98] sm:$0xff]
      %v1483 = vld [vmem:[%s1462 + $0xa0] sm:$0x3]
      %v1484 = vld [vmem:[%s1462 + $0xa8] sm:$0xff]
      %v1485 = vld [vmem:[%s1462 + $0xb0] sm:$0xff]
      %v1486 = vld [vmem:[%s1462 + $0xb8] sm:$0x3]
      %v1487 = vld [vmem:[%s1462 + $0xc0] sm:$0xff]
      %v1488 = vld [vmem:[%s1462 + $0xc8] sm:$0xff]
      %v1489 = vld [vmem:[%s1462 + $0xd0] sm:$0x3]
      %v1490 = vld [vmem:[%s1462 + $0xd8] sm:$0xff]
      %v1491 = vld [vmem:[%s1462 + $0xe0] sm:$0xff]
      %v1492 = vld [vmem:[%s1462 + $0xe8] sm:$0x3]
      %v1493 = vpack.c.bf16 %v1463, %v1463
      %v1494 = vpack.c.bf16 %v1464, %v1464
      %v1495 = vpack.c.bf16 %v1465, %v1465
      %v1496 = vpack.c.bf16 %v1466, %v1466
      %v1497 = vpack.c.bf16 %v1467, %v1467
      %v1498 = vpack.c.bf16 %v1468, %v1468
      %v1499 = vpack.c.bf16 %v1469, %v1469
      %v1500 = vpack.c.bf16 %v1470, %v1470
      %v1501 = vpack.c.bf16 %v1471, %v1471
      %v1502 = vpack.c.bf16 %v1472, %v1472
      %v1503 = vpack.c.bf16 %v1473, %v1473
      %v1504 = vpack.c.bf16 %v1474, %v1474
      %v1505 = vpack.c.bf16 %v1475, %v1475
      %v1506 = vpack.c.bf16 %v1476, %v1476
      %v1507 = vpack.c.bf16 %v1477, %v1477
      %v1508 = vpack.c.bf16 %v1478, %v1478
      %v1509 = vpack.c.bf16 %v1479, %v1479
      %v1510 = vpack.c.bf16 %v1480, %v1480
      %v1511 = vpack.c.bf16 %v1481, %v1481
      %v1512 = vpack.c.bf16 %v1482, %v1482
      %v1513 = vpack.c.bf16 %v1483, %v1483
      %v1514 = vpack.c.bf16 %v1484, %v1484
      %v1515 = vpack.c.bf16 %v1485, %v1485
      %v1516 = vpack.c.bf16 %v1486, %v1486
      %v1517 = vpack.c.bf16 %v1487, %v1487
      %v1518 = vpack.c.bf16 %v1488, %v1488
      %v1519 = vpack.c.bf16 %v1489, %v1489
      %v1520 = vpack.c.bf16 %v1490, %v1490
      %v1521 = vpack.c.bf16 %v1491, %v1491
      %v1522 = vpack.c.bf16 %v1492, %v1492
      %v1523 = vld [vmem:[%s3] sm:$0x3]
      %v1525 = vshrl.u32 %v1493, 16
      %v1527 = vrot.slane %v1525, 4
      %v1528 = vshll.u32 %v1493, 16
      %v1530 = vrot.slane %v1528, 5
      %v1531 = vor.u32 %v1527, %v1530
      %v1532 = vrot.slane %v1531, 4
      %v1534 = vshll.u32 %v1494, 16
      %v1536 = vrot.slane %v1534, 5
      %v1537 = vsel %vm337, %v1532, %v1536
      %v1538 = vshrl.u32 %v1494, 16
      %v1540 = vrot.slane %v1538, 4
      %v1541 = vor.u32 %v1540, %v1536
      %v1542 = vrot.slane %v1541, 4
      %v1544 = vshll.u32 %v1495, 16
      %v1546 = vrot.slane %v1544, 5
      %v1547 = vsel %vm337, %v1542, %v1546
      %v1549 = vshrl.u32 %v1496, 16
      %v1551 = vrot.slane %v1549, 4
      %v1552 = vshll.u32 %v1496, 16
      %v1554 = vrot.slane %v1552, 5
      %v1555 = vor.u32 %v1551, %v1554
      %v1556 = vrot.slane %v1555, 4
      %v1558 = vshll.u32 %v1497, 16
      %v1560 = vrot.slane %v1558, 5
      %v1561 = vsel %vm337, %v1556, %v1560
      %v1562 = vshrl.u32 %v1497, 16
      %v1564 = vrot.slane %v1562, 4
      %v1565 = vor.u32 %v1564, %v1560
      %v1566 = vrot.slane %v1565, 4
      %v1568 = vshll.u32 %v1498, 16
      %v1570 = vrot.slane %v1568, 5
      %v1571 = vsel %vm337, %v1566, %v1570
      %v1573 = vshrl.u32 %v1499, 16
      %v1575 = vrot.slane %v1573, 4
      %v1576 = vshll.u32 %v1499, 16
      %v1578 = vrot.slane %v1576, 5
      %v1579 = vor.u32 %v1575, %v1578
      %v1580 = vrot.slane %v1579, 4
      %v1582 = vshll.u32 %v1500, 16
      %v1584 = vrot.slane %v1582, 5
      %v1585 = vsel %vm337, %v1580, %v1584
      %v1586 = vshrl.u32 %v1500, 16
      %v1588 = vrot.slane %v1586, 4
      %v1589 = vor.u32 %v1588, %v1584
      %v1590 = vrot.slane %v1589, 4
      %v1592 = vshll.u32 %v1501, 16
      %v1594 = vrot.slane %v1592, 5
      %v1595 = vsel %vm337, %v1590, %v1594
      %v1597 = vshrl.u32 %v1502, 16
      %v1599 = vrot.slane %v1597, 4
      %v1600 = vshll.u32 %v1502, 16
      %v1602 = vrot.slane %v1600, 5
      %v1603 = vor.u32 %v1599, %v1602
      %v1604 = vrot.slane %v1603, 4
      %v1606 = vshll.u32 %v1503, 16
      %v1608 = vrot.slane %v1606, 5
      %v1609 = vsel %vm337, %v1604, %v1608
      %v1610 = vshrl.u32 %v1503, 16
      %v1612 = vrot.slane %v1610, 4
      %v1613 = vor.u32 %v1612, %v1608
      %v1614 = vrot.slane %v1613, 4
      %v1616 = vshll.u32 %v1504, 16
      %v1618 = vrot.slane %v1616, 5
      %v1619 = vsel %vm337, %v1614, %v1618
      %v1621 = vshrl.u32 %v1505, 16
      %v1623 = vrot.slane %v1621, 4
      %v1624 = vshll.u32 %v1505, 16
      %v1626 = vrot.slane %v1624, 5
      %v1627 = vor.u32 %v1623, %v1626
      %v1628 = vrot.slane %v1627, 4
      %v1630 = vshll.u32 %v1506, 16
      %v1632 = vrot.slane %v1630, 5
      %v1633 = vsel %vm337, %v1628, %v1632
      %v1634 = vshrl.u32 %v1506, 16
      %v1636 = vrot.slane %v1634, 4
      %v1637 = vor.u32 %v1636, %v1632
      %v1638 = vrot.slane %v1637, 4
      %v1640 = vshll.u32 %v1507, 16
      %v1642 = vrot.slane %v1640, 5
      %v1643 = vsel %vm337, %v1638, %v1642
      %v1645 = vshrl.u32 %v1508, 16
      %v1647 = vrot.slane %v1645, 4
      %v1648 = vshll.u32 %v1508, 16
      %v1650 = vrot.slane %v1648, 5
      %v1651 = vor.u32 %v1647, %v1650
      %v1652 = vrot.slane %v1651, 4
      %v1654 = vshll.u32 %v1509, 16
      %v1656 = vrot.slane %v1654, 5
      %v1657 = vsel %vm337, %v1652, %v1656
      %v1658 = vshrl.u32 %v1509, 16
      %v1660 = vrot.slane %v1658, 4
      %v1661 = vor.u32 %v1660, %v1656
      %v1662 = vrot.slane %v1661, 4
      %v1664 = vshll.u32 %v1510, 16
      %v1666 = vrot.slane %v1664, 5
      %v1667 = vsel %vm337, %v1662, %v1666
      %v1669 = vshrl.u32 %v1511, 16
      %v1671 = vrot.slane %v1669, 4
      %v1672 = vshll.u32 %v1511, 16
      %v1674 = vrot.slane %v1672, 5
      %v1675 = vor.u32 %v1671, %v1674
      %v1676 = vrot.slane %v1675, 4
      %v1678 = vshll.u32 %v1512, 16
      %v1680 = vrot.slane %v1678, 5
      %v1681 = vsel %vm337, %v1676, %v1680
      %v1682 = vshrl.u32 %v1512, 16
      %v1684 = vrot.slane %v1682, 4
      %v1685 = vor.u32 %v1684, %v1680
      %v1686 = vrot.slane %v1685, 4
      %v1688 = vshll.u32 %v1513, 16
      %v1690 = vrot.slane %v1688, 5
      %v1691 = vsel %vm337, %v1686, %v1690
      %v1693 = vshrl.u32 %v1514, 16
      %v1695 = vrot.slane %v1693, 4
      %v1696 = vshll.u32 %v1514, 16
      %v1698 = vrot.slane %v1696, 5
      %v1699 = vor.u32 %v1695, %v1698
      %v1700 = vrot.slane %v1699, 4
      %v1702 = vshll.u32 %v1515, 16
      %v1704 = vrot.slane %v1702, 5
      %v1705 = vsel %vm337, %v1700, %v1704
      %v1706 = vshrl.u32 %v1515, 16
      %v1708 = vrot.slane %v1706, 4
      %v1709 = vor.u32 %v1708, %v1704
      %v1710 = vrot.slane %v1709, 4
      %v1712 = vshll.u32 %v1516, 16
      %v1714 = vrot.slane %v1712, 5
      %v1715 = vsel %vm337, %v1710, %v1714
      %s1716 = scalar_lea.vmem %s3, 2
      %v1717 = vld [vmem:[%s1716] sm:$0x3]
      %v1718 = vunpack.c.l.b16 %v1537
      %v1719 = vunpack.c.l.b16 %v1547
      %v1720 = vunpack.c.l.b16 %v1561
      %v1721 = vunpack.c.l.b16 %v1571
      %v1722 = vunpack.c.l.b16 %v1585
      %v1723 = vunpack.c.l.b16 %v1595
      %v1724 = vunpack.c.l.b16 %v1609
      %v1725 = vunpack.c.l.b16 %v1619
      %v1726 = vunpack.c.l.b16 %v1633
      %v1727 = vunpack.c.l.b16 %v1643
      %v1728 = vunpack.c.l.b16 %v1657
      %v1729 = vunpack.c.l.b16 %v1667
      %v1730 = vunpack.c.l.b16 %v1681
      %v1731 = vunpack.c.l.b16 %v1691
      %v1732 = vunpack.c.l.b16 %v1705
      %v1733 = vunpack.c.l.b16 %v1715
      %v1734 = vpack.c.b16 %v1719, %v1718
      %v1735 = vpack.c.b16 %v1721, %v1720
      %v1736 = vpack.c.b16 %v1723, %v1722
      %v1737 = vpack.c.b16 %v1725, %v1724
      %v1738 = vpack.c.b16 %v1727, %v1726
      %v1739 = vpack.c.b16 %v1729, %v1728
      %v1740 = vpack.c.b16 %v1731, %v1730
      %v1741 = vpack.c.b16 %v1733, %v1732
      %v1743 = vsel %vm556, %v1734, 0
      %v1746 = vsel %vm556, %v1735, 0
      %v1749 = vsel %vm556, %v1736, 0
      %v1752 = vsel %vm556, %v1737, 0
      %v1755 = vsel %vm556, %v1738, 0
      %v1758 = vsel %vm556, %v1739, 0
      %v1761 = vsel %vm556, %v1740, 0
      %v1764 = vsel %vm556, %v1741, 0
      %v1767 = vand.u32 %v1717, %v584
      %1769 = vmatpush.bf16.msra.mxu0 0
      %1770 = vmatpush.bf16.msra.mxu0 0
      %1771 = vmatpush.bf16.msra.mxu0 0
      %1772 = vmatpush.bf16.msra.mxu0 0
      %1773 = vmatpush.bf16.msra.mxu0 0
      %1774 = vmatpush.bf16.msra.mxu0 0
      %1775 = vmatpush.bf16.msra.mxu0 0
      %1776 = vmatpush.bf16.msra.mxu0 %v1767
      %1777 = vmatmul.bf16.gmra.mxu0 %v1743
      %v1778 = vpop.f32.mrf.mxu0
      %v1779 = vadd.f32 0.0, %v1778
      %v1780 = vpop.f32.mrf.mxu0
      %v1781 = vadd.f32 0.0, %v1780
      %1782 = vmatmul.bf16.gmra.mxu0 %v1746
      %v1783 = vpop.f32.mrf.mxu0
      %v1784 = vadd.f32 0.0, %v1783
      %v1785 = vpop.f32.mrf.mxu0
      %v1786 = vadd.f32 0.0, %v1785
      %1787 = vmatmul.bf16.gmra.mxu0 %v1749
      %v1788 = vpop.f32.mrf.mxu0
      %v1789 = vadd.f32 0.0, %v1788
      %v1790 = vpop.f32.mrf.mxu0
      %v1791 = vadd.f32 0.0, %v1790
      %1792 = vmatmul.bf16.gmra.mxu0 %v1752
      %v1793 = vpop.f32.mrf.mxu0
      %v1794 = vadd.f32 0.0, %v1793
      %v1795 = vpop.f32.mrf.mxu0
      %v1796 = vadd.f32 0.0, %v1795
      %1797 = vmatmul.bf16.gmra.mxu0 %v1755
      %v1798 = vpop.f32.mrf.mxu0
      %v1799 = vadd.f32 0.0, %v1798
      %v1800 = vpop.f32.mrf.mxu0
      %v1801 = vadd.f32 0.0, %v1800
      %1802 = vmatmul.bf16.gmra.mxu0 %v1758
      %v1803 = vpop.f32.mrf.mxu0
      %v1804 = vadd.f32 0.0, %v1803
      %v1805 = vpop.f32.mrf.mxu0
      %v1806 = vadd.f32 0.0, %v1805
      %1807 = vmatmul.bf16.gmra.mxu0 %v1761
      %v1808 = vpop.f32.mrf.mxu0
      %v1809 = vadd.f32 0.0, %v1808
      %v1810 = vpop.f32.mrf.mxu0
      %v1811 = vadd.f32 0.0, %v1810
      %1812 = vmatmul.bf16.gmra.mxu0 %v1764
      %v1813 = vpop.f32.mrf.mxu0
      %v1814 = vadd.f32 0.0, %v1813
      %v1815 = vpop.f32.mrf.mxu0
      %v1816 = vadd.f32 0.0, %v1815
      %1817 = vdwg.mxu0
      %v1834 = vunpack.c.l.b16 %v1493
      %v1835 = vunpack.c.l.b16 %v1494
      %v1836 = vunpack.c.l.b16 %v1496
      %v1837 = vunpack.c.l.b16 %v1497
      %v1838 = vunpack.c.l.b16 %v1499
      %v1839 = vunpack.c.l.b16 %v1500
      %v1840 = vunpack.c.l.b16 %v1502
      %v1841 = vunpack.c.l.b16 %v1503
      %v1842 = vunpack.c.l.b16 %v1505
      %v1843 = vunpack.c.l.b16 %v1506
      %v1844 = vunpack.c.l.b16 %v1508
      %v1845 = vunpack.c.l.b16 %v1509
      %v1846 = vunpack.c.l.b16 %v1511
      %v1847 = vunpack.c.l.b16 %v1512
      %v1848 = vunpack.c.l.b16 %v1514
      %v1849 = vunpack.c.l.b16 %v1515
      %v1850 = vpack.c.b16 %v1835, %v1834
      %v1851 = vpack.c.b16 %v1837, %v1836
      %v1852 = vpack.c.b16 %v1839, %v1838
      %v1853 = vpack.c.b16 %v1841, %v1840
      %v1854 = vpack.c.b16 %v1843, %v1842
      %v1855 = vpack.c.b16 %v1845, %v1844
      %v1856 = vpack.c.b16 %v1847, %v1846
      %v1857 = vpack.c.b16 %v1849, %v1848
      %v1859 = vsel %vm556, %v1850, 0
      %v1862 = vsel %vm556, %v1851, 0
      %v1865 = vsel %vm556, %v1852, 0
      %v1868 = vsel %vm556, %v1853, 0
      %v1871 = vsel %vm556, %v1854, 0
      %v1874 = vsel %vm556, %v1855, 0
      %v1877 = vsel %vm556, %v1856, 0
      %v1880 = vsel %vm556, %v1857, 0
      %v1883 = vand.u32 %v1523, %v584
      %1885 = vmatpush.bf16.msra.mxu0 0
      %1886 = vmatpush.bf16.msra.mxu0 0
      %1887 = vmatpush.bf16.msra.mxu0 0
      %1888 = vmatpush.bf16.msra.mxu0 0
      %1889 = vmatpush.bf16.msra.mxu0 0
      %1890 = vmatpush.bf16.msra.mxu0 0
      %1891 = vmatpush.bf16.msra.mxu0 0
      %1892 = vmatpush.bf16.msra.mxu0 %v1883
      %1893 = vmatmul.bf16.gmra.mxu0 %v1859
      %v1894 = vpop.f32.mrf.mxu0
      %v1895 = vadd.f32 %v1779, %v1894
      %v1896 = vpop.f32.mrf.mxu0
      %v1897 = vadd.f32 %v1781, %v1896
      %1898 = vmatmul.bf16.gmra.mxu0 %v1862
      %v1899 = vpop.f32.mrf.mxu0
      %v1900 = vadd.f32 %v1784, %v1899
      %v1901 = vpop.f32.mrf.mxu0
      %v1902 = vadd.f32 %v1786, %v1901
      %1903 = vmatmul.bf16.gmra.mxu0 %v1865
      %v1904 = vpop.f32.mrf.mxu0
      %v1905 = vadd.f32 %v1789, %v1904
      %v1906 = vpop.f32.mrf.mxu0
      %v1907 = vadd.f32 %v1791, %v1906
      %1908 = vmatmul.bf16.gmra.mxu0 %v1868
      %v1909 = vpop.f32.mrf.mxu0
      %v1910 = vadd.f32 %v1794, %v1909
      %v1911 = vpop.f32.mrf.mxu0
      %v1912 = vadd.f32 %v1796, %v1911
      %1913 = vmatmul.bf16.gmra.mxu0 %v1871
      %v1914 = vpop.f32.mrf.mxu0
      %v1915 = vadd.f32 %v1799, %v1914
      %v1916 = vpop.f32.mrf.mxu0
      %v1917 = vadd.f32 %v1801, %v1916
      %1918 = vmatmul.bf16.gmra.mxu0 %v1874
      %v1919 = vpop.f32.mrf.mxu0
      %v1920 = vadd.f32 %v1804, %v1919
      %v1921 = vpop.f32.mrf.mxu0
      %v1922 = vadd.f32 %v1806, %v1921
      %1923 = vmatmul.bf16.gmra.mxu0 %v1877
      %v1924 = vpop.f32.mrf.mxu0
      %v1925 = vadd.f32 %v1809, %v1924
      %v1926 = vpop.f32.mrf.mxu0
      %v1927 = vadd.f32 %v1811, %v1926
      %1928 = vmatmul.bf16.gmra.mxu0 %v1880
      %v1929 = vpop.f32.mrf.mxu0
      %v1930 = vadd.f32 %v1814, %v1929
      %v1931 = vpop.f32.mrf.mxu0
      %v1932 = vadd.f32 %v1816, %v1931
      %1933 = vdwg.mxu0
      %v1942 = vrot.slane %v1493, 5
      %v1943 = vrot.slane %v1942, 4
      %v1944 = vrot.slane %v1494, 5
      %v1945 = vsel %vm763, %v1943, %v1944
      %v1946 = vrot.slane %v1944, 4
      %v1947 = vrot.slane %v1495, 5
      %v1948 = vsel %vm763, %v1946, %v1947
      %v1949 = vrot.slane %v1496, 5
      %v1950 = vrot.slane %v1949, 4
      %v1951 = vrot.slane %v1497, 5
      %v1952 = vsel %vm763, %v1950, %v1951
      %v1953 = vrot.slane %v1951, 4
      %v1954 = vrot.slane %v1498, 5
      %v1955 = vsel %vm763, %v1953, %v1954
      %v1956 = vrot.slane %v1499, 5
      %v1957 = vrot.slane %v1956, 4
      %v1958 = vrot.slane %v1500, 5
      %v1959 = vsel %vm763, %v1957, %v1958
      %v1960 = vrot.slane %v1958, 4
      %v1961 = vrot.slane %v1501, 5
      %v1962 = vsel %vm763, %v1960, %v1961
      %v1963 = vrot.slane %v1502, 5
      %v1964 = vrot.slane %v1963, 4
      %v1965 = vrot.slane %v1503, 5
      %v1966 = vsel %vm763, %v1964, %v1965
      %v1967 = vrot.slane %v1965, 4
      %v1968 = vrot.slane %v1504, 5
      %v1969 = vsel %vm763, %v1967, %v1968
      %v1970 = vrot.slane %v1505, 5
      %v1971 = vrot.slane %v1970, 4
      %v1972 = vrot.slane %v1506, 5
      %v1973 = vsel %vm763, %v1971, %v1972
      %v1974 = vrot.slane %v1972, 4
      %v1975 = vrot.slane %v1507, 5
      %v1976 = vsel %vm763, %v1974, %v1975
      %v1977 = vrot.slane %v1508, 5
      %v1978 = vrot.slane %v1977, 4
      %v1979 = vrot.slane %v1509, 5
      %v1980 = vsel %vm763, %v1978, %v1979
      %v1981 = vrot.slane %v1979, 4
      %v1982 = vrot.slane %v1510, 5
      %v1983 = vsel %vm763, %v1981, %v1982
      %v1984 = vrot.slane %v1511, 5
      %v1985 = vrot.slane %v1984, 4
      %v1986 = vrot.slane %v1512, 5
      %v1987 = vsel %vm763, %v1985, %v1986
      %v1988 = vrot.slane %v1986, 4
      %v1989 = vrot.slane %v1513, 5
      %v1990 = vsel %vm763, %v1988, %v1989
      %v1991 = vrot.slane %v1514, 5
      %v1992 = vrot.slane %v1991, 4
      %v1993 = vrot.slane %v1515, 5
      %v1994 = vsel %vm763, %v1992, %v1993
      %v1995 = vrot.slane %v1993, 4
      %v1996 = vrot.slane %v1516, 5
      %v1997 = vsel %vm763, %v1995, %v1996
      %s1998 = scalar_lea.vmem %s3, 4
      %v1999 = vld [vmem:[%s1998] sm:$0x3]
      %v2000 = vunpack.c.l.b16 %v1945
      %v2001 = vunpack.c.l.b16 %v1948
      %v2002 = vunpack.c.l.b16 %v1952
      %v2003 = vunpack.c.l.b16 %v1955
      %v2004 = vunpack.c.l.b16 %v1959
      %v2005 = vunpack.c.l.b16 %v1962
      %v2006 = vunpack.c.l.b16 %v1966
      %v2007 = vunpack.c.l.b16 %v1969
      %v2008 = vunpack.c.l.b16 %v1973
      %v2009 = vunpack.c.l.b16 %v1976
      %v2010 = vunpack.c.l.b16 %v1980
      %v2011 = vunpack.c.l.b16 %v1983
      %v2012 = vunpack.c.l.b16 %v1987
      %v2013 = vunpack.c.l.b16 %v1990
      %v2014 = vunpack.c.l.b16 %v1994
      %v2015 = vunpack.c.l.b16 %v1997
      %v2016 = vpack.c.b16 %v2001, %v2000
      %v2017 = vpack.c.b16 %v2003, %v2002
      %v2018 = vpack.c.b16 %v2005, %v2004
      %v2019 = vpack.c.b16 %v2007, %v2006
      %v2020 = vpack.c.b16 %v2009, %v2008
      %v2021 = vpack.c.b16 %v2011, %v2010
      %v2022 = vpack.c.b16 %v2013, %v2012
      %v2023 = vpack.c.b16 %v2015, %v2014
      %v2025 = vsel %vm556, %v2016, 0
      %v2028 = vsel %vm556, %v2017, 0
      %v2031 = vsel %vm556, %v2018, 0
      %v2034 = vsel %vm556, %v2019, 0
      %v2037 = vsel %vm556, %v2020, 0
      %v2040 = vsel %vm556, %v2021, 0
      %v2043 = vsel %vm556, %v2022, 0
      %v2046 = vsel %vm556, %v2023, 0
      %v2049 = vand.u32 %v1999, %v584
      %2051 = vmatpush.bf16.msra.mxu0 0
      %2052 = vmatpush.bf16.msra.mxu0 0
      %2053 = vmatpush.bf16.msra.mxu0 0
      %2054 = vmatpush.bf16.msra.mxu0 0
      %2055 = vmatpush.bf16.msra.mxu0 0
      %2056 = vmatpush.bf16.msra.mxu0 0
      %2057 = vmatpush.bf16.msra.mxu0 0
      %2058 = vmatpush.bf16.msra.mxu0 %v2049
      %2059 = vmatmul.bf16.gmra.mxu0 %v2025
      %v2060 = vpop.f32.mrf.mxu0
      %v2061 = vadd.f32 0.0, %v2060
      %v2062 = vpop.f32.mrf.mxu0
      %v2063 = vadd.f32 0.0, %v2062
      %2064 = vmatmul.bf16.gmra.mxu0 %v2028
      %v2065 = vpop.f32.mrf.mxu0
      %v2066 = vadd.f32 0.0, %v2065
      %v2067 = vpop.f32.mrf.mxu0
      %v2068 = vadd.f32 0.0, %v2067
      %2069 = vmatmul.bf16.gmra.mxu0 %v2031
      %v2070 = vpop.f32.mrf.mxu0
      %v2071 = vadd.f32 0.0, %v2070
      %v2072 = vpop.f32.mrf.mxu0
      %v2073 = vadd.f32 0.0, %v2072
      %2074 = vmatmul.bf16.gmra.mxu0 %v2034
      %v2075 = vpop.f32.mrf.mxu0
      %v2076 = vadd.f32 0.0, %v2075
      %v2077 = vpop.f32.mrf.mxu0
      %v2078 = vadd.f32 0.0, %v2077
      %2079 = vmatmul.bf16.gmra.mxu0 %v2037
      %v2080 = vpop.f32.mrf.mxu0
      %v2081 = vadd.f32 0.0, %v2080
      %v2082 = vpop.f32.mrf.mxu0
      %v2083 = vadd.f32 0.0, %v2082
      %2084 = vmatmul.bf16.gmra.mxu0 %v2040
      %v2085 = vpop.f32.mrf.mxu0
      %v2086 = vadd.f32 0.0, %v2085
      %v2087 = vpop.f32.mrf.mxu0
      %v2088 = vadd.f32 0.0, %v2087
      %2089 = vmatmul.bf16.gmra.mxu0 %v2043
      %v2090 = vpop.f32.mrf.mxu0
      %v2091 = vadd.f32 0.0, %v2090
      %v2092 = vpop.f32.mrf.mxu0
      %v2093 = vadd.f32 0.0, %v2092
      %2094 = vmatmul.bf16.gmra.mxu0 %v2046
      %v2095 = vpop.f32.mrf.mxu0
      %v2096 = vadd.f32 0.0, %v2095
      %v2097 = vpop.f32.mrf.mxu0
      %v2098 = vadd.f32 0.0, %v2097
      %2099 = vdwg.mxu0
      %v2100 = vadd.f32 %v1895, %v2061
      %v2101 = vadd.f32 %v1897, %v2063
      %v2102 = vadd.f32 %v1900, %v2066
      %v2103 = vadd.f32 %v1902, %v2068
      %v2104 = vadd.f32 %v1905, %v2071
      %v2105 = vadd.f32 %v1907, %v2073
      %v2106 = vadd.f32 %v1910, %v2076
      %v2107 = vadd.f32 %v1912, %v2078
      %v2108 = vadd.f32 %v1915, %v2081
      %v2109 = vadd.f32 %v1917, %v2083
      %v2110 = vadd.f32 %v1920, %v2086
      %v2111 = vadd.f32 %v1922, %v2088
      %v2112 = vadd.f32 %v1925, %v2091
      %v2113 = vadd.f32 %v1927, %v2093
      %v2114 = vadd.f32 %v1930, %v2096
      %v2115 = vadd.f32 %v1932, %v2098
      %s2116 = scalar_lea.vmem %s3, 6
      %v2117 = vld [vmem:[%s2116] sm:$0x3]
      %v2120 = vunpack.c.l.b16 %v1517
      %v2121 = vunpack.c.l.b16 %v1518
      %v2122 = vpack.c.b16 %v2121, %v2120
      %v2124 = vsel %vm556, %v2122, 0
      %v2127 = vand.u32 %v2117, %v584
      %2129 = vmatpush.bf16.msra.mxu0 0
      %2130 = vmatpush.bf16.msra.mxu0 0
      %2131 = vmatpush.bf16.msra.mxu0 0
      %2132 = vmatpush.bf16.msra.mxu0 0
      %2133 = vmatpush.bf16.msra.mxu0 0
      %2134 = vmatpush.bf16.msra.mxu0 0
      %2135 = vmatpush.bf16.msra.mxu0 0
      %2136 = vmatpush.bf16.msra.mxu0 %v2127
      %2137 = vmatmul.bf16.gmra.mxu0 %v1862
      %v2138 = vpop.f32.mrf.mxu0
      %v2139 = vadd.f32 0.0, %v2138
      %v2140 = vpop.f32.mrf.mxu0
      %v2141 = vadd.f32 0.0, %v2140
      %2142 = vmatmul.bf16.gmra.mxu0 %v1865
      %v2143 = vpop.f32.mrf.mxu0
      %v2144 = vadd.f32 0.0, %v2143
      %v2145 = vpop.f32.mrf.mxu0
      %v2146 = vadd.f32 0.0, %v2145
      %2147 = vmatmul.bf16.gmra.mxu0 %v1868
      %v2148 = vpop.f32.mrf.mxu0
      %v2149 = vadd.f32 0.0, %v2148
      %v2150 = vpop.f32.mrf.mxu0
      %v2151 = vadd.f32 0.0, %v2150
      %2152 = vmatmul.bf16.gmra.mxu0 %v1871
      %v2153 = vpop.f32.mrf.mxu0
      %v2154 = vadd.f32 0.0, %v2153
      %v2155 = vpop.f32.mrf.mxu0
      %v2156 = vadd.f32 0.0, %v2155
      %2157 = vmatmul.bf16.gmra.mxu0 %v1874
      %v2158 = vpop.f32.mrf.mxu0
      %v2159 = vadd.f32 0.0, %v2158
      %v2160 = vpop.f32.mrf.mxu0
      %v2161 = vadd.f32 0.0, %v2160
      %2162 = vmatmul.bf16.gmra.mxu0 %v1877
      %v2163 = vpop.f32.mrf.mxu0
      %v2164 = vadd.f32 0.0, %v2163
      %v2165 = vpop.f32.mrf.mxu0
      %v2166 = vadd.f32 0.0, %v2165
      %2167 = vmatmul.bf16.gmra.mxu0 %v1880
      %v2168 = vpop.f32.mrf.mxu0
      %v2169 = vadd.f32 0.0, %v2168
      %v2170 = vpop.f32.mrf.mxu0
      %v2171 = vadd.f32 0.0, %v2170
      %2172 = vmatmul.bf16.gmra.mxu0 %v2124
      %v2173 = vpop.f32.mrf.mxu0
      %v2174 = vadd.f32 0.0, %v2173
      %v2175 = vpop.f32.mrf.mxu0
      %v2176 = vadd.f32 0.0, %v2175
      %2177 = vdwg.mxu0
      %v2178 = vadd.f32 %v2100, %v2139
      %v2179 = vadd.f32 %v2101, %v2141
      %v2180 = vadd.f32 %v2102, %v2144
      %v2181 = vadd.f32 %v2103, %v2146
      %v2182 = vadd.f32 %v2104, %v2149
      %v2183 = vadd.f32 %v2105, %v2151
      %v2184 = vadd.f32 %v2106, %v2154
      %v2185 = vadd.f32 %v2107, %v2156
      %v2186 = vadd.f32 %v2108, %v2159
      %v2187 = vadd.f32 %v2109, %v2161
      %v2188 = vadd.f32 %v2110, %v2164
      %v2189 = vadd.f32 %v2111, %v2166
      %v2190 = vadd.f32 %v2112, %v2169
      %v2191 = vadd.f32 %v2113, %v2171
      %v2192 = vadd.f32 %v2114, %v2174
      %v2193 = vadd.f32 %v2115, %v2176
      %v2195 = vshrl.u32 %v1517, 16
      %v2197 = vrot.slane %v2195, 4
      %v2198 = vshll.u32 %v1517, 16
      %v2200 = vrot.slane %v2198, 5
      %v2201 = vor.u32 %v2197, %v2200
      %v2202 = vrot.slane %v2201, 4
      %v2204 = vshll.u32 %v1518, 16
      %v2206 = vrot.slane %v2204, 5
      %v2207 = vsel %vm337, %v2202, %v2206
      %v2208 = vshrl.u32 %v1518, 16
      %v2210 = vrot.slane %v2208, 4
      %v2211 = vor.u32 %v2210, %v2206
      %v2212 = vrot.slane %v2211, 4
      %v2214 = vshll.u32 %v1519, 16
      %v2216 = vrot.slane %v2214, 5
      %v2217 = vsel %vm337, %v2212, %v2216
      %s2218 = scalar_lea.vmem %s3, 8
      %v2219 = vld [vmem:[%s2218] sm:$0x3]
      %v2220 = vunpack.c.l.b16 %v2207
      %v2221 = vunpack.c.l.b16 %v2217
      %v2222 = vpack.c.b16 %v2221, %v2220
      %v2224 = vsel %vm556, %v2222, 0
      %v2227 = vand.u32 %v2219, %v584
      %2229 = vmatpush.bf16.msra.mxu0 0
      %2230 = vmatpush.bf16.msra.mxu0 0
      %2231 = vmatpush.bf16.msra.mxu0 0
      %2232 = vmatpush.bf16.msra.mxu0 0
      %2233 = vmatpush.bf16.msra.mxu0 0
      %2234 = vmatpush.bf16.msra.mxu0 0
      %2235 = vmatpush.bf16.msra.mxu0 0
      %2236 = vmatpush.bf16.msra.mxu0 %v2227
      %2237 = vmatmul.bf16.gmra.mxu0 %v1746
      %v2238 = vpop.f32.mrf.mxu0
      %v2239 = vadd.f32 0.0, %v2238
      %v2240 = vpop.f32.mrf.mxu0
      %v2241 = vadd.f32 0.0, %v2240
      %2242 = vmatmul.bf16.gmra.mxu0 %v1749
      %v2243 = vpop.f32.mrf.mxu0
      %v2244 = vadd.f32 0.0, %v2243
      %v2245 = vpop.f32.mrf.mxu0
      %v2246 = vadd.f32 0.0, %v2245
      %2247 = vmatmul.bf16.gmra.mxu0 %v1752
      %v2248 = vpop.f32.mrf.mxu0
      %v2249 = vadd.f32 0.0, %v2248
      %v2250 = vpop.f32.mrf.mxu0
      %v2251 = vadd.f32 0.0, %v2250
      %2252 = vmatmul.bf16.gmra.mxu0 %v1755
      %v2253 = vpop.f32.mrf.mxu0
      %v2254 = vadd.f32 0.0, %v2253
      %v2255 = vpop.f32.mrf.mxu0
      %v2256 = vadd.f32 0.0, %v2255
      %2257 = vmatmul.bf16.gmra.mxu0 %v1758
      %v2258 = vpop.f32.mrf.mxu0
      %v2259 = vadd.f32 0.0, %v2258
      %v2260 = vpop.f32.mrf.mxu0
      %v2261 = vadd.f32 0.0, %v2260
      %2262 = vmatmul.bf16.gmra.mxu0 %v1761
      %v2263 = vpop.f32.mrf.mxu0
      %v2264 = vadd.f32 0.0, %v2263
      %v2265 = vpop.f32.mrf.mxu0
      %v2266 = vadd.f32 0.0, %v2265
      %2267 = vmatmul.bf16.gmra.mxu0 %v1764
      %v2268 = vpop.f32.mrf.mxu0
      %v2269 = vadd.f32 0.0, %v2268
      %v2270 = vpop.f32.mrf.mxu0
      %v2271 = vadd.f32 0.0, %v2270
      %2272 = vmatmul.bf16.gmra.mxu0 %v2224
      %v2273 = vpop.f32.mrf.mxu0
      %v2274 = vadd.f32 0.0, %v2273
      %v2275 = vpop.f32.mrf.mxu0
      %v2276 = vadd.f32 0.0, %v2275
      %2277 = vdwg.mxu0
      %v2278 = vadd.f32 %v2178, %v2239
      %v2279 = vadd.f32 %v2179, %v2241
      %v2280 = vadd.f32 %v2180, %v2244
      %v2281 = vadd.f32 %v2181, %v2246
      %v2282 = vadd.f32 %v2182, %v2249
      %v2283 = vadd.f32 %v2183, %v2251
      %v2284 = vadd.f32 %v2184, %v2254
      %v2285 = vadd.f32 %v2185, %v2256
      %v2286 = vadd.f32 %v2186, %v2259
      %v2287 = vadd.f32 %v2187, %v2261
      %v2288 = vadd.f32 %v2188, %v2264
      %v2289 = vadd.f32 %v2189, %v2266
      %v2290 = vadd.f32 %v2190, %v2269
      %v2291 = vadd.f32 %v2191, %v2271
      %v2292 = vadd.f32 %v2192, %v2274
      %v2293 = vadd.f32 %v2193, %v2276
      %v2295 = vrot.slane %v1517, 5
      %v2296 = vrot.slane %v2295, 4
      %v2297 = vrot.slane %v1518, 5
      %v2298 = vsel %vm763, %v2296, %v2297
      %v2299 = vrot.slane %v2297, 4
      %v2300 = vrot.slane %v1519, 5
      %v2301 = vsel %vm763, %v2299, %v2300
      %s2302 = scalar_lea.vmem %s3, 10
      %v2303 = vld [vmem:[%s2302] sm:$0x3]
      %v2304 = vunpack.c.l.b16 %v2298
      %v2305 = vunpack.c.l.b16 %v2301
      %v2306 = vpack.c.b16 %v2305, %v2304
      %v2308 = vsel %vm556, %v2306, 0
      %v2311 = vand.u32 %v2303, %v584
      %2313 = vmatpush.bf16.msra.mxu0 0
      %2314 = vmatpush.bf16.msra.mxu0 0
      %2315 = vmatpush.bf16.msra.mxu0 0
      %2316 = vmatpush.bf16.msra.mxu0 0
      %2317 = vmatpush.bf16.msra.mxu0 0
      %2318 = vmatpush.bf16.msra.mxu0 0
      %2319 = vmatpush.bf16.msra.mxu0 0
      %2320 = vmatpush.bf16.msra.mxu0 %v2311
      %2321 = vmatmul.bf16.gmra.mxu0 %v2028
      %v2322 = vpop.f32.mrf.mxu0
      %v2323 = vadd.f32 0.0, %v2322
      %v2324 = vpop.f32.mrf.mxu0
      %v2325 = vadd.f32 0.0, %v2324
      %2326 = vmatmul.bf16.gmra.mxu0 %v2031
      %v2327 = vpop.f32.mrf.mxu0
      %v2328 = vadd.f32 0.0, %v2327
      %v2329 = vpop.f32.mrf.mxu0
      %v2330 = vadd.f32 0.0, %v2329
      %2331 = vmatmul.bf16.gmra.mxu0 %v2034
      %v2332 = vpop.f32.mrf.mxu0
      %v2333 = vadd.f32 0.0, %v2332
      %v2334 = vpop.f32.mrf.mxu0
      %v2335 = vadd.f32 0.0, %v2334
      %2336 = vmatmul.bf16.gmra.mxu0 %v2037
      %v2337 = vpop.f32.mrf.mxu0
      %v2338 = vadd.f32 0.0, %v2337
      %v2339 = vpop.f32.mrf.mxu0
      %v2340 = vadd.f32 0.0, %v2339
      %2341 = vmatmul.bf16.gmra.mxu0 %v2040
      %v2342 = vpop.f32.mrf.mxu0
      %v2343 = vadd.f32 0.0, %v2342
      %v2344 = vpop.f32.mrf.mxu0
      %v2345 = vadd.f32 0.0, %v2344
      %2346 = vmatmul.bf16.gmra.mxu0 %v2043
      %v2347 = vpop.f32.mrf.mxu0
      %v2348 = vadd.f32 0.0, %v2347
      %v2349 = vpop.f32.mrf.mxu0
      %v2350 = vadd.f32 0.0, %v2349
      %2351 = vmatmul.bf16.gmra.mxu0 %v2046
      %v2352 = vpop.f32.mrf.mxu0
      %v2353 = vadd.f32 0.0, %v2352
      %v2354 = vpop.f32.mrf.mxu0
      %v2355 = vadd.f32 0.0, %v2354
      %2356 = vmatmul.bf16.gmra.mxu0 %v2308
      %v2357 = vpop.f32.mrf.mxu0
      %v2358 = vadd.f32 0.0, %v2357
      %v2359 = vpop.f32.mrf.mxu0
      %v2360 = vadd.f32 0.0, %v2359
      %2361 = vdwg.mxu0
      %v2362 = vadd.f32 %v2278, %v2323
      %v2363 = vadd.f32 %v2279, %v2325
      %v2364 = vadd.f32 %v2280, %v2328
      %v2365 = vadd.f32 %v2281, %v2330
      %v2366 = vadd.f32 %v2282, %v2333
      %v2367 = vadd.f32 %v2283, %v2335
      %v2368 = vadd.f32 %v2284, %v2338
      %v2369 = vadd.f32 %v2285, %v2340
      %v2370 = vadd.f32 %v2286, %v2343
      %v2371 = vadd.f32 %v2287, %v2345
      %v2372 = vadd.f32 %v2288, %v2348
      %v2373 = vadd.f32 %v2289, %v2350
      %v2374 = vadd.f32 %v2290, %v2353
      %v2375 = vadd.f32 %v2291, %v2355
      %v2376 = vadd.f32 %v2292, %v2358
      %v2377 = vadd.f32 %v2293, %v2360
      %s2378 = scalar_lea.vmem %s3, 12
      %v2379 = vld [vmem:[%s2378] sm:$0x3]
      %v2382 = vunpack.c.l.b16 %v1520
      %v2383 = vunpack.c.l.b16 %v1521
      %v2384 = vpack.c.b16 %v2383, %v2382
      %v2386 = vsel %vm556, %v2384, 0
      %v2389 = vand.u32 %v2379, %v584
      %2391 = vmatpush.bf16.msra.mxu0 0
      %2392 = vmatpush.bf16.msra.mxu0 0
      %2393 = vmatpush.bf16.msra.mxu0 0
      %2394 = vmatpush.bf16.msra.mxu0 0
      %2395 = vmatpush.bf16.msra.mxu0 0
      %2396 = vmatpush.bf16.msra.mxu0 0
      %2397 = vmatpush.bf16.msra.mxu0 0
      %2398 = vmatpush.bf16.msra.mxu0 %v2389
      %2399 = vmatmul.bf16.gmra.mxu0 %v1865
      %v2400 = vpop.f32.mrf.mxu0
      %v2401 = vadd.f32 0.0, %v2400
      %v2402 = vpop.f32.mrf.mxu0
      %v2403 = vadd.f32 0.0, %v2402
      %2404 = vmatmul.bf16.gmra.mxu0 %v1868
      %v2405 = vpop.f32.mrf.mxu0
      %v2406 = vadd.f32 0.0, %v2405
      %v2407 = vpop.f32.mrf.mxu0
      %v2408 = vadd.f32 0.0, %v2407
      %2409 = vmatmul.bf16.gmra.mxu0 %v1871
      %v2410 = vpop.f32.mrf.mxu0
      %v2411 = vadd.f32 0.0, %v2410
      %v2412 = vpop.f32.mrf.mxu0
      %v2413 = vadd.f32 0.0, %v2412
      %2414 = vmatmul.bf16.gmra.mxu0 %v1874
      %v2415 = vpop.f32.mrf.mxu0
      %v2416 = vadd.f32 0.0, %v2415
      %v2417 = vpop.f32.mrf.mxu0
      %v2418 = vadd.f32 0.0, %v2417
      %2419 = vmatmul.bf16.gmra.mxu0 %v1877
      %v2420 = vpop.f32.mrf.mxu0
      %v2421 = vadd.f32 0.0, %v2420
      %v2422 = vpop.f32.mrf.mxu0
      %v2423 = vadd.f32 0.0, %v2422
      %2424 = vmatmul.bf16.gmra.mxu0 %v1880
      %v2425 = vpop.f32.mrf.mxu0
      %v2426 = vadd.f32 0.0, %v2425
      %v2427 = vpop.f32.mrf.mxu0
      %v2428 = vadd.f32 0.0, %v2427
      %2429 = vmatmul.bf16.gmra.mxu0 %v2124
      %v2430 = vpop.f32.mrf.mxu0
      %v2431 = vadd.f32 0.0, %v2430
      %v2432 = vpop.f32.mrf.mxu0
      %v2433 = vadd.f32 0.0, %v2432
      %2434 = vmatmul.bf16.gmra.mxu0 %v2386
      %v2435 = vpop.f32.mrf.mxu0
      %v2436 = vadd.f32 0.0, %v2435
      %v2437 = vpop.f32.mrf.mxu0
      %v2438 = vadd.f32 0.0, %v2437
      %2439 = vdwg.mxu0
      %v2440 = vadd.f32 %v2362, %v2401
      %v2441 = vadd.f32 %v2363, %v2403
      %v2442 = vadd.f32 %v2364, %v2406
      %v2443 = vadd.f32 %v2365, %v2408
      %v2444 = vadd.f32 %v2366, %v2411
      %v2445 = vadd.f32 %v2367, %v2413
      %v2446 = vadd.f32 %v2368, %v2416
      %v2447 = vadd.f32 %v2369, %v2418
      %v2448 = vadd.f32 %v2370, %v2421
      %v2449 = vadd.f32 %v2371, %v2423
      %v2450 = vadd.f32 %v2372, %v2426
      %v2451 = vadd.f32 %v2373, %v2428
      %v2452 = vadd.f32 %v2374, %v2431
      %v2453 = vadd.f32 %v2375, %v2433
      %v2454 = vadd.f32 %v2376, %v2436
      %v2455 = vadd.f32 %v2377, %v2438
      %v2457 = vshrl.u32 %v1520, 16
      %v2459 = vrot.slane %v2457, 4
      %v2460 = vshll.u32 %v1520, 16
      %v2462 = vrot.slane %v2460, 5
      %v2463 = vor.u32 %v2459, %v2462
      %v2464 = vrot.slane %v2463, 4
      %v2466 = vshll.u32 %v1521, 16
      %v2468 = vrot.slane %v2466, 5
      %v2469 = vsel %vm337, %v2464, %v2468
      %v2470 = vshrl.u32 %v1521, 16
      %v2472 = vrot.slane %v2470, 4
      %v2473 = vor.u32 %v2472, %v2468
      %v2474 = vrot.slane %v2473, 4
      %v2476 = vshll.u32 %v1522, 16
      %v2478 = vrot.slane %v2476, 5
      %v2479 = vsel %vm337, %v2474, %v2478
      %s2480 = scalar_lea.vmem %s3, 14
      %v2481 = vld [vmem:[%s2480] sm:$0x3]
      %v2482 = vunpack.c.l.b16 %v2469
      %v2483 = vunpack.c.l.b16 %v2479
      %v2484 = vpack.c.b16 %v2483, %v2482
      %v2486 = vsel %vm556, %v2484, 0
      %v2489 = vand.u32 %v2481, %v584
      %2491 = vmatpush.bf16.msra.mxu0 0
      %2492 = vmatpush.bf16.msra.mxu0 0
      %2493 = vmatpush.bf16.msra.mxu0 0
      %2494 = vmatpush.bf16.msra.mxu0 0
      %2495 = vmatpush.bf16.msra.mxu0 0
      %2496 = vmatpush.bf16.msra.mxu0 0
      %2497 = vmatpush.bf16.msra.mxu0 0
      %2498 = vmatpush.bf16.msra.mxu0 %v2489
      %2499 = vmatmul.bf16.gmra.mxu0 %v1749
      %v2500 = vpop.f32.mrf.mxu0
      %v2501 = vadd.f32 0.0, %v2500
      %v2502 = vpop.f32.mrf.mxu0
      %v2503 = vadd.f32 0.0, %v2502
      %2504 = vmatmul.bf16.gmra.mxu0 %v1752
      %v2505 = vpop.f32.mrf.mxu0
      %v2506 = vadd.f32 0.0, %v2505
      %v2507 = vpop.f32.mrf.mxu0
      %v2508 = vadd.f32 0.0, %v2507
      %2509 = vmatmul.bf16.gmra.mxu0 %v1755
      %v2510 = vpop.f32.mrf.mxu0
      %v2511 = vadd.f32 0.0, %v2510
      %v2512 = vpop.f32.mrf.mxu0
      %v2513 = vadd.f32 0.0, %v2512
      %2514 = vmatmul.bf16.gmra.mxu0 %v1758
      %v2515 = vpop.f32.mrf.mxu0
      %v2516 = vadd.f32 0.0, %v2515
      %v2517 = vpop.f32.mrf.mxu0
      %v2518 = vadd.f32 0.0, %v2517
      %2519 = vmatmul.bf16.gmra.mxu0 %v1761
      %v2520 = vpop.f32.mrf.mxu0
      %v2521 = vadd.f32 0.0, %v2520
      %v2522 = vpop.f32.mrf.mxu0
      %v2523 = vadd.f32 0.0, %v2522
      %2524 = vmatmul.bf16.gmra.mxu0 %v1764
      %v2525 = vpop.f32.mrf.mxu0
      %v2526 = vadd.f32 0.0, %v2525
      %v2527 = vpop.f32.mrf.mxu0
      %v2528 = vadd.f32 0.0, %v2527
      %2529 = vmatmul.bf16.gmra.mxu0 %v2224
      %v2530 = vpop.f32.mrf.mxu0
      %v2531 = vadd.f32 0.0, %v2530
      %v2532 = vpop.f32.mrf.mxu0
      %v2533 = vadd.f32 0.0, %v2532
      %2534 = vmatmul.bf16.gmra.mxu0 %v2486
      %v2535 = vpop.f32.mrf.mxu0
      %v2536 = vadd.f32 0.0, %v2535
      %v2537 = vpop.f32.mrf.mxu0
      %v2538 = vadd.f32 0.0, %v2537
      %2539 = vdwg.mxu0
      %v2540 = vadd.f32 %v2440, %v2501
      %v2541 = vadd.f32 %v2441, %v2503
      %v2542 = vadd.f32 %v2442, %v2506
      %v2543 = vadd.f32 %v2443, %v2508
      %v2544 = vadd.f32 %v2444, %v2511
      %v2545 = vadd.f32 %v2445, %v2513
      %v2546 = vadd.f32 %v2446, %v2516
      %v2547 = vadd.f32 %v2447, %v2518
      %v2548 = vadd.f32 %v2448, %v2521
      %v2549 = vadd.f32 %v2449, %v2523
      %v2550 = vadd.f32 %v2450, %v2526
      %v2551 = vadd.f32 %v2451, %v2528
      %v2552 = vadd.f32 %v2452, %v2531
      %v2553 = vadd.f32 %v2453, %v2533
      %v2554 = vadd.f32 %v2454, %v2536
      %v2555 = vadd.f32 %v2455, %v2538
      %v2557 = vrot.slane %v1520, 5
      %v2558 = vrot.slane %v2557, 4
      %v2559 = vrot.slane %v1521, 5
      %v2560 = vsel %vm763, %v2558, %v2559
      %v2561 = vrot.slane %v2559, 4
      %v2562 = vrot.slane %v1522, 5
      %v2563 = vsel %vm763, %v2561, %v2562
      %s2564 = scalar_lea.vmem %s3, 16
      %v2565 = vld [vmem:[%s2564] sm:$0x3]
      %v2566 = vunpack.c.l.b16 %v2560
      %v2567 = vunpack.c.l.b16 %v2563
      %v2568 = vpack.c.b16 %v2567, %v2566
      %v2570 = vsel %vm556, %v2568, 0
      %v2573 = vand.u32 %v2565, %v584
      %2575 = vmatpush.bf16.msra.mxu0 0
      %2576 = vmatpush.bf16.msra.mxu0 0
      %2577 = vmatpush.bf16.msra.mxu0 0
      %2578 = vmatpush.bf16.msra.mxu0 0
      %2579 = vmatpush.bf16.msra.mxu0 0
      %2580 = vmatpush.bf16.msra.mxu0 0
      %2581 = vmatpush.bf16.msra.mxu0 0
      %2582 = vmatpush.bf16.msra.mxu0 %v2573
      %2583 = vmatmul.bf16.gmra.mxu0 %v2031
      %v2584 = vpop.f32.mrf.mxu0
      %v2585 = vadd.f32 0.0, %v2584
      %v2586 = vpop.f32.mrf.mxu0
      %v2587 = vadd.f32 0.0, %v2586
      %2588 = vmatmul.bf16.gmra.mxu0 %v2034
      %v2589 = vpop.f32.mrf.mxu0
      %v2590 = vadd.f32 0.0, %v2589
      %v2591 = vpop.f32.mrf.mxu0
      %v2592 = vadd.f32 0.0, %v2591
      %2593 = vmatmul.bf16.gmra.mxu0 %v2037
      %v2594 = vpop.f32.mrf.mxu0
      %v2595 = vadd.f32 0.0, %v2594
      %v2596 = vpop.f32.mrf.mxu0
      %v2597 = vadd.f32 0.0, %v2596
      %2598 = vmatmul.bf16.gmra.mxu0 %v2040
      %v2599 = vpop.f32.mrf.mxu0
      %v2600 = vadd.f32 0.0, %v2599
      %v2601 = vpop.f32.mrf.mxu0
      %v2602 = vadd.f32 0.0, %v2601
      %2603 = vmatmul.bf16.gmra.mxu0 %v2043
      %v2604 = vpop.f32.mrf.mxu0
      %v2605 = vadd.f32 0.0, %v2604
      %v2606 = vpop.f32.mrf.mxu0
      %v2607 = vadd.f32 0.0, %v2606
      %2608 = vmatmul.bf16.gmra.mxu0 %v2046
      %v2609 = vpop.f32.mrf.mxu0
      %v2610 = vadd.f32 0.0, %v2609
      %v2611 = vpop.f32.mrf.mxu0
      %v2612 = vadd.f32 0.0, %v2611
      %2613 = vmatmul.bf16.gmra.mxu0 %v2308
      %v2614 = vpop.f32.mrf.mxu0
      %v2615 = vadd.f32 0.0, %v2614
      %v2616 = vpop.f32.mrf.mxu0
      %v2617 = vadd.f32 0.0, %v2616
      %2618 = vmatmul.bf16.gmra.mxu0 %v2570
      %v2619 = vpop.f32.mrf.mxu0
      %v2620 = vadd.f32 0.0, %v2619
      %v2621 = vpop.f32.mrf.mxu0
      %v2622 = vadd.f32 0.0, %v2621
      %2623 = vdwg.mxu0
      %v2624 = vadd.f32 %v2540, %v2585
      %v2625 = vadd.f32 %v2541, %v2587
      %v2626 = vadd.f32 %v2542, %v2590
      %v2627 = vadd.f32 %v2543, %v2592
      %v2628 = vadd.f32 %v2544, %v2595
      %v2629 = vadd.f32 %v2545, %v2597
      %v2630 = vadd.f32 %v2546, %v2600
      %v2631 = vadd.f32 %v2547, %v2602
      %v2632 = vadd.f32 %v2548, %v2605
      %v2633 = vadd.f32 %v2549, %v2607
      %v2634 = vadd.f32 %v2550, %v2610
      %v2635 = vadd.f32 %v2551, %v2612
      %v2636 = vadd.f32 %v2552, %v2615
      %v2637 = vadd.f32 %v2553, %v2617
      %v2638 = vadd.f32 %v2554, %v2620
      %v2639 = vadd.f32 %v2555, %v2622
      %v2640 = vadd.f32 %v1446, %v2624
      %v2641 = vadd.f32 %v1447, %v2625
      %v2642 = vadd.f32 %v1448, %v2626
      %v2643 = vadd.f32 %v1449, %v2627
      %v2644 = vadd.f32 %v1450, %v2628
      %v2645 = vadd.f32 %v1451, %v2629
      %v2646 = vadd.f32 %v1452, %v2630
      %v2647 = vadd.f32 %v1453, %v2631
      %v2648 = vadd.f32 %v1454, %v2632
      %v2649 = vadd.f32 %v1455, %v2633
      %v2650 = vadd.f32 %v1456, %v2634
      %v2651 = vadd.f32 %v1457, %v2635
      %v2652 = vadd.f32 %v1458, %v2636
      %v2653 = vadd.f32 %v1459, %v2637
      %v2654 = vadd.f32 %v1460, %v2638
      %v2655 = vadd.f32 %v1461, %v2639
      %v2656 = vld [vmem:[%s4] sm:$0x1]
      %v2658 = vperm.slane %v2656, 0
      %v2660 = vadd.f32 %v2640, %v2658
      %v2661 = vadd.f32 %v2641, %v2658
      %v2662 = vadd.f32 %v2642, %v2658
      %v2663 = vadd.f32 %v2643, %v2658
      %v2664 = vadd.f32 %v2644, %v2658
      %v2665 = vadd.f32 %v2645, %v2658
      %v2666 = vadd.f32 %v2646, %v2658
      %v2667 = vadd.f32 %v2647, %v2658
      %v2668 = vadd.f32 %v2648, %v2658
      %v2669 = vadd.f32 %v2649, %v2658
      %v2670 = vadd.f32 %v2650, %v2658
      %v2671 = vadd.f32 %v2651, %v2658
      %v2672 = vadd.f32 %v2652, %v2658
      %v2673 = vadd.f32 %v2653, %v2658
      %v2674 = vadd.f32 %v2654, %v2658
      %v2675 = vadd.f32 %v2655, %v2658
      %vm2676 = vcmask 15360
      %2677 = vst.msk [vmem:[%s268] sm:$0xff] %vm2676, %v2660
      %2678 = vst.msk [vmem:[%s268 + $0x8] sm:$0xff] %vm2676, %v2661
      %2679 = vst.msk [vmem:[%s268 + $0x10] sm:$0xff] %vm2676, %v2662
      %2680 = vst.msk [vmem:[%s268 + $0x18] sm:$0xff] %vm2676, %v2663
      %2681 = vst.msk [vmem:[%s268 + $0x20] sm:$0xff] %vm2676, %v2664
      %2682 = vst.msk [vmem:[%s268 + $0x28] sm:$0xff] %vm2676, %v2665
      %2683 = vst.msk [vmem:[%s268 + $0x30] sm:$0xff] %vm2676, %v2666
      %2684 = vst.msk [vmem:[%s268 + $0x38] sm:$0xff] %vm2676, %v2667
      %2685 = vst.msk [vmem:[%s268 + $0x40] sm:$0xff] %vm2676, %v2668
      %2686 = vst.msk [vmem:[%s268 + $0x48] sm:$0xff] %vm2676, %v2669
      %2687 = vst.msk [vmem:[%s268 + $0x50] sm:$0xff] %vm2676, %v2670
      %2688 = vst.msk [vmem:[%s268 + $0x58] sm:$0xff] %vm2676, %v2671
      %2689 = vst.msk [vmem:[%s268 + $0x60] sm:$0xff] %vm2676, %v2672
      %2690 = vst.msk [vmem:[%s268 + $0x68] sm:$0xff] %vm2676, %v2673
      %2691 = vst.msk [vmem:[%s268 + $0x70] sm:$0xff] %vm2676, %v2674
      %2692 = vst.msk [vmem:[%s268 + $0x78] sm:$0xff] %vm2676, %v2675
      %s2693 = smul.u32 8, %s21
      %p2694 = scmp.lt.s32.totalorder %s20, 1
      %s2695 = scalar_select %p2694, %s20, 1
      %p2696 = scmp.lt.s32.totalorder %s2693, 15
      %s2697 = scalar_select %p2696, %s2693, 15
      %s2698 = smul.addr %s2697, 2
      %s2699 = smul.addr %s2695, 32
      %s2700 = sadd.s32 %s2698, %s2699
      %s2701 = smul.addr %s2700, 8
      %s2702 = scalar_lea.vmem %s5, %s2701
      // Predicated region
      $region41: #{tpu_custom_call.1} parent=39 // pred_check
        %p2703 = pneg %p163
      $region42: #{tpu_custom_call.1} parent=39 // pred_check_branch
        %2705 = sbr.rel (%p2703) target = $region44
      $region43: #{tpu_custom_call.1} parent=39 // pred_region
        %s2706 = smul.u32 8, %s21
      $region44: #{tpu_custom_call.1} parent=39 // pred_fallthru
        _
    $region40: #{tpu_custom_call.1} parent=5 // pred_fallthru
      _
    %p2707 = scmp.le.s32.totalorder 2, %s11
    // Predicated region
    $region45: #{tpu_custom_call.1} parent=5 // pred_check
      %p2708 = pneg %p2707
    $region46: #{tpu_custom_call.1} parent=5 // pred_check_branch
      %2710 = sbr.rel (%p2708) target = $region48
    $region47: #{tpu_custom_call.1} parent=5 // pred_region
      %s2711 = ssub.s32 %s11, 2
      // Predicated region
      $region49: #{tpu_custom_call.1} parent=47 // pred_check
        %p2712 = pneg %p169
      $region50: #{tpu_custom_call.1} parent=47 // pred_check_branch
        %2714 = sbr.rel (%p2712) target = $region52
      $region51: #{tpu_custom_call.1} parent=47 // pred_region
        %s2715 = smul.u32 8, %s23
        %p2716 = scmp.lt.s32.totalorder %s22, 1
        %s2717 = scalar_select %p2716, %s22, 1
        %p2718 = scmp.lt.s32.totalorder %s2715, 15
        %s2719 = scalar_select %p2718, %s2715, 15
        %s2720 = smul.addr %s2719, 2
        %s2721 = smul.addr %s2717, 32
        %s2722 = sadd.s32 %s2720, %s2721
        %s2723 = smul.addr %s2722, 8
        %s2724 = scalar_lea.vmem %s5, %s2723
      $region52: #{tpu_custom_call.1} parent=47 // pred_fallthru
        _
    $region48: #{tpu_custom_call.1} parent=5 // pred_fallthru
      _
  $region6: #{tpu_custom_call.1} parent=0 // loop_footer
    %s15 = sadd.s32 1, %s11
  $region7: #{tpu_custom_call.1} parent=0 // loop_footer_branch
    %10 = sbr.rel target = $region3
  $region8: #{tpu_custom_call.1} parent=0 // loop_exit
    _

</llo_original>
